<compile_context>
chip_gen: v5e
topology: v5e:2x2
jax: 0.10.0
libtpu: 0.0.40
codegen_flags: <defaults>
</compile_context>

<pallas_src>
import jax
import jax.numpy as jnp
from jax import lax
from jax.experimental import pallas as pl
from jax.experimental.pallas import tpu as pltpu

POOL_SIZES = (5, 9, 13)   # module order; forward concatenates reversed [13, 9, 5], then x
HALO = 2                  # 5 // 2 — per-stage halo of the cascaded 5x5 pools


def spp_kernel(x_ref, o5_ref, o9_ref, o13_ref, pad_ref):
    # x_ref   : (1, H, W, Ct)        VMEM  (NHWC block, channels on lanes)
    # oK_ref  : (1, H, W, Ct)        VMEM  for K in {5, 9, 13}
    # pad_ref : (H+4, W+4, Ct)       VMEM scratch with a width-2 -inf halo
    _, H, W, Ct = x_ref.shape
    Hp, Wp, _ = pad_ref.shape
    dt = pad_ref.dtype

    # -inf halo: border only (the interior is fully overwritten each stage; the border never is).
    pad_ref[0:HALO, :, :] = jnp.full((HALO, Wp, Ct), -jnp.inf, dt)
    pad_ref[H + HALO:Hp, :, :] = jnp.full((HALO, Wp, Ct), -jnp.inf, dt)
    pad_ref[HALO:H + HALO, 0:HALO, :] = jnp.full((H, HALO, Ct), -jnp.inf, dt)
    pad_ref[HALO:H + HALO, W + HALO:Wp, :] = jnp.full((H, HALO, Ct), -jnp.inf, dt)

    # Stage-0 input.
    pad_ref[HALO:H + HALO, HALO:W + HALO, :] = x_ref[0]

    outs = (o5_ref, o9_ref, o13_ref)
    for s in range(3):
        # Separable 5x5 / stride-1 / pad-2 max pool of the (re-padded) previous stage.
        # Rows first: shifts along the leading dim are plain address offsets (cheap vld).
        r = pad_ref[0:H, :, :]                        # init accumulator with the first view
        for dh in range(1, 5):
            r = jnp.maximum(r, pad_ref[dh:dh + H, :, :])
        # Columns: +/-2 shifts along the sublane dim of the row-pooled intermediate.
        y = r[:, 0:W, :]
        for dw in range(1, 5):
            y = jnp.maximum(y, r[:, dw:dw + W, :])
        outs[s][0] = y
        if s < 2:
            # Re-pad (interior only) for the next cascade stage; the halo is still -inf.
            pad_ref[HALO:H + HALO, HALO:W + HALO, :] = y


def _per_step_bytes(c_tile, H, W, itemsize):
    blocks = 2 * (1 + 3) * H * W * c_tile * itemsize                     # double-buffered in + 3 out
    scratch = (H + 2 * HALO) * (W + 2 * HALO) * c_tile * itemsize        # padded scratch
    interm = 2 * H * (W + 2 * HALO) * c_tile * itemsize                  # separable-pool temporaries
    return blocks + scratch + interm


def _pick_c_tile(C, H, W, itemsize):
    """Largest 128-multiple channel tile dividing C whose working set fits comfortably in VMEM."""
    if C % 128 != 0:
        return C  # small/odd channel counts: take the full channel dim (still lane-dense layout)
    for cand in (1024, 512, 256, 128):
        if C % cand == 0 and _per_step_bytes(cand, H, W, itemsize) <= 24 * 1024 * 1024:
            return cand
    return 128  # TODO(synk): also tile H for extreme H*W where even C_TILE=128 overflows VMEM


def spatial_pyramid_pooling(x):
    N, C, H, W = x.shape
    if not jnp.issubdtype(x.dtype, jnp.floating):
        raise TypeError("SPP kernel uses -inf halo padding; floating-point input required")
    itemsize = jnp.dtype(x.dtype).itemsize
    c_tile = _pick_c_tile(C, H, W, itemsize)

    x_nhwc = jnp.transpose(x, (0, 2, 3, 1))  # channels on lanes (lane-dense inside the kernel)

    blk = pl.BlockSpec((1, H, W, c_tile), lambda n, ct: (n, 0, 0, ct))
    out_sds = jax.ShapeDtypeStruct((N, H, W, C), x.dtype)

    vmem_limit = int(min(max(32 * 1024 * 1024,
                             2 * _per_step_bytes(c_tile, H, W, itemsize)),
                         64 * 1024 * 1024))

    p5, p9, p13 = pl.pallas_call(
        spp_kernel,
        out_shape=(out_sds, out_sds, out_sds),
        grid_spec=pltpu.PrefetchScalarGridSpec(
            num_scalar_prefetch=0,
            grid=(N, C // c_tile),
            in_specs=[blk],
            out_specs=[blk, blk, blk],
            scratch_shapes=[pltpu.VMEM((H + 2 * HALO, W + 2 * HALO, c_tile), x.dtype)],
        ),
        compiler_params=pltpu.CompilerParams(
            dimension_semantics=("parallel", "parallel"),
            vmem_limit_bytes=vmem_limit,
        ),
    )(x_nhwc)

    def to_nchw(t):
        return jnp.transpose(t, (0, 3, 1, 2))

    # Identity branch reuses the original NCHW input directly (no kernel copy needed).
    return jnp.concatenate([to_nchw(p13), to_nchw(p9), to_nchw(p5), x], axis=1)


def _reference_spp(x):
    # Pure-JAX reference (matches PyTorch MaxPool2d(k, 1, k//2) semantics).
    feats = []
    for k in reversed(POOL_SIZES):
        p = k // 2
        pooled = lax.reduce_window(
            x, -jnp.inf, lax.max,
            window_dimensions=(1, 1, k, k),
            window_strides=(1, 1, 1, 1),
            padding=((0, 0), (0, 0), (p, p), (p, p)),
        )
        feats.append(pooled)
    feats.append(x)
    return jnp.concatenate(feats, axis=1)


if __name__ == "__main__":
    key = jax.random.PRNGKey(0)
    x = jax.random.normal(key, (2, 4, 16, 16), dtype=jnp.float32)

    out = jax.block_until_ready(spatial_pyramid_pooling(x))

    ref = _reference_spp(x)
    assert out.shape == (2, 16, 16, 16), out.shape
    assert jnp.allclose(out, ref, atol=1e-6, rtol=1e-6), "mismatch vs reference"

    print("KERNEL_OK")
</pallas_src>

<mosaic_0001>
module attributes {stable_mosaic.version = 11 : i64} {
  func.func @spp_kernel(%arg0: i32, %arg1: i32, %arg2: memref<1x16x16x4xf32, #tpu.memory_space<vmem>>, %arg3: memref<1x16x16x4xf32, #tpu.memory_space<vmem>>, %arg4: memref<1x16x16x4xf32, #tpu.memory_space<vmem>>, %arg5: memref<1x16x16x4xf32, #tpu.memory_space<vmem>>, %arg6: memref<20x20x4xf32, #tpu.memory_space<vmem>>) attributes {dimension_semantics = [#tpu.dimension_semantics<parallel>, #tpu.dimension_semantics<parallel>], iteration_bounds = array<i64: 2, 1>, scalar_prefetch = 0 : i64, scratch_operands = 1 : i64, tpu.core_type = #tpu.core_type<tc>, window_params = [{transform_indices = @transform_0, window_bounds = array<i64: 1, 16, 16, 4>}, {transform_indices = @transform_1, window_bounds = array<i64: 1, 16, 16, 4>}, {transform_indices = @transform_2, window_bounds = array<i64: 1, 16, 16, 4>}, {transform_indices = @transform_3, window_bounds = array<i64: 1, 16, 16, 4>}]} {
    %cst = arith.constant 0xFF800000 : f32
    %0 = vector.broadcast %cst : f32 to vector<2x20x4xf32>
    %c0 = arith.constant 0 : index
    %c0_0 = arith.constant 0 : index
    %c0_1 = arith.constant 0 : index
    %1 = vector.load %arg6[%c0, %c0_0, %c0_1] : memref<20x20x4xf32, #tpu.memory_space<vmem>>, vector<2x20x4xf32>
    tpu.vector_store %arg6[%c0, %c0_0, %c0_1], %0 {strides = array<i32>} : memref<20x20x4xf32, #tpu.memory_space<vmem>>, vector<2x20x4xf32>,
    %cst_2 = arith.constant 0xFF800000 : f32
    %2 = vector.broadcast %cst_2 : f32 to vector<2x20x4xf32>
    %c18 = arith.constant 18 : index
    %c0_3 = arith.constant 0 : index
    %c0_4 = arith.constant 0 : index
    %3 = vector.load %arg6[%c18, %c0_3, %c0_4] : memref<20x20x4xf32, #tpu.memory_space<vmem>>, vector<2x20x4xf32>
    tpu.vector_store %arg6[%c18, %c0_3, %c0_4], %2 {strides = array<i32>} : memref<20x20x4xf32, #tpu.memory_space<vmem>>, vector<2x20x4xf32>,
    %cst_5 = arith.constant 0xFF800000 : f32
    %4 = vector.broadcast %cst_5 : f32 to vector<16x2x4xf32>
    %c2 = arith.constant 2 : index
    %c0_6 = arith.constant 0 : index
    %c0_7 = arith.constant 0 : index
    %5 = vector.load %arg6[%c2, %c0_6, %c0_7] : memref<20x20x4xf32, #tpu.memory_space<vmem>>, vector<16x2x4xf32>
    tpu.vector_store %arg6[%c2, %c0_6, %c0_7], %4 {strides = array<i32>} : memref<20x20x4xf32, #tpu.memory_space<vmem>>, vector<16x2x4xf32>,
    %cst_8 = arith.constant 0xFF800000 : f32
    %6 = vector.broadcast %cst_8 : f32 to vector<16x2x4xf32>
    %c2_9 = arith.constant 2 : index
    %c18_10 = arith.constant 18 : index
    %c0_11 = arith.constant 0 : index
    %7 = vector.load %arg6[%c2_9, %c18_10, %c0_11] : memref<20x20x4xf32, #tpu.memory_space<vmem>>, vector<16x2x4xf32>
    tpu.vector_store %arg6[%c2_9, %c18_10, %c0_11], %6 {strides = array<i32>} : memref<20x20x4xf32, #tpu.memory_space<vmem>>, vector<16x2x4xf32>,
    %c0_12 = arith.constant 0 : index
    %c0_13 = arith.constant 0 : index
    %c0_14 = arith.constant 0 : index
    %c0_15 = arith.constant 0 : index
    %8 = vector.load %arg2[%c0_12, %c0_13, %c0_14, %c0_15] : memref<1x16x16x4xf32, #tpu.memory_space<vmem>>, vector<1x16x16x4xf32>
    %9 = vector.shape_cast %8 : vector<1x16x16x4xf32> to vector<16x16x4xf32>
    %c2_16 = arith.constant 2 : index
    %c2_17 = arith.constant 2 : index
    %c0_18 = arith.constant 0 : index
    %10 = vector.load %arg6[%c2_16, %c2_17, %c0_18] : memref<20x20x4xf32, #tpu.memory_space<vmem>>, vector<16x16x4xf32>
    tpu.vector_store %arg6[%c2_16, %c2_17, %c0_18], %9 {strides = array<i32>} : memref<20x20x4xf32, #tpu.memory_space<vmem>>, vector<16x16x4xf32>,
    %c0_19 = arith.constant 0 : index
    %c0_20 = arith.constant 0 : index
    %c0_21 = arith.constant 0 : index
    %11 = vector.load %arg6[%c0_19, %c0_20, %c0_21] : memref<20x20x4xf32, #tpu.memory_space<vmem>>, vector<16x20x4xf32>
    %c1 = arith.constant 1 : index
    %c0_22 = arith.constant 0 : index
    %c0_23 = arith.constant 0 : index
    %12 = vector.load %arg6[%c1, %c0_22, %c0_23] : memref<20x20x4xf32, #tpu.memory_space<vmem>>, vector<16x20x4xf32>
    %13 = arith.maximumf %11, %12 : vector<16x20x4xf32>
    %c2_24 = arith.constant 2 : index
    %c0_25 = arith.constant 0 : index
    %c0_26 = arith.constant 0 : index
    %14 = vector.load %arg6[%c2_24, %c0_25, %c0_26] : memref<20x20x4xf32, #tpu.memory_space<vmem>>, vector<16x20x4xf32>
    %15 = arith.maximumf %13, %14 : vector<16x20x4xf32>
    %c3 = arith.constant 3 : index
    %c0_27 = arith.constant 0 : index
    %c0_28 = arith.constant 0 : index
    %16 = vector.load %arg6[%c3, %c0_27, %c0_28] : memref<20x20x4xf32, #tpu.memory_space<vmem>>, vector<16x20x4xf32>
    %17 = arith.maximumf %15, %16 : vector<16x20x4xf32>
    %c4 = arith.constant 4 : index
    %c0_29 = arith.constant 0 : index
    %c0_30 = arith.constant 0 : index
    %18 = vector.load %arg6[%c4, %c0_29, %c0_30] : memref<20x20x4xf32, #tpu.memory_space<vmem>>, vector<16x20x4xf32>
    %19 = arith.maximumf %17, %18 : vector<16x20x4xf32>
    %20 = vector.extract_strided_slice %19 {offsets = [0, 0, 0], sizes = [16, 16, 4], strides = [1, 1, 1]} : vector<16x20x4xf32> to vector<16x16x4xf32>
    %21 = vector.extract_strided_slice %19 {offsets = [0, 1, 0], sizes = [16, 16, 4], strides = [1, 1, 1]} : vector<16x20x4xf32> to vector<16x16x4xf32>
    %22 = arith.maximumf %20, %21 : vector<16x16x4xf32>
    %23 = vector.extract_strided_slice %19 {offsets = [0, 2, 0], sizes = [16, 16, 4], strides = [1, 1, 1]} : vector<16x20x4xf32> to vector<16x16x4xf32>
    %24 = arith.maximumf %22, %23 : vector<16x16x4xf32>
    %25 = vector.extract_strided_slice %19 {offsets = [0, 3, 0], sizes = [16, 16, 4], strides = [1, 1, 1]} : vector<16x20x4xf32> to vector<16x16x4xf32>
    %26 = arith.maximumf %24, %25 : vector<16x16x4xf32>
    %27 = vector.extract_strided_slice %19 {offsets = [0, 4, 0], sizes = [16, 16, 4], strides = [1, 1, 1]} : vector<16x20x4xf32> to vector<16x16x4xf32>
    %28 = arith.maximumf %26, %27 : vector<16x16x4xf32>
    %c0_31 = arith.constant 0 : index
    %c0_32 = arith.constant 0 : index
    %c0_33 = arith.constant 0 : index
    %c0_34 = arith.constant 0 : index
    %29 = vector.load %arg3[%c0_31, %c0_32, %c0_33, %c0_34] : memref<1x16x16x4xf32, #tpu.memory_space<vmem>>, vector<1x16x16x4xf32>
    %30 = vector.shape_cast %29 : vector<1x16x16x4xf32> to vector<16x16x4xf32>
    %31 = vector.shape_cast %28 : vector<16x16x4xf32> to vector<1x16x16x4xf32>
    tpu.vector_store %arg3[%c0_31, %c0_32, %c0_33, %c0_34], %31 {strides = array<i32>} : memref<1x16x16x4xf32, #tpu.memory_space<vmem>>, vector<1x16x16x4xf32>,
    %c2_35 = arith.constant 2 : index
    %c2_36 = arith.constant 2 : index
    %c0_37 = arith.constant 0 : index
    %32 = vector.load %arg6[%c2_35, %c2_36, %c0_37] : memref<20x20x4xf32, #tpu.memory_space<vmem>>, vector<16x16x4xf32>
    tpu.vector_store %arg6[%c2_35, %c2_36, %c0_37], %28 {strides = array<i32>} : memref<20x20x4xf32, #tpu.memory_space<vmem>>, vector<16x16x4xf32>,
    %c0_38 = arith.constant 0 : index
    %c0_39 = arith.constant 0 : index
    %c0_40 = arith.constant 0 : index
    %33 = vector.load %arg6[%c0_38, %c0_39, %c0_40] : memref<20x20x4xf32, #tpu.memory_space<vmem>>, vector<16x20x4xf32>
    %c1_41 = arith.constant 1 : index
    %c0_42 = arith.constant 0 : index
    %c0_43 = arith.constant 0 : index
    %34 = vector.load %arg6[%c1_41, %c0_42, %c0_43] : memref<20x20x4xf32, #tpu.memory_space<vmem>>, vector<16x20x4xf32>
    %35 = arith.maximumf %33, %34 : vector<16x20x4xf32>
    %c2_44 = arith.constant 2 : index
    %c0_45 = arith.constant 0 : index
    %c0_46 = arith.constant 0 : index
    %36 = vector.load %arg6[%c2_44, %c0_45, %c0_46] : memref<20x20x4xf32, #tpu.memory_space<vmem>>, vector<16x20x4xf32>
    %37 = arith.maximumf %35, %36 : vector<16x20x4xf32>
    %c3_47 = arith.constant 3 : index
    %c0_48 = arith.constant 0 : index
    %c0_49 = arith.constant 0 : index
    %38 = vector.load %arg6[%c3_47, %c0_48, %c0_49] : memref<20x20x4xf32, #tpu.memory_space<vmem>>, vector<16x20x4xf32>
    %39 = arith.maximumf %37, %38 : vector<16x20x4xf32>
    %c4_50 = arith.constant 4 : index
    %c0_51 = arith.constant 0 : index
    %c0_52 = arith.constant 0 : index
    %40 = vector.load %arg6[%c4_50, %c0_51, %c0_52] : memref<20x20x4xf32, #tpu.memory_space<vmem>>, vector<16x20x4xf32>
    %41 = arith.maximumf %39, %40 : vector<16x20x4xf32>
    %42 = vector.extract_strided_slice %41 {offsets = [0, 0, 0], sizes = [16, 16, 4], strides = [1, 1, 1]} : vector<16x20x4xf32> to vector<16x16x4xf32>
    %43 = vector.extract_strided_slice %41 {offsets = [0, 1, 0], sizes = [16, 16, 4], strides = [1, 1, 1]} : vector<16x20x4xf32> to vector<16x16x4xf32>
    %44 = arith.maximumf %42, %43 : vector<16x16x4xf32>
    %45 = vector.extract_strided_slice %41 {offsets = [0, 2, 0], sizes = [16, 16, 4], strides = [1, 1, 1]} : vector<16x20x4xf32> to vector<16x16x4xf32>
    %46 = arith.maximumf %44, %45 : vector<16x16x4xf32>
    %47 = vector.extract_strided_slice %41 {offsets = [0, 3, 0], sizes = [16, 16, 4], strides = [1, 1, 1]} : vector<16x20x4xf32> to vector<16x16x4xf32>
    %48 = arith.maximumf %46, %47 : vector<16x16x4xf32>
    %49 = vector.extract_strided_slice %41 {offsets = [0, 4, 0], sizes = [16, 16, 4], strides = [1, 1, 1]} : vector<16x20x4xf32> to vector<16x16x4xf32>
    %50 = arith.maximumf %48, %49 : vector<16x16x4xf32>
    %c0_53 = arith.constant 0 : index
    %c0_54 = arith.constant 0 : index
    %c0_55 = arith.constant 0 : index
    %c0_56 = arith.constant 0 : index
    %51 = vector.load %arg4[%c0_53, %c0_54, %c0_55, %c0_56] : memref<1x16x16x4xf32, #tpu.memory_space<vmem>>, vector<1x16x16x4xf32>
    %52 = vector.shape_cast %51 : vector<1x16x16x4xf32> to vector<16x16x4xf32>
    %53 = vector.shape_cast %50 : vector<16x16x4xf32> to vector<1x16x16x4xf32>
    tpu.vector_store %arg4[%c0_53, %c0_54, %c0_55, %c0_56], %53 {strides = array<i32>} : memref<1x16x16x4xf32, #tpu.memory_space<vmem>>, vector<1x16x16x4xf32>,
    %c2_57 = arith.constant 2 : index
    %c2_58 = arith.constant 2 : index
    %c0_59 = arith.constant 0 : index
    %54 = vector.load %arg6[%c2_57, %c2_58, %c0_59] : memref<20x20x4xf32, #tpu.memory_space<vmem>>, vector<16x16x4xf32>
    tpu.vector_store %arg6[%c2_57, %c2_58, %c0_59], %50 {strides = array<i32>} : memref<20x20x4xf32, #tpu.memory_space<vmem>>, vector<16x16x4xf32>,
    %c0_60 = arith.constant 0 : index
    %c0_61 = arith.constant 0 : index
    %c0_62 = arith.constant 0 : index
    %55 = vector.load %arg6[%c0_60, %c0_61, %c0_62] : memref<20x20x4xf32, #tpu.memory_space<vmem>>, vector<16x20x4xf32>
    %c1_63 = arith.constant 1 : index
    %c0_64 = arith.constant 0 : index
    %c0_65 = arith.constant 0 : index
    %56 = vector.load %arg6[%c1_63, %c0_64, %c0_65] : memref<20x20x4xf32, #tpu.memory_space<vmem>>, vector<16x20x4xf32>
    %57 = arith.maximumf %55, %56 : vector<16x20x4xf32>
    %c2_66 = arith.constant 2 : index
    %c0_67 = arith.constant 0 : index
    %c0_68 = arith.constant 0 : index
    %58 = vector.load %arg6[%c2_66, %c0_67, %c0_68] : memref<20x20x4xf32, #tpu.memory_space<vmem>>, vector<16x20x4xf32>
    %59 = arith.maximumf %57, %58 : vector<16x20x4xf32>
    %c3_69 = arith.constant 3 : index
    %c0_70 = arith.constant 0 : index
    %c0_71 = arith.constant 0 : index
    %60 = vector.load %arg6[%c3_69, %c0_70, %c0_71] : memref<20x20x4xf32, #tpu.memory_space<vmem>>, vector<16x20x4xf32>
    %61 = arith.maximumf %59, %60 : vector<16x20x4xf32>
    %c4_72 = arith.constant 4 : index
    %c0_73 = arith.constant 0 : index
    %c0_74 = arith.constant 0 : index
    %62 = vector.load %arg6[%c4_72, %c0_73, %c0_74] : memref<20x20x4xf32, #tpu.memory_space<vmem>>, vector<16x20x4xf32>
    %63 = arith.maximumf %61, %62 : vector<16x20x4xf32>
    %64 = vector.extract_strided_slice %63 {offsets = [0, 0, 0], sizes = [16, 16, 4], strides = [1, 1, 1]} : vector<16x20x4xf32> to vector<16x16x4xf32>
    %65 = vector.extract_strided_slice %63 {offsets = [0, 1, 0], sizes = [16, 16, 4], strides = [1, 1, 1]} : vector<16x20x4xf32> to vector<16x16x4xf32>
    %66 = arith.maximumf %64, %65 : vector<16x16x4xf32>
    %67 = vector.extract_strided_slice %63 {offsets = [0, 2, 0], sizes = [16, 16, 4], strides = [1, 1, 1]} : vector<16x20x4xf32> to vector<16x16x4xf32>
    %68 = arith.maximumf %66, %67 : vector<16x16x4xf32>
    %69 = vector.extract_strided_slice %63 {offsets = [0, 3, 0], sizes = [16, 16, 4], strides = [1, 1, 1]} : vector<16x20x4xf32> to vector<16x16x4xf32>
    %70 = arith.maximumf %68, %69 : vector<16x16x4xf32>
    %71 = vector.extract_strided_slice %63 {offsets = [0, 4, 0], sizes = [16, 16, 4], strides = [1, 1, 1]} : vector<16x20x4xf32> to vector<16x16x4xf32>
    %72 = arith.maximumf %70, %71 : vector<16x16x4xf32>
    %c0_75 = arith.constant 0 : index
    %c0_76 = arith.constant 0 : index
    %c0_77 = arith.constant 0 : index
    %c0_78 = arith.constant 0 : index
    %73 = vector.load %arg5[%c0_75, %c0_76, %c0_77, %c0_78] : memref<1x16x16x4xf32, #tpu.memory_space<vmem>>, vector<1x16x16x4xf32>
    %74 = vector.shape_cast %73 : vector<1x16x16x4xf32> to vector<16x16x4xf32>
    %75 = vector.shape_cast %72 : vector<16x16x4xf32> to vector<1x16x16x4xf32>
    tpu.vector_store %arg5[%c0_75, %c0_76, %c0_77, %c0_78], %75 {strides = array<i32>} : memref<1x16x16x4xf32, #tpu.memory_space<vmem>>, vector<1x16x16x4xf32>,
    return
  }
  func.func @transform_0(%arg0: i32, %arg1: i32) -> (i32, i32, i32, i32) {
    %c0_i32 = arith.constant 0 : i32
    %c0_i32_0 = arith.constant 0 : i32
    %c0_i32_1 = arith.constant 0 : i32
    return %arg0, %c0_i32, %c0_i32_0, %arg1 : i32, i32, i32, i32
  }
  func.func @transform_1(%arg0: i32, %arg1: i32) -> (i32, i32, i32, i32) {
    %c0_i32 = arith.constant 0 : i32
    %c0_i32_0 = arith.constant 0 : i32
    %c0_i32_1 = arith.constant 0 : i32
    return %arg0, %c0_i32, %c0_i32_0, %arg1 : i32, i32, i32, i32
  }
  func.func @transform_2(%arg0: i32, %arg1: i32) -> (i32, i32, i32, i32) {
    %c0_i32 = arith.constant 0 : i32
    %c0_i32_0 = arith.constant 0 : i32
    %c0_i32_1 = arith.constant 0 : i32
    return %arg0, %c0_i32, %c0_i32_0, %arg1 : i32, i32, i32, i32
  }
  func.func @transform_3(%arg0: i32, %arg1: i32) -> (i32, i32, i32, i32) {
    %c0_i32 = arith.constant 0 : i32
    %c0_i32_0 = arith.constant 0 : i32
    %c0_i32_1 = arith.constant 0 : i32
    return %arg0, %c0_i32, %c0_i32_0, %arg1 : i32, i32, i32, i32
  }
}

</mosaic_0001>

<llo_original>
// kernel: tpu_custom_call.1
$region0: #{tpu_custom_call.1}
  #allocation0 [shape = 'u32[]', space=smem, size = 0x4, offset = 0x4, fixed_abs, tag = 'smem constant byte address 0x4 - core index']
  #allocation1 [shape = 'u32[72,128]{1,0:T(1,128)}', space=vmem, size = 0x9000, scoped, tag = 'internal scratch']
  #allocation2 [shape = 'f32[20,20,4]{2,1,0:T(8,128)}', space=vmem, size = 0x3c000, scoped, tag = 'scratch operand']
  %s0 = inlined_call_operand.vmem [shape: f32[2,16,16,4], index: 0, kind: input, shape index: {}]
  %s1 = inlined_call_operand.vmem [shape: f32[2,16,16,4], index: 1, kind: output, shape index: {0}]
  %s2 = inlined_call_operand.vmem [shape: f32[2,16,16,4], index: 2, kind: output, shape index: {1}]
  %s3 = inlined_call_operand.vmem [shape: f32[2,16,16,4], index: 3, kind: output, shape index: {2}]
  %4 = xla_tuple %s1, %s2, %s3
  %s5 = sld [smem:[#allocation0]]
  $region53: #{tpu_custom_call.1} parent=0
    _
  %s7 = ssub.s32 1, %s5
  %s8 = scalar_select 0, %s7, %s5
  loop: start=0, step=1, limit=4
  $region2: #{tpu_custom_call.1} parent=0 // loop_pre_header
    _
  $region3: #{tpu_custom_call.1} parent=0 // loop_header
    %s10 = sphi 0, %s14
    %p11 = scmp.ge.s32.totalorder %s10, 4
    %s17 = sphi 0, %s29
    %s18 = sphi 0, %s25
    %s19 = sphi 0, %s17
    %s20 = sphi 0, %s18
    %s21 = sphi 0, %s19
    %s22 = sphi 0, %s20
    %s34 = sphi 0, %s36
    %s37 = sphi 0, %s34
    %s38 = sphi 0, %s37
    %s54 = sphi 0, %s38
    %s62 = sphi 0, %s64
    %s65 = sphi 0, %s62
    %s66 = sphi 0, %s65
    %s82 = sphi 0, %s66
    %s90 = sphi 0, %s92
    %s93 = sphi 0, %s90
    %s94 = sphi 0, %s93
    %s110 = sphi 0, %s94
    %s118 = sphi 0, %s120
    %s121 = sphi 0, %s118
    %s122 = sphi 0, %s121
    %s138 = sphi 0, %s122
  $region4: #{tpu_custom_call.1} parent=0 // loop_header_branch
    %13 = sbr.rel (%p11) target = $region8
  $region5: #{tpu_custom_call.1} parent=0 // loop_body
    %s15 = ssub.s32 %s10, 1
    %s16 = ssub.s32 %s10, 2
    %s23 = sadd.s32 1, %s18
    %p24 = scmp.ge.s32.totalorder %s23, 1
    %s25 = scalar_select %p24, 0, %s23
    %s26 = sadd.s32 1, %s17
    %s27 = scalar_select %p24, %s26, %s17
    %p28 = scmp.ge.s32.totalorder %s27, 2
    %s29 = scalar_select %p28, 0, %s27
    %s30 = ssub.s32 %s17, %s29
    %s31 = ssub.s32 %s18, %s25
    %s32 = sor.u32 %s30, %s31
    %p33 = scmp.eq.s32.totalorder %s32, 0
    %s35 = sadd.s32 %s34, 1
    %s36 = scalar_select %p33, %s34, %s35
    %p39 = pneg %p33
    %p40 = scmp.eq.s32.totalorder %s10, 1
    %p41 = por %p39, %p40
    %p42 = scmp.ne.s32.totalorder %s34, %s37
    %p43 = scmp.eq.s32.totalorder %s10, 0
    %p44 = por %p42, %p43
    %p45 = scmp.ne.s32.totalorder %s34, %s37
    %p46 = scmp.eq.s32.totalorder %s15, 1
    %p47 = por %p45, %p46
    %p48 = scmp.ne.s32.totalorder %s37, %s38
    %p49 = scmp.eq.s32.totalorder %s15, 0
    %p50 = por %p48, %p49
    %p51 = scmp.ne.s32.totalorder %s37, %s38
    %p52 = scmp.eq.s32.totalorder %s16, 1
    %p53 = por %p51, %p52
    %p55 = scmp.ne.s32.totalorder %s38, %s54
    %p56 = scmp.eq.s32.totalorder %s16, 0
    %p57 = por %p55, %p56
    %s58 = ssub.s32 %s17, %s29
    %s59 = ssub.s32 %s18, %s25
    %s60 = sor.u32 %s58, %s59
    %p61 = scmp.eq.s32.totalorder %s60, 0
    %s63 = sadd.s32 %s62, 1
    %s64 = scalar_select %p61, %s62, %s63
    %p67 = pneg %p61
    %p68 = scmp.eq.s32.totalorder %s10, 1
    %p69 = por %p67, %p68
    %p70 = scmp.ne.s32.totalorder %s62, %s65
    %p71 = scmp.eq.s32.totalorder %s10, 0
    %p72 = por %p70, %p71
    %p73 = scmp.ne.s32.totalorder %s62, %s65
    %p74 = scmp.eq.s32.totalorder %s15, 1
    %p75 = por %p73, %p74
    %p76 = scmp.ne.s32.totalorder %s65, %s66
    %p77 = scmp.eq.s32.totalorder %s15, 0
    %p78 = por %p76, %p77
    %p79 = scmp.ne.s32.totalorder %s65, %s66
    %p80 = scmp.eq.s32.totalorder %s16, 1
    %p81 = por %p79, %p80
    %p83 = scmp.ne.s32.totalorder %s66, %s82
    %p84 = scmp.eq.s32.totalorder %s16, 0
    %p85 = por %p83, %p84
    %s86 = ssub.s32 %s17, %s29
    %s87 = ssub.s32 %s18, %s25
    %s88 = sor.u32 %s86, %s87
    %p89 = scmp.eq.s32.totalorder %s88, 0
    %s91 = sadd.s32 %s90, 1
    %s92 = scalar_select %p89, %s90, %s91
    %p95 = pneg %p89
    %p96 = scmp.eq.s32.totalorder %s10, 1
    %p97 = por %p95, %p96
    %p98 = scmp.ne.s32.totalorder %s90, %s93
    %p99 = scmp.eq.s32.totalorder %s10, 0
    %p100 = por %p98, %p99
    %p101 = scmp.ne.s32.totalorder %s90, %s93
    %p102 = scmp.eq.s32.totalorder %s15, 1
    %p103 = por %p101, %p102
    %p104 = scmp.ne.s32.totalorder %s93, %s94
    %p105 = scmp.eq.s32.totalorder %s15, 0
    %p106 = por %p104, %p105
    %p107 = scmp.ne.s32.totalorder %s93, %s94
    %p108 = scmp.eq.s32.totalorder %s16, 1
    %p109 = por %p107, %p108
    %p111 = scmp.ne.s32.totalorder %s94, %s110
    %p112 = scmp.eq.s32.totalorder %s16, 0
    %p113 = por %p111, %p112
    %s114 = ssub.s32 %s17, %s29
    %s115 = ssub.s32 %s18, %s25
    %s116 = sor.u32 %s114, %s115
    %p117 = scmp.eq.s32.totalorder %s116, 0
    %s119 = sadd.s32 %s118, 1
    %s120 = scalar_select %p117, %s118, %s119
    %p123 = pneg %p117
    %p124 = scmp.eq.s32.totalorder %s10, 1
    %p125 = por %p123, %p124
    %p126 = scmp.ne.s32.totalorder %s118, %s121
    %p127 = scmp.eq.s32.totalorder %s10, 0
    %p128 = por %p126, %p127
    %p129 = scmp.ne.s32.totalorder %s118, %s121
    %p130 = scmp.eq.s32.totalorder %s15, 1
    %p131 = por %p129, %p130
    %p132 = scmp.ne.s32.totalorder %s121, %s122
    %p133 = scmp.eq.s32.totalorder %s15, 0
    %p134 = por %p132, %p133
    %p135 = scmp.ne.s32.totalorder %s121, %s122
    %p136 = scmp.eq.s32.totalorder %s16, 1
    %p137 = por %p135, %p136
    %p139 = scmp.ne.s32.totalorder %s122, %s138
    %p140 = scmp.eq.s32.totalorder %s16, 0
    %p141 = por %p139, %p140
    %p142 = scmp.le.s32.totalorder 1, %s10
    %p143 = scmp.lt.s32.totalorder %s10, 3
    %p144 = pnand %p142, %p143
    %p145 = pneg %p144
    // Predicated region
    $region9: #{tpu_custom_call.1} parent=5 // pred_check
      _
    $region10: #{tpu_custom_call.1} parent=5 // pred_check_branch
      %147 = sbr.rel (%p144) target = $region12
    $region11: #{tpu_custom_call.1} parent=5 // pred_region
      %s148 = ssub.s32 %s10, 1
    $region12: #{tpu_custom_call.1} parent=5 // pred_fallthru
      _
    %p149 = scmp.lt.s32.totalorder %s10, 2
    // Predicated region
    $region13: #{tpu_custom_call.1} parent=5 // pred_check
      %p150 = pneg %p149
    $region14: #{tpu_custom_call.1} parent=5 // pred_check_branch
      %152 = sbr.rel (%p150) target = $region16
    $region15: #{tpu_custom_call.1} parent=5 // pred_region
      // Predicated region
      $region17: #{tpu_custom_call.1} parent=15 // pred_check
        %p153 = pneg %p44
      $region18: #{tpu_custom_call.1} parent=15 // pred_check_branch
        %155 = sbr.rel (%p153) target = $region20
      $region19: #{tpu_custom_call.1} parent=15 // pred_region
        %p156 = scmp.lt.s32.totalorder %s17, 1
        %s157 = scalar_select %p156, %s17, 1
        %p158 = scmp.lt.s32.totalorder %s18, 0
        %s159 = scalar_select %p158, %s18, 0
        %s160 = smul.addr %s157, 32
        %s161 = sadd.s32 %s159, %s160
        %s162 = smul.addr %s161, 8
        %s163 = scalar_lea.vmem %s0, %s162
      $region20: #{tpu_custom_call.1} parent=15 // pred_fallthru
        _
    $region16: #{tpu_custom_call.1} parent=5 // pred_fallthru
      _
    %p164 = scmp.le.s32.totalorder 1, %s10
    %p165 = scmp.lt.s32.totalorder %s10, 3
    %p166 = pnand %p164, %p165
    %p167 = pneg %p166
    // Predicated region
    $region21: #{tpu_custom_call.1} parent=5 // pred_check
      _
    $region22: #{tpu_custom_call.1} parent=5 // pred_check_branch
      %169 = sbr.rel (%p166) target = $region24
    $region23: #{tpu_custom_call.1} parent=5 // pred_region
      %s170 = ssub.s32 %s10, 1
      %p171 = scmp.lt.s32.totalorder %s19, 1
      %s172 = scalar_select %p171, %s19, 1
      %p173 = scmp.lt.s32.totalorder %s20, 0
      %s174 = scalar_select %p173, %s20, 0
      %s175 = smul.addr %s172, 32
      %s176 = sadd.s32 %s174, %s175
      %s177 = smul.addr %s176, 8
      %s178 = scalar_lea.vmem %s0, %s177
      %p179 = pneg %p50
      %p180 = pneg %p47
      %p181 = pneg %p78
      %p182 = pneg %p75
      %p183 = scmp.lt.s32.totalorder %s19, 1
      %s184 = scalar_select %p183, %s19, 1
      %p185 = scmp.lt.s32.totalorder %s20, 0
      %s186 = scalar_select %p185, %s20, 0
      %s187 = smul.addr %s184, 32
      %s188 = sadd.s32 %s186, %s187
      %s189 = smul.addr %s188, 8
      %s190 = scalar_lea.vmem %s1, %s189
      %p191 = pneg %p106
      %p192 = pneg %p103
      %p193 = scmp.lt.s32.totalorder %s19, 1
      %s194 = scalar_select %p193, %s19, 1
      %p195 = scmp.lt.s32.totalorder %s20, 0
      %s196 = scalar_select %p195, %s20, 0
      %s197 = smul.addr %s194, 32
      %s198 = sadd.s32 %s196, %s197
      %s199 = smul.addr %s198, 8
      %s200 = scalar_lea.vmem %s2, %s199
      %p201 = pneg %p134
      %p202 = pneg %p131
      %p203 = scmp.lt.s32.totalorder %s19, 1
      %s204 = scalar_select %p203, %s19, 1
      %p205 = scmp.lt.s32.totalorder %s20, 0
      %s206 = scalar_select %p205, %s20, 0
      %s207 = smul.addr %s204, 32
      %s208 = sadd.s32 %s206, %s207
      %s209 = smul.addr %s208, 8
      %s210 = scalar_lea.vmem %s3, %s209
      %p211 = scmp.lt.s32.totalorder %s19, 1
      %s212 = scalar_select %p211, %s19, 1
      %p213 = scmp.lt.s32.totalorder %s20, 0
      %s214 = scalar_select %p213, %s20, 0
      %s215 = smul.addr %s212, 32
      %s216 = sadd.s32 %s214, %s215
      %s217 = smul.addr %s216, 8
      %s218 = scalar_lea.vmem %s0, %s217
      %p219 = scmp.lt.s32.totalorder %s19, 1
      %s220 = scalar_select %p219, %s19, 1
      %p221 = scmp.lt.s32.totalorder %s20, 0
      %s222 = scalar_select %p221, %s20, 0
      %s223 = smul.addr %s220, 32
      %s224 = sadd.s32 %s222, %s223
      %s225 = smul.addr %s224, 8
      %s226 = scalar_lea.vmem %s1, %s225
      %p227 = scmp.lt.s32.totalorder %s19, 1
      %s228 = scalar_select %p227, %s19, 1
      %p229 = scmp.lt.s32.totalorder %s20, 0
      %s230 = scalar_select %p229, %s20, 0
      %s231 = smul.addr %s228, 32
      %s232 = sadd.s32 %s230, %s231
      %s233 = smul.addr %s232, 8
      %s234 = scalar_lea.vmem %s2, %s233
      %p235 = scmp.lt.s32.totalorder %s19, 1
      %s236 = scalar_select %p235, %s19, 1
      %p237 = scmp.lt.s32.totalorder %s20, 0
      %s238 = scalar_select %p237, %s20, 0
      %s239 = smul.addr %s236, 32
      %s240 = sadd.s32 %s238, %s239
      %s241 = smul.addr %s240, 8
      %s242 = scalar_lea.vmem %s3, %s241
      %vm243 = vcmask 31744
      %244 = vst.msk [vmem:[#allocation2] sm:$0xff] %vm243, -inf
      %245 = vst.msk [vmem:[#allocation2 + $0x8] sm:$0xff] %vm243, -inf
      %vm246 = vcmask 27648
      %247 = vst.msk [vmem:[#allocation2 + $0x10] sm:$0xf] %vm246, -inf
      %248 = vst.msk [vmem:[#allocation2 + $0x18] sm:$0xff] %vm243, -inf
      %249 = vst.msk [vmem:[#allocation2 + $0x20] sm:$0xff] %vm243, -inf
      %250 = vst.msk [vmem:[#allocation2 + $0x28] sm:$0xf] %vm246, -inf
      %s251 = scalar_lea.vmem [#allocation2], 432
      %252 = vst.msk [vmem:[%s251] sm:$0xff] %vm243, -inf
      %253 = vst.msk [vmem:[%s251 + $0x8] sm:$0xff] %vm243, -inf
      %254 = vst.msk [vmem:[%s251 + $0x10] sm:$0xf] %vm246, -inf
      %255 = vst.msk [vmem:[%s251 + $0x18] sm:$0xff] %vm243, -inf
      %256 = vst.msk [vmem:[%s251 + $0x20] sm:$0xff] %vm243, -inf
      %257 = vst.msk [vmem:[%s251 + $0x28] sm:$0xf] %vm246, -inf
      %s258 = scalar_lea.vmem [#allocation2], 48
      %vm259 = vcmask 25600
      %260 = vst.msk [vmem:[%s258] sm:$0x3] %vm259, -inf
      %261 = vst.msk [vmem:[%s258 + $0x18] sm:$0x3] %vm259, -inf
      %262 = vst.msk [vmem:[%s258 + $0x30] sm:$0x3] %vm259, -inf
      %263 = vst.msk [vmem:[%s258 + $0x48] sm:$0x3] %vm259, -inf
      %264 = vst.msk [vmem:[%s258 + $0x60] sm:$0x3] %vm259, -inf
      %265 = vst.msk [vmem:[%s258 + $0x78] sm:$0x3] %vm259, -inf
      %266 = vst.msk [vmem:[%s258 + $0x90] sm:$0x3] %vm259, -inf
      %267 = vst.msk [vmem:[%s258 + $0xa8] sm:$0x3] %vm259, -inf
      %268 = vst.msk [vmem:[%s258 + $0xc0] sm:$0x3] %vm259, -inf
      %269 = vst.msk [vmem:[%s258 + $0xd8] sm:$0x3] %vm259, -inf
      %270 = vst.msk [vmem:[%s258 + $0xf0] sm:$0x3] %vm259, -inf
      %271 = vst.msk [vmem:[%s258 + $0x108] sm:$0x3] %vm259, -inf
      %272 = vst.msk [vmem:[%s258 + $0x120] sm:$0x3] %vm259, -inf
      %273 = vst.msk [vmem:[%s258 + $0x138] sm:$0x3] %vm259, -inf
      %274 = vst.msk [vmem:[%s258 + $0x150] sm:$0x3] %vm259, -inf
      %275 = vst.msk [vmem:[%s258 + $0x168] sm:$0x3] %vm259, -inf
      %276 = vst.msk [vmem:[%s258 + $0x12] sm:$0x3] %vm259, -inf
      %277 = vst.msk [vmem:[%s258 + $0x2a] sm:$0x3] %vm259, -inf
      %278 = vst.msk [vmem:[%s258 + $0x42] sm:$0x3] %vm259, -inf
      %279 = vst.msk [vmem:[%s258 + $0x5a] sm:$0x3] %vm259, -inf
      %280 = vst.msk [vmem:[%s258 + $0x72] sm:$0x3] %vm259, -inf
      %281 = vst.msk [vmem:[%s258 + $0x8a] sm:$0x3] %vm259, -inf
      %282 = vst.msk [vmem:[%s258 + $0xa2] sm:$0x3] %vm259, -inf
      %283 = vst.msk [vmem:[%s258 + $0xba] sm:$0x3] %vm259, -inf
      %284 = vst.msk [vmem:[%s258 + $0xd2] sm:$0x3] %vm259, -inf
      %285 = vst.msk [vmem:[%s258 + $0xea] sm:$0x3] %vm259, -inf
      %286 = vst.msk [vmem:[%s258 + $0x102] sm:$0x3] %vm259, -inf
      %287 = vst.msk [vmem:[%s258 + $0x11a] sm:$0x3] %vm259, -inf
      %288 = vst.msk [vmem:[%s258 + $0x132] sm:$0x3] %vm259, -inf
      %289 = vst.msk [vmem:[%s258 + $0x14a] sm:$0x3] %vm259, -inf
      %290 = vst.msk [vmem:[%s258 + $0x162] sm:$0x3] %vm259, -inf
      %291 = vst.msk [vmem:[%s258 + $0x17a] sm:$0x3] %vm259, -inf
      %v292 = vld [vmem:[%s218] sm:$0xff]
      %v293 = vld [vmem:[%s218 + $0x8] sm:$0xff]
      %v294 = vld [vmem:[%s218 + $0x10] sm:$0xff]
      %v295 = vld [vmem:[%s218 + $0x18] sm:$0xff]
      %v296 = vld [vmem:[%s218 + $0x20] sm:$0xff]
      %v297 = vld [vmem:[%s218 + $0x28] sm:$0xff]
      %v298 = vld [vmem:[%s218 + $0x30] sm:$0xff]
      %v299 = vld [vmem:[%s218 + $0x38] sm:$0xff]
      %v300 = vld [vmem:[%s218 + $0x40] sm:$0xff]
      %v301 = vld [vmem:[%s218 + $0x48] sm:$0xff]
      %v302 = vld [vmem:[%s218 + $0x50] sm:$0xff]
      %v303 = vld [vmem:[%s218 + $0x58] sm:$0xff]
      %v304 = vld [vmem:[%s218 + $0x60] sm:$0xff]
      %v305 = vld [vmem:[%s218 + $0x68] sm:$0xff]
      %v306 = vld [vmem:[%s218 + $0x70] sm:$0xff]
      %v307 = vld [vmem:[%s218 + $0x78] sm:$0xff]
      %v308 = vld [vmem:[%s218 + $0x80] sm:$0xff]
      %v309 = vld [vmem:[%s218 + $0x88] sm:$0xff]
      %v310 = vld [vmem:[%s218 + $0x90] sm:$0xff]
      %v311 = vld [vmem:[%s218 + $0x98] sm:$0xff]
      %v312 = vld [vmem:[%s218 + $0xa0] sm:$0xff]
      %v313 = vld [vmem:[%s218 + $0xa8] sm:$0xff]
      %v314 = vld [vmem:[%s218 + $0xb0] sm:$0xff]
      %v315 = vld [vmem:[%s218 + $0xb8] sm:$0xff]
      %v316 = vld [vmem:[%s218 + $0xc0] sm:$0xff]
      %v317 = vld [vmem:[%s218 + $0xc8] sm:$0xff]
      %v318 = vld [vmem:[%s218 + $0xd0] sm:$0xff]
      %v319 = vld [vmem:[%s218 + $0xd8] sm:$0xff]
      %v320 = vld [vmem:[%s218 + $0xe0] sm:$0xff]
      %v321 = vld [vmem:[%s218 + $0xe8] sm:$0xff]
      %v322 = vld [vmem:[%s218 + $0xf0] sm:$0xff]
      %v323 = vld [vmem:[%s218 + $0xf8] sm:$0xff]
      %324 = vst.msk [vmem:[%s258 + $0x2] sm:$0xff] %vm243, %v292
      %325 = vst.msk [vmem:[%s258 + $0xa] sm:$0xff] %vm243, %v293
      %326 = vst.msk [vmem:[%s258 + $0x1a] sm:$0xff] %vm243, %v294
      %327 = vst.msk [vmem:[%s258 + $0x22] sm:$0xff] %vm243, %v295
      %328 = vst.msk [vmem:[%s258 + $0x32] sm:$0xff] %vm243, %v296
      %329 = vst.msk [vmem:[%s258 + $0x3a] sm:$0xff] %vm243, %v297
      %330 = vst.msk [vmem:[%s258 + $0x4a] sm:$0xff] %vm243, %v298
      %331 = vst.msk [vmem:[%s258 + $0x52] sm:$0xff] %vm243, %v299
      %332 = vst.msk [vmem:[%s258 + $0x62] sm:$0xff] %vm243, %v300
      %333 = vst.msk [vmem:[%s258 + $0x6a] sm:$0xff] %vm243, %v301
      %334 = vst.msk [vmem:[%s258 + $0x7a] sm:$0xff] %vm243, %v302
      %335 = vst.msk [vmem:[%s258 + $0x82] sm:$0xff] %vm243, %v303
      %336 = vst.msk [vmem:[%s258 + $0x92] sm:$0xff] %vm243, %v304
      %337 = vst.msk [vmem:[%s258 + $0x9a] sm:$0xff] %vm243, %v305
      %338 = vst.msk [vmem:[%s258 + $0xaa] sm:$0xff] %vm243, %v306
      %339 = vst.msk [vmem:[%s258 + $0xb2] sm:$0xff] %vm243, %v307
      %340 = vst.msk [vmem:[%s258 + $0xc2] sm:$0xff] %vm243, %v308
      %341 = vst.msk [vmem:[%s258 + $0xca] sm:$0xff] %vm243, %v309
      %342 = vst.msk [vmem:[%s258 + $0xda] sm:$0xff] %vm243, %v310
      %343 = vst.msk [vmem:[%s258 + $0xe2] sm:$0xff] %vm243, %v311
      %344 = vst.msk [vmem:[%s258 + $0xf2] sm:$0xff] %vm243, %v312
      %345 = vst.msk [vmem:[%s258 + $0xfa] sm:$0xff] %vm243, %v313
      %346 = vst.msk [vmem:[%s258 + $0x10a] sm:$0xff] %vm243, %v314
      %347 = vst.msk [vmem:[%s258 + $0x112] sm:$0xff] %vm243, %v315
      %348 = vst.msk [vmem:[%s258 + $0x122] sm:$0xff] %vm243, %v316
      %349 = vst.msk [vmem:[%s258 + $0x12a] sm:$0xff] %vm243, %v317
      %350 = vst.msk [vmem:[%s258 + $0x13a] sm:$0xff] %vm243, %v318
      %351 = vst.msk [vmem:[%s258 + $0x142] sm:$0xff] %vm243, %v319
      %352 = vst.msk [vmem:[%s258 + $0x152] sm:$0xff] %vm243, %v320
      %353 = vst.msk [vmem:[%s258 + $0x15a] sm:$0xff] %vm243, %v321
      %354 = vst.msk [vmem:[%s258 + $0x16a] sm:$0xff] %vm243, %v322
      %355 = vst.msk [vmem:[%s258 + $0x172] sm:$0xff] %vm243, %v323
      %v356 = vld [vmem:[#allocation2] sm:$0xff]
      %v357 = vld [vmem:[#allocation2 + $0x8] sm:$0xff]
      %v358 = vld [vmem:[#allocation2 + $0x10] sm:$0xf]
      %v359 = vld [vmem:[#allocation2 + $0x18] sm:$0xff]
      %v360 = vld [vmem:[#allocation2 + $0x20] sm:$0xff]
      %v361 = vld [vmem:[#allocation2 + $0x28] sm:$0xf]
      %v362 = vld [vmem:[#allocation2 + $0x30] sm:$0xff]
      %v363 = vld [vmem:[#allocation2 + $0x38] sm:$0xff]
      %v364 = vld [vmem:[#allocation2 + $0x40] sm:$0xf]
      %v365 = vld [vmem:[#allocation2 + $0x48] sm:$0xff]
      %v366 = vld [vmem:[#allocation2 + $0x50] sm:$0xff]
      %v367 = vld [vmem:[#allocation2 + $0x58] sm:$0xf]
      %v368 = vld [vmem:[#allocation2 + $0x60] sm:$0xff]
      %v369 = vld [vmem:[#allocation2 + $0x68] sm:$0xff]
      %v370 = vld [vmem:[#allocation2 + $0x70] sm:$0xf]
      %v371 = vld [vmem:[#allocation2 + $0x78] sm:$0xff]
      %v372 = vld [vmem:[#allocation2 + $0x80] sm:$0xff]
      %v373 = vld [vmem:[#allocation2 + $0x88] sm:$0xf]
      %v374 = vld [vmem:[#allocation2 + $0x90] sm:$0xff]
      %v375 = vld [vmem:[#allocation2 + $0x98] sm:$0xff]
      %v376 = vld [vmem:[#allocation2 + $0xa0] sm:$0xf]
      %v377 = vld [vmem:[#allocation2 + $0xa8] sm:$0xff]
      %v378 = vld [vmem:[#allocation2 + $0xb0] sm:$0xff]
      %v379 = vld [vmem:[#allocation2 + $0xb8] sm:$0xf]
      %v380 = vld [vmem:[#allocation2 + $0xc0] sm:$0xff]
      %v381 = vld [vmem:[#allocation2 + $0xc8] sm:$0xff]
      %v382 = vld [vmem:[#allocation2 + $0xd0] sm:$0xf]
      %v383 = vld [vmem:[#allocation2 + $0xd8] sm:$0xff]
      %v384 = vld [vmem:[#allocation2 + $0xe0] sm:$0xff]
      %v385 = vld [vmem:[#allocation2 + $0xe8] sm:$0xf]
      %v386 = vld [vmem:[#allocation2 + $0xf0] sm:$0xff]
      %v387 = vld [vmem:[#allocation2 + $0xf8] sm:$0xff]
      %v388 = vld [vmem:[#allocation2 + $0x100] sm:$0xf]
      %v389 = vld [vmem:[#allocation2 + $0x108] sm:$0xff]
      %v390 = vld [vmem:[#allocation2 + $0x110] sm:$0xff]
      %v391 = vld [vmem:[#allocation2 + $0x118] sm:$0xf]
      %v392 = vld [vmem:[#allocation2 + $0x120] sm:$0xff]
      %v393 = vld [vmem:[#allocation2 + $0x128] sm:$0xff]
      %v394 = vld [vmem:[#allocation2 + $0x130] sm:$0xf]
      %v395 = vld [vmem:[#allocation2 + $0x138] sm:$0xff]
      %v396 = vld [vmem:[#allocation2 + $0x140] sm:$0xff]
      %v397 = vld [vmem:[#allocation2 + $0x148] sm:$0xf]
      %v398 = vld [vmem:[#allocation2 + $0x150] sm:$0xff]
      %v399 = vld [vmem:[#allocation2 + $0x158] sm:$0xff]
      %v400 = vld [vmem:[#allocation2 + $0x160] sm:$0xf]
      %v401 = vld [vmem:[#allocation2 + $0x168] sm:$0xff]
      %v402 = vld [vmem:[#allocation2 + $0x170] sm:$0xff]
      %v403 = vld [vmem:[#allocation2 + $0x178] sm:$0xf]
      %s404 = scalar_lea.vmem [#allocation2], 24
      %v405 = vld [vmem:[%s404] sm:$0xff]
      %v406 = vld [vmem:[%s404 + $0x8] sm:$0xff]
      %v407 = vld [vmem:[%s404 + $0x10] sm:$0xf]
      %v408 = vld [vmem:[%s404 + $0x18] sm:$0xff]
      %v409 = vld [vmem:[%s404 + $0x20] sm:$0xff]
      %v410 = vld [vmem:[%s404 + $0x28] sm:$0xf]
      %v411 = vld [vmem:[%s404 + $0x30] sm:$0xff]
      %v412 = vld [vmem:[%s404 + $0x38] sm:$0xff]
      %v413 = vld [vmem:[%s404 + $0x40] sm:$0xf]
      %v414 = vld [vmem:[%s404 + $0x48] sm:$0xff]
      %v415 = vld [vmem:[%s404 + $0x50] sm:$0xff]
      %v416 = vld [vmem:[%s404 + $0x58] sm:$0xf]
      %v417 = vld [vmem:[%s404 + $0x60] sm:$0xff]
      %v418 = vld [vmem:[%s404 + $0x68] sm:$0xff]
      %v419 = vld [vmem:[%s404 + $0x70] sm:$0xf]
      %v420 = vld [vmem:[%s404 + $0x78] sm:$0xff]
      %v421 = vld [vmem:[%s404 + $0x80] sm:$0xff]
      %v422 = vld [vmem:[%s404 + $0x88] sm:$0xf]
      %v423 = vld [vmem:[%s404 + $0x90] sm:$0xff]
      %v424 = vld [vmem:[%s404 + $0x98] sm:$0xff]
      %v425 = vld [vmem:[%s404 + $0xa0] sm:$0xf]
      %v426 = vld [vmem:[%s404 + $0xa8] sm:$0xff]
      %v427 = vld [vmem:[%s404 + $0xb0] sm:$0xff]
      %v428 = vld [vmem:[%s404 + $0xb8] sm:$0xf]
      %v429 = vld [vmem:[%s404 + $0xc0] sm:$0xff]
      %v430 = vld [vmem:[%s404 + $0xc8] sm:$0xff]
      %v431 = vld [vmem:[%s404 + $0xd0] sm:$0xf]
      %v432 = vld [vmem:[%s404 + $0xd8] sm:$0xff]
      %v433 = vld [vmem:[%s404 + $0xe0] sm:$0xff]
      %v434 = vld [vmem:[%s404 + $0xe8] sm:$0xf]
      %v435 = vld [vmem:[%s404 + $0xf0] sm:$0xff]
      %v436 = vld [vmem:[%s404 + $0xf8] sm:$0xff]
      %v437 = vld [vmem:[%s404 + $0x100] sm:$0xf]
      %v438 = vld [vmem:[%s404 + $0x108] sm:$0xff]
      %v439 = vld [vmem:[%s404 + $0x110] sm:$0xff]
      %v440 = vld [vmem:[%s404 + $0x118] sm:$0xf]
      %v441 = vld [vmem:[%s404 + $0x120] sm:$0xff]
      %v442 = vld [vmem:[%s404 + $0x128] sm:$0xff]
      %v443 = vld [vmem:[%s404 + $0x130] sm:$0xf]
      %v444 = vld [vmem:[%s404 + $0x138] sm:$0xff]
      %v445 = vld [vmem:[%s404 + $0x140] sm:$0xff]
      %v446 = vld [vmem:[%s404 + $0x148] sm:$0xf]
      %v447 = vld [vmem:[%s404 + $0x150] sm:$0xff]
      %v448 = vld [vmem:[%s404 + $0x158] sm:$0xff]
      %v449 = vld [vmem:[%s404 + $0x160] sm:$0xf]
      %v450 = vld [vmem:[%s404 + $0x168] sm:$0xff]
      %v451 = vld [vmem:[%s404 + $0x170] sm:$0xff]
      %v452 = vld [vmem:[%s404 + $0x178] sm:$0xf]
      %v453 = vmax.f32 %v356, %v405
      %v454 = vmax.f32 %v357, %v406
      %v455 = vmax.f32 %v358, %v407
      %v456 = vmax.f32 %v359, %v408
      %v457 = vmax.f32 %v360, %v409
      %v458 = vmax.f32 %v361, %v410
      %v459 = vmax.f32 %v362, %v411
      %v460 = vmax.f32 %v363, %v412
      %v461 = vmax.f32 %v364, %v413
      %v462 = vmax.f32 %v365, %v414
      %v463 = vmax.f32 %v366, %v415
      %v464 = vmax.f32 %v367, %v416
      %v465 = vmax.f32 %v368, %v417
      %v466 = vmax.f32 %v369, %v418
      %v467 = vmax.f32 %v370, %v419
      %v468 = vmax.f32 %v371, %v420
      %v469 = vmax.f32 %v372, %v421
      %v470 = vmax.f32 %v373, %v422
      %v471 = vmax.f32 %v374, %v423
      %v472 = vmax.f32 %v375, %v424
      %v473 = vmax.f32 %v376, %v425
      %v474 = vmax.f32 %v377, %v426
      %v475 = vmax.f32 %v378, %v427
      %v476 = vmax.f32 %v379, %v428
      %v477 = vmax.f32 %v380, %v429
      %v478 = vmax.f32 %v381, %v430
      %v479 = vmax.f32 %v382, %v431
      %v480 = vmax.f32 %v383, %v432
      %v481 = vmax.f32 %v384, %v433
      %v482 = vmax.f32 %v385, %v434
      %v483 = vmax.f32 %v386, %v435
      %v484 = vmax.f32 %v387, %v436
      %v485 = vmax.f32 %v388, %v437
      %v486 = vmax.f32 %v389, %v438
      %v487 = vmax.f32 %v390, %v439
      %v488 = vmax.f32 %v391, %v440
      %v489 = vmax.f32 %v392, %v441
      %v490 = vmax.f32 %v393, %v442
      %v491 = vmax.f32 %v394, %v443
      %v492 = vmax.f32 %v395, %v444
      %v493 = vmax.f32 %v396, %v445
      %v494 = vmax.f32 %v397, %v446
      %v495 = vmax.f32 %v398, %v447
      %v496 = vmax.f32 %v399, %v448
      %v497 = vmax.f32 %v400, %v449
      %v498 = vmax.f32 %v401, %v450
      %v499 = vmax.f32 %v402, %v451
      %v500 = vmax.f32 %v403, %v452
      %v501 = vld [vmem:[%s258] sm:$0xff]
      %v502 = vld [vmem:[%s258 + $0x8] sm:$0xff]
      %v503 = vld [vmem:[%s258 + $0x10] sm:$0xf]
      %v504 = vld [vmem:[%s258 + $0x18] sm:$0xff]
      %v505 = vld [vmem:[%s258 + $0x20] sm:$0xff]
      %v506 = vld [vmem:[%s258 + $0x28] sm:$0xf]
      %v507 = vld [vmem:[%s258 + $0x30] sm:$0xff]
      %v508 = vld [vmem:[%s258 + $0x38] sm:$0xff]
      %v509 = vld [vmem:[%s258 + $0x40] sm:$0xf]
      %v510 = vld [vmem:[%s258 + $0x48] sm:$0xff]
      %v511 = vld [vmem:[%s258 + $0x50] sm:$0xff]
      %v512 = vld [vmem:[%s258 + $0x58] sm:$0xf]
      %v513 = vld [vmem:[%s258 + $0x60] sm:$0xff]
      %v514 = vld [vmem:[%s258 + $0x68] sm:$0xff]
      %v515 = vld [vmem:[%s258 + $0x70] sm:$0xf]
      %v516 = vld [vmem:[%s258 + $0x78] sm:$0xff]
      %v517 = vld [vmem:[%s258 + $0x80] sm:$0xff]
      %v518 = vld [vmem:[%s258 + $0x88] sm:$0xf]
      %v519 = vld [vmem:[%s258 + $0x90] sm:$0xff]
      %v520 = vld [vmem:[%s258 + $0x98] sm:$0xff]
      %v521 = vld [vmem:[%s258 + $0xa0] sm:$0xf]
      %v522 = vld [vmem:[%s258 + $0xa8] sm:$0xff]
      %v523 = vld [vmem:[%s258 + $0xb0] sm:$0xff]
      %v524 = vld [vmem:[%s258 + $0xb8] sm:$0xf]
      %v525 = vld [vmem:[%s258 + $0xc0] sm:$0xff]
      %v526 = vld [vmem:[%s258 + $0xc8] sm:$0xff]
      %v527 = vld [vmem:[%s258 + $0xd0] sm:$0xf]
      %v528 = vld [vmem:[%s258 + $0xd8] sm:$0xff]
      %v529 = vld [vmem:[%s258 + $0xe0] sm:$0xff]
      %v530 = vld [vmem:[%s258 + $0xe8] sm:$0xf]
      %v531 = vld [vmem:[%s258 + $0xf0] sm:$0xff]
      %v532 = vld [vmem:[%s258 + $0xf8] sm:$0xff]
      %v533 = vld [vmem:[%s258 + $0x100] sm:$0xf]
      %v534 = vld [vmem:[%s258 + $0x108] sm:$0xff]
      %v535 = vld [vmem:[%s258 + $0x110] sm:$0xff]
      %v536 = vld [vmem:[%s258 + $0x118] sm:$0xf]
      %v537 = vld [vmem:[%s258 + $0x120] sm:$0xff]
      %v538 = vld [vmem:[%s258 + $0x128] sm:$0xff]
      %v539 = vld [vmem:[%s258 + $0x130] sm:$0xf]
      %v540 = vld [vmem:[%s258 + $0x138] sm:$0xff]
      %v541 = vld [vmem:[%s258 + $0x140] sm:$0xff]
      %v542 = vld [vmem:[%s258 + $0x148] sm:$0xf]
      %v543 = vld [vmem:[%s258 + $0x150] sm:$0xff]
      %v544 = vld [vmem:[%s258 + $0x158] sm:$0xff]
      %v545 = vld [vmem:[%s258 + $0x160] sm:$0xf]
      %v546 = vld [vmem:[%s258 + $0x168] sm:$0xff]
      %v547 = vld [vmem:[%s258 + $0x170] sm:$0xff]
      %v548 = vld [vmem:[%s258 + $0x178] sm:$0xf]
      %v549 = vmax.f32 %v453, %v501
      %v550 = vmax.f32 %v454, %v502
      %v551 = vmax.f32 %v455, %v503
      %v552 = vmax.f32 %v456, %v504
      %v553 = vmax.f32 %v457, %v505
      %v554 = vmax.f32 %v458, %v506
      %v555 = vmax.f32 %v459, %v507
      %v556 = vmax.f32 %v460, %v508
      %v557 = vmax.f32 %v461, %v509
      %v558 = vmax.f32 %v462, %v510
      %v559 = vmax.f32 %v463, %v511
      %v560 = vmax.f32 %v464, %v512
      %v561 = vmax.f32 %v465, %v513
      %v562 = vmax.f32 %v466, %v514
      %v563 = vmax.f32 %v467, %v515
      %v564 = vmax.f32 %v468, %v516
      %v565 = vmax.f32 %v469, %v517
      %v566 = vmax.f32 %v470, %v518
      %v567 = vmax.f32 %v471, %v519
      %v568 = vmax.f32 %v472, %v520
      %v569 = vmax.f32 %v473, %v521
      %v570 = vmax.f32 %v474, %v522
      %v571 = vmax.f32 %v475, %v523
      %v572 = vmax.f32 %v476, %v524
      %v573 = vmax.f32 %v477, %v525
      %v574 = vmax.f32 %v478, %v526
      %v575 = vmax.f32 %v479, %v527
      %v576 = vmax.f32 %v480, %v528
      %v577 = vmax.f32 %v481, %v529
      %v578 = vmax.f32 %v482, %v530
      %v579 = vmax.f32 %v483, %v531
      %v580 = vmax.f32 %v484, %v532
      %v581 = vmax.f32 %v485, %v533
      %v582 = vmax.f32 %v486, %v534
      %v583 = vmax.f32 %v487, %v535
      %v584 = vmax.f32 %v488, %v536
      %v585 = vmax.f32 %v489, %v537
      %v586 = vmax.f32 %v490, %v538
      %v587 = vmax.f32 %v491, %v539
      %v588 = vmax.f32 %v492, %v540
      %v589 = vmax.f32 %v493, %v541
      %v590 = vmax.f32 %v494, %v542
      %v591 = vmax.f32 %v495, %v543
      %v592 = vmax.f32 %v496, %v544
      %v593 = vmax.f32 %v497, %v545
      %v594 = vmax.f32 %v498, %v546
      %v595 = vmax.f32 %v499, %v547
      %v596 = vmax.f32 %v500, %v548
      %s597 = scalar_lea.vmem [#allocation2], 72
      %v598 = vld [vmem:[%s597] sm:$0xff]
      %v599 = vld [vmem:[%s597 + $0x8] sm:$0xff]
      %v600 = vld [vmem:[%s597 + $0x10] sm:$0xf]
      %v601 = vld [vmem:[%s597 + $0x18] sm:$0xff]
      %v602 = vld [vmem:[%s597 + $0x20] sm:$0xff]
      %v603 = vld [vmem:[%s597 + $0x28] sm:$0xf]
      %v604 = vld [vmem:[%s597 + $0x30] sm:$0xff]
      %v605 = vld [vmem:[%s597 + $0x38] sm:$0xff]
      %v606 = vld [vmem:[%s597 + $0x40] sm:$0xf]
      %v607 = vld [vmem:[%s597 + $0x48] sm:$0xff]
      %v608 = vld [vmem:[%s597 + $0x50] sm:$0xff]
      %v609 = vld [vmem:[%s597 + $0x58] sm:$0xf]
      %v610 = vld [vmem:[%s597 + $0x60] sm:$0xff]
      %v611 = vld [vmem:[%s597 + $0x68] sm:$0xff]
      %v612 = vld [vmem:[%s597 + $0x70] sm:$0xf]
      %v613 = vld [vmem:[%s597 + $0x78] sm:$0xff]
      %v614 = vld [vmem:[%s597 + $0x80] sm:$0xff]
      %v615 = vld [vmem:[%s597 + $0x88] sm:$0xf]
      %v616 = vld [vmem:[%s597 + $0x90] sm:$0xff]
      %v617 = vld [vmem:[%s597 + $0x98] sm:$0xff]
      %v618 = vld [vmem:[%s597 + $0xa0] sm:$0xf]
      %v619 = vld [vmem:[%s597 + $0xa8] sm:$0xff]
      %v620 = vld [vmem:[%s597 + $0xb0] sm:$0xff]
      %v621 = vld [vmem:[%s597 + $0xb8] sm:$0xf]
      %v622 = vld [vmem:[%s597 + $0xc0] sm:$0xff]
      %v623 = vld [vmem:[%s597 + $0xc8] sm:$0xff]
      %v624 = vld [vmem:[%s597 + $0xd0] sm:$0xf]
      %v625 = vld [vmem:[%s597 + $0xd8] sm:$0xff]
      %v626 = vld [vmem:[%s597 + $0xe0] sm:$0xff]
      %v627 = vld [vmem:[%s597 + $0xe8] sm:$0xf]
      %v628 = vld [vmem:[%s597 + $0xf0] sm:$0xff]
      %v629 = vld [vmem:[%s597 + $0xf8] sm:$0xff]
      %v630 = vld [vmem:[%s597 + $0x100] sm:$0xf]
      %v631 = vld [vmem:[%s597 + $0x108] sm:$0xff]
      %v632 = vld [vmem:[%s597 + $0x110] sm:$0xff]
      %v633 = vld [vmem:[%s597 + $0x118] sm:$0xf]
      %v634 = vld [vmem:[%s597 + $0x120] sm:$0xff]
      %v635 = vld [vmem:[%s597 + $0x128] sm:$0xff]
      %v636 = vld [vmem:[%s597 + $0x130] sm:$0xf]
      %v637 = vld [vmem:[%s597 + $0x138] sm:$0xff]
      %v638 = vld [vmem:[%s597 + $0x140] sm:$0xff]
      %v639 = vld [vmem:[%s597 + $0x148] sm:$0xf]
      %v640 = vld [vmem:[%s597 + $0x150] sm:$0xff]
      %v641 = vld [vmem:[%s597 + $0x158] sm:$0xff]
      %v642 = vld [vmem:[%s597 + $0x160] sm:$0xf]
      %v643 = vld [vmem:[%s597 + $0x168] sm:$0xff]
      %v644 = vld [vmem:[%s597 + $0x170] sm:$0xff]
      %v645 = vld [vmem:[%s597 + $0x178] sm:$0xf]
      %v646 = vmax.f32 %v549, %v598
      %v647 = vmax.f32 %v550, %v599
      %v648 = vmax.f32 %v551, %v600
      %v649 = vmax.f32 %v552, %v601
      %v650 = vmax.f32 %v553, %v602
      %v651 = vmax.f32 %v554, %v603
      %v652 = vmax.f32 %v555, %v604
      %v653 = vmax.f32 %v556, %v605
      %v654 = vmax.f32 %v557, %v606
      %v655 = vmax.f32 %v558, %v607
      %v656 = vmax.f32 %v559, %v608
      %v657 = vmax.f32 %v560, %v609
      %v658 = vmax.f32 %v561, %v610
      %v659 = vmax.f32 %v562, %v611
      %v660 = vmax.f32 %v563, %v612
      %v661 = vmax.f32 %v564, %v613
      %v662 = vmax.f32 %v565, %v614
      %v663 = vmax.f32 %v566, %v615
      %v664 = vmax.f32 %v567, %v616
      %v665 = vmax.f32 %v568, %v617
      %v666 = vmax.f32 %v569, %v618
      %v667 = vmax.f32 %v570, %v619
      %v668 = vmax.f32 %v571, %v620
      %v669 = vmax.f32 %v572, %v621
      %v670 = vmax.f32 %v573, %v622
      %v671 = vmax.f32 %v574, %v623
      %v672 = vmax.f32 %v575, %v624
      %v673 = vmax.f32 %v576, %v625
      %v674 = vmax.f32 %v577, %v626
      %v675 = vmax.f32 %v578, %v627
      %v676 = vmax.f32 %v579, %v628
      %v677 = vmax.f32 %v580, %v629
      %v678 = vmax.f32 %v581, %v630
      %v679 = vmax.f32 %v582, %v631
      %v680 = vmax.f32 %v583, %v632
      %v681 = vmax.f32 %v584, %v633
      %v682 = vmax.f32 %v585, %v634
      %v683 = vmax.f32 %v586, %v635
      %v684 = vmax.f32 %v587, %v636
      %v685 = vmax.f32 %v588, %v637
      %v686 = vmax.f32 %v589, %v638
      %v687 = vmax.f32 %v590, %v639
      %v688 = vmax.f32 %v591, %v640
      %v689 = vmax.f32 %v592, %v641
      %v690 = vmax.f32 %v593, %v642
      %v691 = vmax.f32 %v594, %v643
      %v692 = vmax.f32 %v595, %v644
      %v693 = vmax.f32 %v596, %v645
      %s694 = scalar_lea.vmem [#allocation2], 96
      %v695 = vld [vmem:[%s694] sm:$0xff]
      %v696 = vld [vmem:[%s694 + $0x8] sm:$0xff]
      %v697 = vld [vmem:[%s694 + $0x10] sm:$0xf]
      %v698 = vld [vmem:[%s694 + $0x18] sm:$0xff]
      %v699 = vld [vmem:[%s694 + $0x20] sm:$0xff]
      %v700 = vld [vmem:[%s694 + $0x28] sm:$0xf]
      %v701 = vld [vmem:[%s694 + $0x30] sm:$0xff]
      %v702 = vld [vmem:[%s694 + $0x38] sm:$0xff]
      %v703 = vld [vmem:[%s694 + $0x40] sm:$0xf]
      %v704 = vld [vmem:[%s694 + $0x48] sm:$0xff]
      %v705 = vld [vmem:[%s694 + $0x50] sm:$0xff]
      %v706 = vld [vmem:[%s694 + $0x58] sm:$0xf]
      %v707 = vld [vmem:[%s694 + $0x60] sm:$0xff]
      %v708 = vld [vmem:[%s694 + $0x68] sm:$0xff]
      %v709 = vld [vmem:[%s694 + $0x70] sm:$0xf]
      %v710 = vld [vmem:[%s694 + $0x78] sm:$0xff]
      %v711 = vld [vmem:[%s694 + $0x80] sm:$0xff]
      %v712 = vld [vmem:[%s694 + $0x88] sm:$0xf]
      %v713 = vld [vmem:[%s694 + $0x90] sm:$0xff]
      %v714 = vld [vmem:[%s694 + $0x98] sm:$0xff]
      %v715 = vld [vmem:[%s694 + $0xa0] sm:$0xf]
      %v716 = vld [vmem:[%s694 + $0xa8] sm:$0xff]
      %v717 = vld [vmem:[%s694 + $0xb0] sm:$0xff]
      %v718 = vld [vmem:[%s694 + $0xb8] sm:$0xf]
      %v719 = vld [vmem:[%s694 + $0xc0] sm:$0xff]
      %v720 = vld [vmem:[%s694 + $0xc8] sm:$0xff]
      %v721 = vld [vmem:[%s694 + $0xd0] sm:$0xf]
      %v722 = vld [vmem:[%s694 + $0xd8] sm:$0xff]
      %v723 = vld [vmem:[%s694 + $0xe0] sm:$0xff]
      %v724 = vld [vmem:[%s694 + $0xe8] sm:$0xf]
      %v725 = vld [vmem:[%s694 + $0xf0] sm:$0xff]
      %v726 = vld [vmem:[%s694 + $0xf8] sm:$0xff]
      %v727 = vld [vmem:[%s694 + $0x100] sm:$0xf]
      %v728 = vld [vmem:[%s694 + $0x108] sm:$0xff]
      %v729 = vld [vmem:[%s694 + $0x110] sm:$0xff]
      %v730 = vld [vmem:[%s694 + $0x118] sm:$0xf]
      %v731 = vld [vmem:[%s694 + $0x120] sm:$0xff]
      %v732 = vld [vmem:[%s694 + $0x128] sm:$0xff]
      %v733 = vld [vmem:[%s694 + $0x130] sm:$0xf]
      %v734 = vld [vmem:[%s694 + $0x138] sm:$0xff]
      %v735 = vld [vmem:[%s694 + $0x140] sm:$0xff]
      %v736 = vld [vmem:[%s694 + $0x148] sm:$0xf]
      %v737 = vld [vmem:[%s694 + $0x150] sm:$0xff]
      %v738 = vld [vmem:[%s694 + $0x158] sm:$0xff]
      %v739 = vld [vmem:[%s694 + $0x160] sm:$0xf]
      %v740 = vld [vmem:[%s694 + $0x168] sm:$0xff]
      %v741 = vld [vmem:[%s694 + $0x170] sm:$0xff]
      %v742 = vld [vmem:[%s694 + $0x178] sm:$0xf]
      %v743 = vmax.f32 %v646, %v695
      %v744 = vmax.f32 %v647, %v696
      %v745 = vmax.f32 %v648, %v697
      %v746 = vmax.f32 %v649, %v698
      %v747 = vmax.f32 %v650, %v699
      %v748 = vmax.f32 %v651, %v700
      %v749 = vmax.f32 %v652, %v701
      %v750 = vmax.f32 %v653, %v702
      %v751 = vmax.f32 %v654, %v703
      %v752 = vmax.f32 %v655, %v704
      %v753 = vmax.f32 %v656, %v705
      %v754 = vmax.f32 %v657, %v706
      %v755 = vmax.f32 %v658, %v707
      %v756 = vmax.f32 %v659, %v708
      %v757 = vmax.f32 %v660, %v709
      %v758 = vmax.f32 %v661, %v710
      %v759 = vmax.f32 %v662, %v711
      %v760 = vmax.f32 %v663, %v712
      %v761 = vmax.f32 %v664, %v713
      %v762 = vmax.f32 %v665, %v714
      %v763 = vmax.f32 %v666, %v715
      %v764 = vmax.f32 %v667, %v716
      %v765 = vmax.f32 %v668, %v717
      %v766 = vmax.f32 %v669, %v718
      %v767 = vmax.f32 %v670, %v719
      %v768 = vmax.f32 %v671, %v720
      %v769 = vmax.f32 %v672, %v721
      %v770 = vmax.f32 %v673, %v722
      %v771 = vmax.f32 %v674, %v723
      %v772 = vmax.f32 %v675, %v724
      %v773 = vmax.f32 %v676, %v725
      %v774 = vmax.f32 %v677, %v726
      %v775 = vmax.f32 %v678, %v727
      %v776 = vmax.f32 %v679, %v728
      %v777 = vmax.f32 %v680, %v729
      %v778 = vmax.f32 %v681, %v730
      %v779 = vmax.f32 %v682, %v731
      %v780 = vmax.f32 %v683, %v732
      %v781 = vmax.f32 %v684, %v733
      %v782 = vmax.f32 %v685, %v734
      %v783 = vmax.f32 %v686, %v735
      %v784 = vmax.f32 %v687, %v736
      %v785 = vmax.f32 %v688, %v737
      %v786 = vmax.f32 %v689, %v738
      %v787 = vmax.f32 %v690, %v739
      %v788 = vmax.f32 %v691, %v740
      %v789 = vmax.f32 %v692, %v741
      %v790 = vmax.f32 %v693, %v742
      %vm839 = vcmask 1046528
      %v840 = vrot.slane %v743, 1
      %v841 = vrot.slane %v744, 1
      %v842 = vsel %vm839, %v840, %v841
      %v843 = vrot.slane %v745, 1
      %v844 = vsel %vm839, %v841, %v843
      %v845 = vrot.slane %v746, 1
      %v846 = vrot.slane %v747, 1
      %v847 = vsel %vm839, %v845, %v846
      %v848 = vrot.slane %v748, 1
      %v849 = vsel %vm839, %v846, %v848
      %v850 = vrot.slane %v749, 1
      %v851 = vrot.slane %v750, 1
      %v852 = vsel %vm839, %v850, %v851
      %v853 = vrot.slane %v751, 1
      %v854 = vsel %vm839, %v851, %v853
      %v855 = vrot.slane %v752, 1
      %v856 = vrot.slane %v753, 1
      %v857 = vsel %vm839, %v855, %v856
      %v858 = vrot.slane %v754, 1
      %v859 = vsel %vm839, %v856, %v858
      %v860 = vrot.slane %v755, 1
      %v861 = vrot.slane %v756, 1
      %v862 = vsel %vm839, %v860, %v861
      %v863 = vrot.slane %v757, 1
      %v864 = vsel %vm839, %v861, %v863
      %v865 = vrot.slane %v758, 1
      %v866 = vrot.slane %v759, 1
      %v867 = vsel %vm839, %v865, %v866
      %v868 = vrot.slane %v760, 1
      %v869 = vsel %vm839, %v866, %v868
      %v870 = vrot.slane %v761, 1
      %v871 = vrot.slane %v762, 1
      %v872 = vsel %vm839, %v870, %v871
      %v873 = vrot.slane %v763, 1
      %v874 = vsel %vm839, %v871, %v873
      %v875 = vrot.slane %v764, 1
      %v876 = vrot.slane %v765, 1
      %v877 = vsel %vm839, %v875, %v876
      %v878 = vrot.slane %v766, 1
      %v879 = vsel %vm839, %v876, %v878
      %v880 = vrot.slane %v767, 1
      %v881 = vrot.slane %v768, 1
      %v882 = vsel %vm839, %v880, %v881
      %v883 = vrot.slane %v769, 1
      %v884 = vsel %vm839, %v881, %v883
      %v885 = vrot.slane %v770, 1
      %v886 = vrot.slane %v771, 1
      %v887 = vsel %vm839, %v885, %v886
      %v888 = vrot.slane %v772, 1
      %v889 = vsel %vm839, %v886, %v888
      %v890 = vrot.slane %v773, 1
      %v891 = vrot.slane %v774, 1
      %v892 = vsel %vm839, %v890, %v891
      %v893 = vrot.slane %v775, 1
      %v894 = vsel %vm839, %v891, %v893
      %v895 = vrot.slane %v776, 1
      %v896 = vrot.slane %v777, 1
      %v897 = vsel %vm839, %v895, %v896
      %v898 = vrot.slane %v778, 1
      %v899 = vsel %vm839, %v896, %v898
      %v900 = vrot.slane %v779, 1
      %v901 = vrot.slane %v780, 1
      %v902 = vsel %vm839, %v900, %v901
      %v903 = vrot.slane %v781, 1
      %v904 = vsel %vm839, %v901, %v903
      %v905 = vrot.slane %v782, 1
      %v906 = vrot.slane %v783, 1
      %v907 = vsel %vm839, %v905, %v906
      %v908 = vrot.slane %v784, 1
      %v909 = vsel %vm839, %v906, %v908
      %v910 = vrot.slane %v785, 1
      %v911 = vrot.slane %v786, 1
      %v912 = vsel %vm839, %v910, %v911
      %v913 = vrot.slane %v787, 1
      %v914 = vsel %vm839, %v911, %v913
      %v915 = vrot.slane %v788, 1
      %v916 = vrot.slane %v789, 1
      %v917 = vsel %vm839, %v915, %v916
      %v918 = vrot.slane %v790, 1
      %v919 = vsel %vm839, %v916, %v918
      %v952 = vmax.f32 %v743, %v842
      %v953 = vmax.f32 %v744, %v844
      %v954 = vmax.f32 %v746, %v847
      %v955 = vmax.f32 %v747, %v849
      %v956 = vmax.f32 %v749, %v852
      %v957 = vmax.f32 %v750, %v854
      %v958 = vmax.f32 %v752, %v857
      %v959 = vmax.f32 %v753, %v859
      %v960 = vmax.f32 %v755, %v862
      %v961 = vmax.f32 %v756, %v864
      %v962 = vmax.f32 %v758, %v867
      %v963 = vmax.f32 %v759, %v869
      %v964 = vmax.f32 %v761, %v872
      %v965 = vmax.f32 %v762, %v874
      %v966 = vmax.f32 %v764, %v877
      %v967 = vmax.f32 %v765, %v879
      %v968 = vmax.f32 %v767, %v882
      %v969 = vmax.f32 %v768, %v884
      %v970 = vmax.f32 %v770, %v887
      %v971 = vmax.f32 %v771, %v889
      %v972 = vmax.f32 %v773, %v892
      %v973 = vmax.f32 %v774, %v894
      %v974 = vmax.f32 %v776, %v897
      %v975 = vmax.f32 %v777, %v899
      %v976 = vmax.f32 %v779, %v902
      %v977 = vmax.f32 %v780, %v904
      %v978 = vmax.f32 %v782, %v907
      %v979 = vmax.f32 %v783, %v909
      %v980 = vmax.f32 %v785, %v912
      %v981 = vmax.f32 %v786, %v914
      %v982 = vmax.f32 %v788, %v917
      %v983 = vmax.f32 %v789, %v919
      %vm984 = vcmask 1045504
      %v985 = vrot.slane %v743, 2
      %v986 = vrot.slane %v744, 2
      %v987 = vsel %vm984, %v985, %v986
      %v988 = vrot.slane %v745, 2
      %v989 = vsel %vm984, %v986, %v988
      %v990 = vrot.slane %v746, 2
      %v991 = vrot.slane %v747, 2
      %v992 = vsel %vm984, %v990, %v991
      %v993 = vrot.slane %v748, 2
      %v994 = vsel %vm984, %v991, %v993
      %v995 = vrot.slane %v749, 2
      %v996 = vrot.slane %v750, 2
      %v997 = vsel %vm984, %v995, %v996
      %v998 = vrot.slane %v751, 2
      %v999 = vsel %vm984, %v996, %v998
      %v1000 = vrot.slane %v752, 2
      %v1001 = vrot.slane %v753, 2
      %v1002 = vsel %vm984, %v1000, %v1001
      %v1003 = vrot.slane %v754, 2
      %v1004 = vsel %vm984, %v1001, %v1003
      %v1005 = vrot.slane %v755, 2
      %v1006 = vrot.slane %v756, 2
      %v1007 = vsel %vm984, %v1005, %v1006
      %v1008 = vrot.slane %v757, 2
      %v1009 = vsel %vm984, %v1006, %v1008
      %v1010 = vrot.slane %v758, 2
      %v1011 = vrot.slane %v759, 2
      %v1012 = vsel %vm984, %v1010, %v1011
      %v1013 = vrot.slane %v760, 2
      %v1014 = vsel %vm984, %v1011, %v1013
      %v1015 = vrot.slane %v761, 2
      %v1016 = vrot.slane %v762, 2
      %v1017 = vsel %vm984, %v1015, %v1016
      %v1018 = vrot.slane %v763, 2
      %v1019 = vsel %vm984, %v1016, %v1018
      %v1020 = vrot.slane %v764, 2
      %v1021 = vrot.slane %v765, 2
      %v1022 = vsel %vm984, %v1020, %v1021
      %v1023 = vrot.slane %v766, 2
      %v1024 = vsel %vm984, %v1021, %v1023
      %v1025 = vrot.slane %v767, 2
      %v1026 = vrot.slane %v768, 2
      %v1027 = vsel %vm984, %v1025, %v1026
      %v1028 = vrot.slane %v769, 2
      %v1029 = vsel %vm984, %v1026, %v1028
      %v1030 = vrot.slane %v770, 2
      %v1031 = vrot.slane %v771, 2
      %v1032 = vsel %vm984, %v1030, %v1031
      %v1033 = vrot.slane %v772, 2
      %v1034 = vsel %vm984, %v1031, %v1033
      %v1035 = vrot.slane %v773, 2
      %v1036 = vrot.slane %v774, 2
      %v1037 = vsel %vm984, %v1035, %v1036
      %v1038 = vrot.slane %v775, 2
      %v1039 = vsel %vm984, %v1036, %v1038
      %v1040 = vrot.slane %v776, 2
      %v1041 = vrot.slane %v777, 2
      %v1042 = vsel %vm984, %v1040, %v1041
      %v1043 = vrot.slane %v778, 2
      %v1044 = vsel %vm984, %v1041, %v1043
      %v1045 = vrot.slane %v779, 2
      %v1046 = vrot.slane %v780, 2
      %v1047 = vsel %vm984, %v1045, %v1046
      %v1048 = vrot.slane %v781, 2
      %v1049 = vsel %vm984, %v1046, %v1048
      %v1050 = vrot.slane %v782, 2
      %v1051 = vrot.slane %v783, 2
      %v1052 = vsel %vm984, %v1050, %v1051
      %v1053 = vrot.slane %v784, 2
      %v1054 = vsel %vm984, %v1051, %v1053
      %v1055 = vrot.slane %v785, 2
      %v1056 = vrot.slane %v786, 2
      %v1057 = vsel %vm984, %v1055, %v1056
      %v1058 = vrot.slane %v787, 2
      %v1059 = vsel %vm984, %v1056, %v1058
      %v1060 = vrot.slane %v788, 2
      %v1061 = vrot.slane %v789, 2
      %v1062 = vsel %vm984, %v1060, %v1061
      %v1063 = vrot.slane %v790, 2
      %v1064 = vsel %vm984, %v1061, %v1063
      %v1097 = vmax.f32 %v952, %v987
      %v1098 = vmax.f32 %v953, %v989
      %v1099 = vmax.f32 %v954, %v992
      %v1100 = vmax.f32 %v955, %v994
      %v1101 = vmax.f32 %v956, %v997
      %v1102 = vmax.f32 %v957, %v999
      %v1103 = vmax.f32 %v958, %v1002
      %v1104 = vmax.f32 %v959, %v1004
      %v1105 = vmax.f32 %v960, %v1007
      %v1106 = vmax.f32 %v961, %v1009
      %v1107 = vmax.f32 %v962, %v1012
      %v1108 = vmax.f32 %v963, %v1014
      %v1109 = vmax.f32 %v964, %v1017
      %v1110 = vmax.f32 %v965, %v1019
      %v1111 = vmax.f32 %v966, %v1022
      %v1112 = vmax.f32 %v967, %v1024
      %v1113 = vmax.f32 %v968, %v1027
      %v1114 = vmax.f32 %v969, %v1029
      %v1115 = vmax.f32 %v970, %v1032
      %v1116 = vmax.f32 %v971, %v1034
      %v1117 = vmax.f32 %v972, %v1037
      %v1118 = vmax.f32 %v973, %v1039
      %v1119 = vmax.f32 %v974, %v1042
      %v1120 = vmax.f32 %v975, %v1044
      %v1121 = vmax.f32 %v976, %v1047
      %v1122 = vmax.f32 %v977, %v1049
      %v1123 = vmax.f32 %v978, %v1052
      %v1124 = vmax.f32 %v979, %v1054
      %v1125 = vmax.f32 %v980, %v1057
      %v1126 = vmax.f32 %v981, %v1059
      %v1127 = vmax.f32 %v982, %v1062
      %v1128 = vmax.f32 %v983, %v1064
      %vm1129 = vcmask 1044480
      %v1130 = vrot.slane %v743, 3
      %v1131 = vrot.slane %v744, 3
      %v1132 = vsel %vm1129, %v1130, %v1131
      %v1133 = vrot.slane %v745, 3
      %v1134 = vsel %vm1129, %v1131, %v1133
      %v1135 = vrot.slane %v746, 3
      %v1136 = vrot.slane %v747, 3
      %v1137 = vsel %vm1129, %v1135, %v1136
      %v1138 = vrot.slane %v748, 3
      %v1139 = vsel %vm1129, %v1136, %v1138
      %v1140 = vrot.slane %v749, 3
      %v1141 = vrot.slane %v750, 3
      %v1142 = vsel %vm1129, %v1140, %v1141
      %v1143 = vrot.slane %v751, 3
      %v1144 = vsel %vm1129, %v1141, %v1143
      %v1145 = vrot.slane %v752, 3
      %v1146 = vrot.slane %v753, 3
      %v1147 = vsel %vm1129, %v1145, %v1146
      %v1148 = vrot.slane %v754, 3
      %v1149 = vsel %vm1129, %v1146, %v1148
      %v1150 = vrot.slane %v755, 3
      %v1151 = vrot.slane %v756, 3
      %v1152 = vsel %vm1129, %v1150, %v1151
      %v1153 = vrot.slane %v757, 3
      %v1154 = vsel %vm1129, %v1151, %v1153
      %v1155 = vrot.slane %v758, 3
      %v1156 = vrot.slane %v759, 3
      %v1157 = vsel %vm1129, %v1155, %v1156
      %v1158 = vrot.slane %v760, 3
      %v1159 = vsel %vm1129, %v1156, %v1158
      %v1160 = vrot.slane %v761, 3
      %v1161 = vrot.slane %v762, 3
      %v1162 = vsel %vm1129, %v1160, %v1161
      %v1163 = vrot.slane %v763, 3
      %v1164 = vsel %vm1129, %v1161, %v1163
      %v1165 = vrot.slane %v764, 3
      %v1166 = vrot.slane %v765, 3
      %v1167 = vsel %vm1129, %v1165, %v1166
      %v1168 = vrot.slane %v766, 3
      %v1169 = vsel %vm1129, %v1166, %v1168
      %v1170 = vrot.slane %v767, 3
      %v1171 = vrot.slane %v768, 3
      %v1172 = vsel %vm1129, %v1170, %v1171
      %v1173 = vrot.slane %v769, 3
      %v1174 = vsel %vm1129, %v1171, %v1173
      %v1175 = vrot.slane %v770, 3
      %v1176 = vrot.slane %v771, 3
      %v1177 = vsel %vm1129, %v1175, %v1176
      %v1178 = vrot.slane %v772, 3
      %v1179 = vsel %vm1129, %v1176, %v1178
      %v1180 = vrot.slane %v773, 3
      %v1181 = vrot.slane %v774, 3
      %v1182 = vsel %vm1129, %v1180, %v1181
      %v1183 = vrot.slane %v775, 3
      %v1184 = vsel %vm1129, %v1181, %v1183
      %v1185 = vrot.slane %v776, 3
      %v1186 = vrot.slane %v777, 3
      %v1187 = vsel %vm1129, %v1185, %v1186
      %v1188 = vrot.slane %v778, 3
      %v1189 = vsel %vm1129, %v1186, %v1188
      %v1190 = vrot.slane %v779, 3
      %v1191 = vrot.slane %v780, 3
      %v1192 = vsel %vm1129, %v1190, %v1191
      %v1193 = vrot.slane %v781, 3
      %v1194 = vsel %vm1129, %v1191, %v1193
      %v1195 = vrot.slane %v782, 3
      %v1196 = vrot.slane %v783, 3
      %v1197 = vsel %vm1129, %v1195, %v1196
      %v1198 = vrot.slane %v784, 3
      %v1199 = vsel %vm1129, %v1196, %v1198
      %v1200 = vrot.slane %v785, 3
      %v1201 = vrot.slane %v786, 3
      %v1202 = vsel %vm1129, %v1200, %v1201
      %v1203 = vrot.slane %v787, 3
      %v1204 = vsel %vm1129, %v1201, %v1203
      %v1205 = vrot.slane %v788, 3
      %v1206 = vrot.slane %v789, 3
      %v1207 = vsel %vm1129, %v1205, %v1206
      %v1208 = vrot.slane %v790, 3
      %v1209 = vsel %vm1129, %v1206, %v1208
      %v1242 = vmax.f32 %v1097, %v1132
      %v1243 = vmax.f32 %v1098, %v1134
      %v1244 = vmax.f32 %v1099, %v1137
      %v1245 = vmax.f32 %v1100, %v1139
      %v1246 = vmax.f32 %v1101, %v1142
      %v1247 = vmax.f32 %v1102, %v1144
      %v1248 = vmax.f32 %v1103, %v1147
      %v1249 = vmax.f32 %v1104, %v1149
      %v1250 = vmax.f32 %v1105, %v1152
      %v1251 = vmax.f32 %v1106, %v1154
      %v1252 = vmax.f32 %v1107, %v1157
      %v1253 = vmax.f32 %v1108, %v1159
      %v1254 = vmax.f32 %v1109, %v1162
      %v1255 = vmax.f32 %v1110, %v1164
      %v1256 = vmax.f32 %v1111, %v1167
      %v1257 = vmax.f32 %v1112, %v1169
      %v1258 = vmax.f32 %v1113, %v1172
      %v1259 = vmax.f32 %v1114, %v1174
      %v1260 = vmax.f32 %v1115, %v1177
      %v1261 = vmax.f32 %v1116, %v1179
      %v1262 = vmax.f32 %v1117, %v1182
      %v1263 = vmax.f32 %v1118, %v1184
      %v1264 = vmax.f32 %v1119, %v1187
      %v1265 = vmax.f32 %v1120, %v1189
      %v1266 = vmax.f32 %v1121, %v1192
      %v1267 = vmax.f32 %v1122, %v1194
      %v1268 = vmax.f32 %v1123, %v1197
      %v1269 = vmax.f32 %v1124, %v1199
      %v1270 = vmax.f32 %v1125, %v1202
      %v1271 = vmax.f32 %v1126, %v1204
      %v1272 = vmax.f32 %v1127, %v1207
      %v1273 = vmax.f32 %v1128, %v1209
      %vm1274 = vcmask 1043456
      %v1275 = vrot.slane %v743, 4
      %v1276 = vrot.slane %v744, 4
      %v1277 = vsel %vm1274, %v1275, %v1276
      %v1278 = vrot.slane %v745, 4
      %v1279 = vsel %vm1274, %v1276, %v1278
      %v1280 = vrot.slane %v746, 4
      %v1281 = vrot.slane %v747, 4
      %v1282 = vsel %vm1274, %v1280, %v1281
      %v1283 = vrot.slane %v748, 4
      %v1284 = vsel %vm1274, %v1281, %v1283
      %v1285 = vrot.slane %v749, 4
      %v1286 = vrot.slane %v750, 4
      %v1287 = vsel %vm1274, %v1285, %v1286
      %v1288 = vrot.slane %v751, 4
      %v1289 = vsel %vm1274, %v1286, %v1288
      %v1290 = vrot.slane %v752, 4
      %v1291 = vrot.slane %v753, 4
      %v1292 = vsel %vm1274, %v1290, %v1291
      %v1293 = vrot.slane %v754, 4
      %v1294 = vsel %vm1274, %v1291, %v1293
      %v1295 = vrot.slane %v755, 4
      %v1296 = vrot.slane %v756, 4
      %v1297 = vsel %vm1274, %v1295, %v1296
      %v1298 = vrot.slane %v757, 4
      %v1299 = vsel %vm1274, %v1296, %v1298
      %v1300 = vrot.slane %v758, 4
      %v1301 = vrot.slane %v759, 4
      %v1302 = vsel %vm1274, %v1300, %v1301
      %v1303 = vrot.slane %v760, 4
      %v1304 = vsel %vm1274, %v1301, %v1303
      %v1305 = vrot.slane %v761, 4
      %v1306 = vrot.slane %v762, 4
      %v1307 = vsel %vm1274, %v1305, %v1306
      %v1308 = vrot.slane %v763, 4
      %v1309 = vsel %vm1274, %v1306, %v1308
      %v1310 = vrot.slane %v764, 4
      %v1311 = vrot.slane %v765, 4
      %v1312 = vsel %vm1274, %v1310, %v1311
      %v1313 = vrot.slane %v766, 4
      %v1314 = vsel %vm1274, %v1311, %v1313
      %v1315 = vrot.slane %v767, 4
      %v1316 = vrot.slane %v768, 4
      %v1317 = vsel %vm1274, %v1315, %v1316
      %v1318 = vrot.slane %v769, 4
      %v1319 = vsel %vm1274, %v1316, %v1318
      %v1320 = vrot.slane %v770, 4
      %v1321 = vrot.slane %v771, 4
      %v1322 = vsel %vm1274, %v1320, %v1321
      %v1323 = vrot.slane %v772, 4
      %v1324 = vsel %vm1274, %v1321, %v1323
      %v1325 = vrot.slane %v773, 4
      %v1326 = vrot.slane %v774, 4
      %v1327 = vsel %vm1274, %v1325, %v1326
      %v1328 = vrot.slane %v775, 4
      %v1329 = vsel %vm1274, %v1326, %v1328
      %v1330 = vrot.slane %v776, 4
      %v1331 = vrot.slane %v777, 4
      %v1332 = vsel %vm1274, %v1330, %v1331
      %v1333 = vrot.slane %v778, 4
      %v1334 = vsel %vm1274, %v1331, %v1333
      %v1335 = vrot.slane %v779, 4
      %v1336 = vrot.slane %v780, 4
      %v1337 = vsel %vm1274, %v1335, %v1336
      %v1338 = vrot.slane %v781, 4
      %v1339 = vsel %vm1274, %v1336, %v1338
      %v1340 = vrot.slane %v782, 4
      %v1341 = vrot.slane %v783, 4
      %v1342 = vsel %vm1274, %v1340, %v1341
      %v1343 = vrot.slane %v784, 4
      %v1344 = vsel %vm1274, %v1341, %v1343
      %v1345 = vrot.slane %v785, 4
      %v1346 = vrot.slane %v786, 4
      %v1347 = vsel %vm1274, %v1345, %v1346
      %v1348 = vrot.slane %v787, 4
      %v1349 = vsel %vm1274, %v1346, %v1348
      %v1350 = vrot.slane %v788, 4
      %v1351 = vrot.slane %v789, 4
      %v1352 = vsel %vm1274, %v1350, %v1351
      %v1353 = vrot.slane %v790, 4
      %v1354 = vsel %vm1274, %v1351, %v1353
      %v1387 = vmax.f32 %v1242, %v1277
      %v1388 = vmax.f32 %v1243, %v1279
      %v1389 = vmax.f32 %v1244, %v1282
      %v1390 = vmax.f32 %v1245, %v1284
      %v1391 = vmax.f32 %v1246, %v1287
      %v1392 = vmax.f32 %v1247, %v1289
      %v1393 = vmax.f32 %v1248, %v1292
      %v1394 = vmax.f32 %v1249, %v1294
      %v1395 = vmax.f32 %v1250, %v1297
      %v1396 = vmax.f32 %v1251, %v1299
      %v1397 = vmax.f32 %v1252, %v1302
      %v1398 = vmax.f32 %v1253, %v1304
      %v1399 = vmax.f32 %v1254, %v1307
      %v1400 = vmax.f32 %v1255, %v1309
      %v1401 = vmax.f32 %v1256, %v1312
      %v1402 = vmax.f32 %v1257, %v1314
      %v1403 = vmax.f32 %v1258, %v1317
      %v1404 = vmax.f32 %v1259, %v1319
      %v1405 = vmax.f32 %v1260, %v1322
      %v1406 = vmax.f32 %v1261, %v1324
      %v1407 = vmax.f32 %v1262, %v1327
      %v1408 = vmax.f32 %v1263, %v1329
      %v1409 = vmax.f32 %v1264, %v1332
      %v1410 = vmax.f32 %v1265, %v1334
      %v1411 = vmax.f32 %v1266, %v1337
      %v1412 = vmax.f32 %v1267, %v1339
      %v1413 = vmax.f32 %v1268, %v1342
      %v1414 = vmax.f32 %v1269, %v1344
      %v1415 = vmax.f32 %v1270, %v1347
      %v1416 = vmax.f32 %v1271, %v1349
      %v1417 = vmax.f32 %v1272, %v1352
      %v1418 = vmax.f32 %v1273, %v1354
      %1419 = vst.msk [vmem:[%s226] sm:$0xff] %vm243, %v1387
      %1420 = vst.msk [vmem:[%s226 + $0x8] sm:$0xff] %vm243, %v1388
      %1421 = vst.msk [vmem:[%s226 + $0x10] sm:$0xff] %vm243, %v1389
      %1422 = vst.msk [vmem:[%s226 + $0x18] sm:$0xff] %vm243, %v1390
      %1423 = vst.msk [vmem:[%s226 + $0x20] sm:$0xff] %vm243, %v1391
      %1424 = vst.msk [vmem:[%s226 + $0x28] sm:$0xff] %vm243, %v1392
      %1425 = vst.msk [vmem:[%s226 + $0x30] sm:$0xff] %vm243, %v1393
      %1426 = vst.msk [vmem:[%s226 + $0x38] sm:$0xff] %vm243, %v1394
      %1427 = vst.msk [vmem:[%s226 + $0x40] sm:$0xff] %vm243, %v1395
      %1428 = vst.msk [vmem:[%s226 + $0x48] sm:$0xff] %vm243, %v1396
      %1429 = vst.msk [vmem:[%s226 + $0x50] sm:$0xff] %vm243, %v1397
      %1430 = vst.msk [vmem:[%s226 + $0x58] sm:$0xff] %vm243, %v1398
      %1431 = vst.msk [vmem:[%s226 + $0x60] sm:$0xff] %vm243, %v1399
      %1432 = vst.msk [vmem:[%s226 + $0x68] sm:$0xff] %vm243, %v1400
      %1433 = vst.msk [vmem:[%s226 + $0x70] sm:$0xff] %vm243, %v1401
      %1434 = vst.msk [vmem:[%s226 + $0x78] sm:$0xff] %vm243, %v1402
      %1435 = vst.msk [vmem:[%s226 + $0x80] sm:$0xff] %vm243, %v1403
      %1436 = vst.msk [vmem:[%s226 + $0x88] sm:$0xff] %vm243, %v1404
      %1437 = vst.msk [vmem:[%s226 + $0x90] sm:$0xff] %vm243, %v1405
      %1438 = vst.msk [vmem:[%s226 + $0x98] sm:$0xff] %vm243, %v1406
      %1439 = vst.msk [vmem:[%s226 + $0xa0] sm:$0xff] %vm243, %v1407
      %1440 = vst.msk [vmem:[%s226 + $0xa8] sm:$0xff] %vm243, %v1408
      %1441 = vst.msk [vmem:[%s226 + $0xb0] sm:$0xff] %vm243, %v1409
      %1442 = vst.msk [vmem:[%s226 + $0xb8] sm:$0xff] %vm243, %v1410
      %1443 = vst.msk [vmem:[%s226 + $0xc0] sm:$0xff] %vm243, %v1411
      %1444 = vst.msk [vmem:[%s226 + $0xc8] sm:$0xff] %vm243, %v1412
      %1445 = vst.msk [vmem:[%s226 + $0xd0] sm:$0xff] %vm243, %v1413
      %1446 = vst.msk [vmem:[%s226 + $0xd8] sm:$0xff] %vm243, %v1414
      %1447 = vst.msk [vmem:[%s226 + $0xe0] sm:$0xff] %vm243, %v1415
      %1448 = vst.msk [vmem:[%s226 + $0xe8] sm:$0xff] %vm243, %v1416
      %1449 = vst.msk [vmem:[%s226 + $0xf0] sm:$0xff] %vm243, %v1417
      %1450 = vst.msk [vmem:[%s226 + $0xf8] sm:$0xff] %vm243, %v1418
      %1451 = vst.msk [vmem:[%s258 + $0x2] sm:$0xff] %vm243, %v1387
      %1452 = vst.msk [vmem:[%s258 + $0xa] sm:$0xff] %vm243, %v1388
      %1453 = vst.msk [vmem:[%s258 + $0x1a] sm:$0xff] %vm243, %v1389
      %1454 = vst.msk [vmem:[%s258 + $0x22] sm:$0xff] %vm243, %v1390
      %1455 = vst.msk [vmem:[%s258 + $0x32] sm:$0xff] %vm243, %v1391
      %1456 = vst.msk [vmem:[%s258 + $0x3a] sm:$0xff] %vm243, %v1392
      %1457 = vst.msk [vmem:[%s258 + $0x4a] sm:$0xff] %vm243, %v1393
      %1458 = vst.msk [vmem:[%s258 + $0x52] sm:$0xff] %vm243, %v1394
      %1459 = vst.msk [vmem:[%s258 + $0x62] sm:$0xff] %vm243, %v1395
      %1460 = vst.msk [vmem:[%s258 + $0x6a] sm:$0xff] %vm243, %v1396
      %1461 = vst.msk [vmem:[%s258 + $0x7a] sm:$0xff] %vm243, %v1397
      %1462 = vst.msk [vmem:[%s258 + $0x82] sm:$0xff] %vm243, %v1398
      %1463 = vst.msk [vmem:[%s258 + $0x92] sm:$0xff] %vm243, %v1399
      %1464 = vst.msk [vmem:[%s258 + $0x9a] sm:$0xff] %vm243, %v1400
      %1465 = vst.msk [vmem:[%s258 + $0xaa] sm:$0xff] %vm243, %v1401
      %1466 = vst.msk [vmem:[%s258 + $0xb2] sm:$0xff] %vm243, %v1402
      %1467 = vst.msk [vmem:[%s258 + $0xc2] sm:$0xff] %vm243, %v1403
      %1468 = vst.msk [vmem:[%s258 + $0xca] sm:$0xff] %vm243, %v1404
      %1469 = vst.msk [vmem:[%s258 + $0xda] sm:$0xff] %vm243, %v1405
      %1470 = vst.msk [vmem:[%s258 + $0xe2] sm:$0xff] %vm243, %v1406
      %1471 = vst.msk [vmem:[%s258 + $0xf2] sm:$0xff] %vm243, %v1407
      %1472 = vst.msk [vmem:[%s258 + $0xfa] sm:$0xff] %vm243, %v1408
      %1473 = vst.msk [vmem:[%s258 + $0x10a] sm:$0xff] %vm243, %v1409
      %1474 = vst.msk [vmem:[%s258 + $0x112] sm:$0xff] %vm243, %v1410
      %1475 = vst.msk [vmem:[%s258 + $0x122] sm:$0xff] %vm243, %v1411
      %1476 = vst.msk [vmem:[%s258 + $0x12a] sm:$0xff] %vm243, %v1412
      %1477 = vst.msk [vmem:[%s258 + $0x13a] sm:$0xff] %vm243, %v1413
      %1478 = vst.msk [vmem:[%s258 + $0x142] sm:$0xff] %vm243, %v1414
      %1479 = vst.msk [vmem:[%s258 + $0x152] sm:$0xff] %vm243, %v1415
      %1480 = vst.msk [vmem:[%s258 + $0x15a] sm:$0xff] %vm243, %v1416
      %1481 = vst.msk [vmem:[%s258 + $0x16a] sm:$0xff] %vm243, %v1417
      %1482 = vst.msk [vmem:[%s258 + $0x172] sm:$0xff] %vm243, %v1418
      %v1483 = vld [vmem:[#allocation2] sm:$0xff]
      %v1484 = vld [vmem:[#allocation2 + $0x8] sm:$0xff]
      %v1485 = vld [vmem:[#allocation2 + $0x10] sm:$0xf]
      %v1486 = vld [vmem:[#allocation2 + $0x18] sm:$0xff]
      %v1487 = vld [vmem:[#allocation2 + $0x20] sm:$0xff]
      %v1488 = vld [vmem:[#allocation2 + $0x28] sm:$0xf]
      %v1489 = vld [vmem:[#allocation2 + $0x30] sm:$0xff]
      %v1490 = vld [vmem:[#allocation2 + $0x38] sm:$0xff]
      %v1491 = vld [vmem:[#allocation2 + $0x40] sm:$0xf]
      %v1492 = vld [vmem:[#allocation2 + $0x48] sm:$0xff]
      %v1493 = vld [vmem:[#allocation2 + $0x50] sm:$0xff]
      %v1494 = vld [vmem:[#allocation2 + $0x58] sm:$0xf]
      %v1495 = vld [vmem:[#allocation2 + $0x60] sm:$0xff]
      %v1496 = vld [vmem:[#allocation2 + $0x68] sm:$0xff]
      %v1497 = vld [vmem:[#allocation2 + $0x70] sm:$0xf]
      %v1498 = vld [vmem:[#allocation2 + $0x78] sm:$0xff]
      %v1499 = vld [vmem:[#allocation2 + $0x80] sm:$0xff]
      %v1500 = vld [vmem:[#allocation2 + $0x88] sm:$0xf]
      %v1501 = vld [vmem:[#allocation2 + $0x90] sm:$0xff]
      %v1502 = vld [vmem:[#allocation2 + $0x98] sm:$0xff]
      %v1503 = vld [vmem:[#allocation2 + $0xa0] sm:$0xf]
      %v1504 = vld [vmem:[#allocation2 + $0xa8] sm:$0xff]
      %v1505 = vld [vmem:[#allocation2 + $0xb0] sm:$0xff]
      %v1506 = vld [vmem:[#allocation2 + $0xb8] sm:$0xf]
      %v1507 = vld [vmem:[#allocation2 + $0xc0] sm:$0xff]
      %v1508 = vld [vmem:[#allocation2 + $0xc8] sm:$0xff]
      %v1509 = vld [vmem:[#allocation2 + $0xd0] sm:$0xf]
      %v1510 = vld [vmem:[#allocation2 + $0xd8] sm:$0xff]
      %v1511 = vld [vmem:[#allocation2 + $0xe0] sm:$0xff]
      %v1512 = vld [vmem:[#allocation2 + $0xe8] sm:$0xf]
      %v1513 = vld [vmem:[#allocation2 + $0xf0] sm:$0xff]
      %v1514 = vld [vmem:[#allocation2 + $0xf8] sm:$0xff]
      %v1515 = vld [vmem:[#allocation2 + $0x100] sm:$0xf]
      %v1516 = vld [vmem:[#allocation2 + $0x108] sm:$0xff]
      %v1517 = vld [vmem:[#allocation2 + $0x110] sm:$0xff]
      %v1518 = vld [vmem:[#allocation2 + $0x118] sm:$0xf]
      %v1519 = vld [vmem:[#allocation2 + $0x120] sm:$0xff]
      %v1520 = vld [vmem:[#allocation2 + $0x128] sm:$0xff]
      %v1521 = vld [vmem:[#allocation2 + $0x130] sm:$0xf]
      %v1522 = vld [vmem:[#allocation2 + $0x138] sm:$0xff]
      %v1523 = vld [vmem:[#allocation2 + $0x140] sm:$0xff]
      %v1524 = vld [vmem:[#allocation2 + $0x148] sm:$0xf]
      %v1525 = vld [vmem:[#allocation2 + $0x150] sm:$0xff]
      %v1526 = vld [vmem:[#allocation2 + $0x158] sm:$0xff]
      %v1527 = vld [vmem:[#allocation2 + $0x160] sm:$0xf]
      %v1528 = vld [vmem:[#allocation2 + $0x168] sm:$0xff]
      %v1529 = vld [vmem:[#allocation2 + $0x170] sm:$0xff]
      %v1530 = vld [vmem:[#allocation2 + $0x178] sm:$0xf]
      %v1531 = vld [vmem:[%s404] sm:$0xff]
      %v1532 = vld [vmem:[%s404 + $0x8] sm:$0xff]
      %v1533 = vld [vmem:[%s404 + $0x10] sm:$0xf]
      %v1534 = vld [vmem:[%s404 + $0x18] sm:$0xff]
      %v1535 = vld [vmem:[%s404 + $0x20] sm:$0xff]
      %v1536 = vld [vmem:[%s404 + $0x28] sm:$0xf]
      %v1537 = vld [vmem:[%s404 + $0x30] sm:$0xff]
      %v1538 = vld [vmem:[%s404 + $0x38] sm:$0xff]
      %v1539 = vld [vmem:[%s404 + $0x40] sm:$0xf]
      %v1540 = vld [vmem:[%s404 + $0x48] sm:$0xff]
      %v1541 = vld [vmem:[%s404 + $0x50] sm:$0xff]
      %v1542 = vld [vmem:[%s404 + $0x58] sm:$0xf]
      %v1543 = vld [vmem:[%s404 + $0x60] sm:$0xff]
      %v1544 = vld [vmem:[%s404 + $0x68] sm:$0xff]
      %v1545 = vld [vmem:[%s404 + $0x70] sm:$0xf]
      %v1546 = vld [vmem:[%s404 + $0x78] sm:$0xff]
      %v1547 = vld [vmem:[%s404 + $0x80] sm:$0xff]
      %v1548 = vld [vmem:[%s404 + $0x88] sm:$0xf]
      %v1549 = vld [vmem:[%s404 + $0x90] sm:$0xff]
      %v1550 = vld [vmem:[%s404 + $0x98] sm:$0xff]
      %v1551 = vld [vmem:[%s404 + $0xa0] sm:$0xf]
      %v1552 = vld [vmem:[%s404 + $0xa8] sm:$0xff]
      %v1553 = vld [vmem:[%s404 + $0xb0] sm:$0xff]
      %v1554 = vld [vmem:[%s404 + $0xb8] sm:$0xf]
      %v1555 = vld [vmem:[%s404 + $0xc0] sm:$0xff]
      %v1556 = vld [vmem:[%s404 + $0xc8] sm:$0xff]
      %v1557 = vld [vmem:[%s404 + $0xd0] sm:$0xf]
      %v1558 = vld [vmem:[%s404 + $0xd8] sm:$0xff]
      %v1559 = vld [vmem:[%s404 + $0xe0] sm:$0xff]
      %v1560 = vld [vmem:[%s404 + $0xe8] sm:$0xf]
      %v1561 = vld [vmem:[%s404 + $0xf0] sm:$0xff]
      %v1562 = vld [vmem:[%s404 + $0xf8] sm:$0xff]
      %v1563 = vld [vmem:[%s404 + $0x100] sm:$0xf]
      %v1564 = vld [vmem:[%s404 + $0x108] sm:$0xff]
      %v1565 = vld [vmem:[%s404 + $0x110] sm:$0xff]
      %v1566 = vld [vmem:[%s404 + $0x118] sm:$0xf]
      %v1567 = vld [vmem:[%s404 + $0x120] sm:$0xff]
      %v1568 = vld [vmem:[%s404 + $0x128] sm:$0xff]
      %v1569 = vld [vmem:[%s404 + $0x130] sm:$0xf]
      %v1570 = vld [vmem:[%s404 + $0x138] sm:$0xff]
      %v1571 = vld [vmem:[%s404 + $0x140] sm:$0xff]
      %v1572 = vld [vmem:[%s404 + $0x148] sm:$0xf]
      %v1573 = vld [vmem:[%s404 + $0x150] sm:$0xff]
      %v1574 = vld [vmem:[%s404 + $0x158] sm:$0xff]
      %v1575 = vld [vmem:[%s404 + $0x160] sm:$0xf]
      %v1576 = vld [vmem:[%s404 + $0x168] sm:$0xff]
      %v1577 = vld [vmem:[%s404 + $0x170] sm:$0xff]
      %v1578 = vld [vmem:[%s404 + $0x178] sm:$0xf]
      %v1579 = vmax.f32 %v1483, %v1531
      %v1580 = vmax.f32 %v1484, %v1532
      %v1581 = vmax.f32 %v1485, %v1533
      %v1582 = vmax.f32 %v1486, %v1534
      %v1583 = vmax.f32 %v1487, %v1535
      %v1584 = vmax.f32 %v1488, %v1536
      %v1585 = vmax.f32 %v1489, %v1537
      %v1586 = vmax.f32 %v1490, %v1538
      %v1587 = vmax.f32 %v1491, %v1539
      %v1588 = vmax.f32 %v1492, %v1540
      %v1589 = vmax.f32 %v1493, %v1541
      %v1590 = vmax.f32 %v1494, %v1542
      %v1591 = vmax.f32 %v1495, %v1543
      %v1592 = vmax.f32 %v1496, %v1544
      %v1593 = vmax.f32 %v1497, %v1545
      %v1594 = vmax.f32 %v1498, %v1546
      %v1595 = vmax.f32 %v1499, %v1547
      %v1596 = vmax.f32 %v1500, %v1548
      %v1597 = vmax.f32 %v1501, %v1549
      %v1598 = vmax.f32 %v1502, %v1550
      %v1599 = vmax.f32 %v1503, %v1551
      %v1600 = vmax.f32 %v1504, %v1552
      %v1601 = vmax.f32 %v1505, %v1553
      %v1602 = vmax.f32 %v1506, %v1554
      %v1603 = vmax.f32 %v1507, %v1555
      %v1604 = vmax.f32 %v1508, %v1556
      %v1605 = vmax.f32 %v1509, %v1557
      %v1606 = vmax.f32 %v1510, %v1558
      %v1607 = vmax.f32 %v1511, %v1559
      %v1608 = vmax.f32 %v1512, %v1560
      %v1609 = vmax.f32 %v1513, %v1561
      %v1610 = vmax.f32 %v1514, %v1562
      %v1611 = vmax.f32 %v1515, %v1563
      %v1612 = vmax.f32 %v1516, %v1564
      %v1613 = vmax.f32 %v1517, %v1565
      %v1614 = vmax.f32 %v1518, %v1566
      %v1615 = vmax.f32 %v1519, %v1567
      %v1616 = vmax.f32 %v1520, %v1568
      %v1617 = vmax.f32 %v1521, %v1569
      %v1618 = vmax.f32 %v1522, %v1570
      %v1619 = vmax.f32 %v1523, %v1571
      %v1620 = vmax.f32 %v1524, %v1572
      %v1621 = vmax.f32 %v1525, %v1573
      %v1622 = vmax.f32 %v1526, %v1574
      %v1623 = vmax.f32 %v1527, %v1575
      %v1624 = vmax.f32 %v1528, %v1576
      %v1625 = vmax.f32 %v1529, %v1577
      %v1626 = vmax.f32 %v1530, %v1578
      %v1627 = vld [vmem:[%s258] sm:$0xff]
      %v1628 = vld [vmem:[%s258 + $0x8] sm:$0xff]
      %v1629 = vld [vmem:[%s258 + $0x10] sm:$0xf]
      %v1630 = vld [vmem:[%s258 + $0x18] sm:$0xff]
      %v1631 = vld [vmem:[%s258 + $0x20] sm:$0xff]
      %v1632 = vld [vmem:[%s258 + $0x28] sm:$0xf]
      %v1633 = vld [vmem:[%s258 + $0x30] sm:$0xff]
      %v1634 = vld [vmem:[%s258 + $0x38] sm:$0xff]
      %v1635 = vld [vmem:[%s258 + $0x40] sm:$0xf]
      %v1636 = vld [vmem:[%s258 + $0x48] sm:$0xff]
      %v1637 = vld [vmem:[%s258 + $0x50] sm:$0xff]
      %v1638 = vld [vmem:[%s258 + $0x58] sm:$0xf]
      %v1639 = vld [vmem:[%s258 + $0x60] sm:$0xff]
      %v1640 = vld [vmem:[%s258 + $0x68] sm:$0xff]
      %v1641 = vld [vmem:[%s258 + $0x70] sm:$0xf]
      %v1642 = vld [vmem:[%s258 + $0x78] sm:$0xff]
      %v1643 = vld [vmem:[%s258 + $0x80] sm:$0xff]
      %v1644 = vld [vmem:[%s258 + $0x88] sm:$0xf]
      %v1645 = vld [vmem:[%s258 + $0x90] sm:$0xff]
      %v1646 = vld [vmem:[%s258 + $0x98] sm:$0xff]
      %v1647 = vld [vmem:[%s258 + $0xa0] sm:$0xf]
      %v1648 = vld [vmem:[%s258 + $0xa8] sm:$0xff]
      %v1649 = vld [vmem:[%s258 + $0xb0] sm:$0xff]
      %v1650 = vld [vmem:[%s258 + $0xb8] sm:$0xf]
      %v1651 = vld [vmem:[%s258 + $0xc0] sm:$0xff]
      %v1652 = vld [vmem:[%s258 + $0xc8] sm:$0xff]
      %v1653 = vld [vmem:[%s258 + $0xd0] sm:$0xf]
      %v1654 = vld [vmem:[%s258 + $0xd8] sm:$0xff]
      %v1655 = vld [vmem:[%s258 + $0xe0] sm:$0xff]
      %v1656 = vld [vmem:[%s258 + $0xe8] sm:$0xf]
      %v1657 = vld [vmem:[%s258 + $0xf0] sm:$0xff]
      %v1658 = vld [vmem:[%s258 + $0xf8] sm:$0xff]
      %v1659 = vld [vmem:[%s258 + $0x100] sm:$0xf]
      %v1660 = vld [vmem:[%s258 + $0x108] sm:$0xff]
      %v1661 = vld [vmem:[%s258 + $0x110] sm:$0xff]
      %v1662 = vld [vmem:[%s258 + $0x118] sm:$0xf]
      %v1663 = vld [vmem:[%s258 + $0x120] sm:$0xff]
      %v1664 = vld [vmem:[%s258 + $0x128] sm:$0xff]
      %v1665 = vld [vmem:[%s258 + $0x130] sm:$0xf]
      %v1666 = vld [vmem:[%s258 + $0x138] sm:$0xff]
      %v1667 = vld [vmem:[%s258 + $0x140] sm:$0xff]
      %v1668 = vld [vmem:[%s258 + $0x148] sm:$0xf]
      %v1669 = vld [vmem:[%s258 + $0x150] sm:$0xff]
      %v1670 = vld [vmem:[%s258 + $0x158] sm:$0xff]
      %v1671 = vld [vmem:[%s258 + $0x160] sm:$0xf]
      %v1672 = vld [vmem:[%s258 + $0x168] sm:$0xff]
      %v1673 = vld [vmem:[%s258 + $0x170] sm:$0xff]
      %v1674 = vld [vmem:[%s258 + $0x178] sm:$0xf]
      %v1675 = vmax.f32 %v1579, %v1627
      %v1676 = vmax.f32 %v1580, %v1628
      %v1677 = vmax.f32 %v1581, %v1629
      %v1678 = vmax.f32 %v1582, %v1630
      %v1679 = vmax.f32 %v1583, %v1631
      %v1680 = vmax.f32 %v1584, %v1632
      %v1681 = vmax.f32 %v1585, %v1633
      %v1682 = vmax.f32 %v1586, %v1634
      %v1683 = vmax.f32 %v1587, %v1635
      %v1684 = vmax.f32 %v1588, %v1636
      %v1685 = vmax.f32 %v1589, %v1637
      %v1686 = vmax.f32 %v1590, %v1638
      %v1687 = vmax.f32 %v1591, %v1639
      %v1688 = vmax.f32 %v1592, %v1640
      %v1689 = vmax.f32 %v1593, %v1641
      %v1690 = vmax.f32 %v1594, %v1642
      %v1691 = vmax.f32 %v1595, %v1643
      %v1692 = vmax.f32 %v1596, %v1644
      %v1693 = vmax.f32 %v1597, %v1645
      %v1694 = vmax.f32 %v1598, %v1646
      %v1695 = vmax.f32 %v1599, %v1647
      %v1696 = vmax.f32 %v1600, %v1648
      %v1697 = vmax.f32 %v1601, %v1649
      %v1698 = vmax.f32 %v1602, %v1650
      %v1699 = vmax.f32 %v1603, %v1651
      %v1700 = vmax.f32 %v1604, %v1652
      %v1701 = vmax.f32 %v1605, %v1653
      %v1702 = vmax.f32 %v1606, %v1654
      %v1703 = vmax.f32 %v1607, %v1655
      %v1704 = vmax.f32 %v1608, %v1656
      %v1705 = vmax.f32 %v1609, %v1657
      %v1706 = vmax.f32 %v1610, %v1658
      %v1707 = vmax.f32 %v1611, %v1659
      %v1708 = vmax.f32 %v1612, %v1660
      %v1709 = vmax.f32 %v1613, %v1661
      %v1710 = vmax.f32 %v1614, %v1662
      %v1711 = vmax.f32 %v1615, %v1663
      %v1712 = vmax.f32 %v1616, %v1664
      %v1713 = vmax.f32 %v1617, %v1665
      %v1714 = vmax.f32 %v1618, %v1666
      %v1715 = vmax.f32 %v1619, %v1667
      %v1716 = vmax.f32 %v1620, %v1668
      %v1717 = vmax.f32 %v1621, %v1669
      %v1718 = vmax.f32 %v1622, %v1670
      %v1719 = vmax.f32 %v1623, %v1671
      %v1720 = vmax.f32 %v1624, %v1672
      %v1721 = vmax.f32 %v1625, %v1673
      %v1722 = vmax.f32 %v1626, %v1674
      %v1723 = vld [vmem:[%s597] sm:$0xff]
      %v1724 = vld [vmem:[%s597 + $0x8] sm:$0xff]
      %v1725 = vld [vmem:[%s597 + $0x10] sm:$0xf]
      %v1726 = vld [vmem:[%s597 + $0x18] sm:$0xff]
      %v1727 = vld [vmem:[%s597 + $0x20] sm:$0xff]
      %v1728 = vld [vmem:[%s597 + $0x28] sm:$0xf]
      %v1729 = vld [vmem:[%s597 + $0x30] sm:$0xff]
      %v1730 = vld [vmem:[%s597 + $0x38] sm:$0xff]
      %v1731 = vld [vmem:[%s597 + $0x40] sm:$0xf]
      %v1732 = vld [vmem:[%s597 + $0x48] sm:$0xff]
      %v1733 = vld [vmem:[%s597 + $0x50] sm:$0xff]
      %v1734 = vld [vmem:[%s597 + $0x58] sm:$0xf]
      %v1735 = vld [vmem:[%s597 + $0x60] sm:$0xff]
      %v1736 = vld [vmem:[%s597 + $0x68] sm:$0xff]
      %v1737 = vld [vmem:[%s597 + $0x70] sm:$0xf]
      %v1738 = vld [vmem:[%s597 + $0x78] sm:$0xff]
      %v1739 = vld [vmem:[%s597 + $0x80] sm:$0xff]
      %v1740 = vld [vmem:[%s597 + $0x88] sm:$0xf]
      %v1741 = vld [vmem:[%s597 + $0x90] sm:$0xff]
      %v1742 = vld [vmem:[%s597 + $0x98] sm:$0xff]
      %v1743 = vld [vmem:[%s597 + $0xa0] sm:$0xf]
      %v1744 = vld [vmem:[%s597 + $0xa8] sm:$0xff]
      %v1745 = vld [vmem:[%s597 + $0xb0] sm:$0xff]
      %v1746 = vld [vmem:[%s597 + $0xb8] sm:$0xf]
      %v1747 = vld [vmem:[%s597 + $0xc0] sm:$0xff]
      %v1748 = vld [vmem:[%s597 + $0xc8] sm:$0xff]
      %v1749 = vld [vmem:[%s597 + $0xd0] sm:$0xf]
      %v1750 = vld [vmem:[%s597 + $0xd8] sm:$0xff]
      %v1751 = vld [vmem:[%s597 + $0xe0] sm:$0xff]
      %v1752 = vld [vmem:[%s597 + $0xe8] sm:$0xf]
      %v1753 = vld [vmem:[%s597 + $0xf0] sm:$0xff]
      %v1754 = vld [vmem:[%s597 + $0xf8] sm:$0xff]
      %v1755 = vld [vmem:[%s597 + $0x100] sm:$0xf]
      %v1756 = vld [vmem:[%s597 + $0x108] sm:$0xff]
      %v1757 = vld [vmem:[%s597 + $0x110] sm:$0xff]
      %v1758 = vld [vmem:[%s597 + $0x118] sm:$0xf]
      %v1759 = vld [vmem:[%s597 + $0x120] sm:$0xff]
      %v1760 = vld [vmem:[%s597 + $0x128] sm:$0xff]
      %v1761 = vld [vmem:[%s597 + $0x130] sm:$0xf]
      %v1762 = vld [vmem:[%s597 + $0x138] sm:$0xff]
      %v1763 = vld [vmem:[%s597 + $0x140] sm:$0xff]
      %v1764 = vld [vmem:[%s597 + $0x148] sm:$0xf]
      %v1765 = vld [vmem:[%s597 + $0x150] sm:$0xff]
      %v1766 = vld [vmem:[%s597 + $0x158] sm:$0xff]
      %v1767 = vld [vmem:[%s597 + $0x160] sm:$0xf]
      %v1768 = vld [vmem:[%s597 + $0x168] sm:$0xff]
      %v1769 = vld [vmem:[%s597 + $0x170] sm:$0xff]
      %v1770 = vld [vmem:[%s597 + $0x178] sm:$0xf]
      %v1771 = vmax.f32 %v1675, %v1723
      %v1772 = vmax.f32 %v1676, %v1724
      %v1773 = vmax.f32 %v1677, %v1725
      %v1774 = vmax.f32 %v1678, %v1726
      %v1775 = vmax.f32 %v1679, %v1727
      %v1776 = vmax.f32 %v1680, %v1728
      %v1777 = vmax.f32 %v1681, %v1729
      %v1778 = vmax.f32 %v1682, %v1730
      %v1779 = vmax.f32 %v1683, %v1731
      %v1780 = vmax.f32 %v1684, %v1732
      %v1781 = vmax.f32 %v1685, %v1733
      %v1782 = vmax.f32 %v1686, %v1734
      %v1783 = vmax.f32 %v1687, %v1735
      %v1784 = vmax.f32 %v1688, %v1736
      %v1785 = vmax.f32 %v1689, %v1737
      %v1786 = vmax.f32 %v1690, %v1738
      %v1787 = vmax.f32 %v1691, %v1739
      %v1788 = vmax.f32 %v1692, %v1740
      %v1789 = vmax.f32 %v1693, %v1741
      %v1790 = vmax.f32 %v1694, %v1742
      %v1791 = vmax.f32 %v1695, %v1743
      %v1792 = vmax.f32 %v1696, %v1744
      %v1793 = vmax.f32 %v1697, %v1745
      %v1794 = vmax.f32 %v1698, %v1746
      %v1795 = vmax.f32 %v1699, %v1747
      %v1796 = vmax.f32 %v1700, %v1748
      %v1797 = vmax.f32 %v1701, %v1749
      %v1798 = vmax.f32 %v1702, %v1750
      %v1799 = vmax.f32 %v1703, %v1751
      %v1800 = vmax.f32 %v1704, %v1752
      %v1801 = vmax.f32 %v1705, %v1753
      %v1802 = vmax.f32 %v1706, %v1754
      %v1803 = vmax.f32 %v1707, %v1755
      %v1804 = vmax.f32 %v1708, %v1756
      %v1805 = vmax.f32 %v1709, %v1757
      %v1806 = vmax.f32 %v1710, %v1758
      %v1807 = vmax.f32 %v1711, %v1759
      %v1808 = vmax.f32 %v1712, %v1760
      %v1809 = vmax.f32 %v1713, %v1761
      %v1810 = vmax.f32 %v1714, %v1762
      %v1811 = vmax.f32 %v1715, %v1763
      %v1812 = vmax.f32 %v1716, %v1764
      %v1813 = vmax.f32 %v1717, %v1765
      %v1814 = vmax.f32 %v1718, %v1766
      %v1815 = vmax.f32 %v1719, %v1767
      %v1816 = vmax.f32 %v1720, %v1768
      %v1817 = vmax.f32 %v1721, %v1769
      %v1818 = vmax.f32 %v1722, %v1770
      %v1819 = vld [vmem:[%s694] sm:$0xff]
      %v1820 = vld [vmem:[%s694 + $0x8] sm:$0xff]
      %v1821 = vld [vmem:[%s694 + $0x10] sm:$0xf]
      %v1822 = vld [vmem:[%s694 + $0x18] sm:$0xff]
      %v1823 = vld [vmem:[%s694 + $0x20] sm:$0xff]
      %v1824 = vld [vmem:[%s694 + $0x28] sm:$0xf]
      %v1825 = vld [vmem:[%s694 + $0x30] sm:$0xff]
      %v1826 = vld [vmem:[%s694 + $0x38] sm:$0xff]
      %v1827 = vld [vmem:[%s694 + $0x40] sm:$0xf]
      %v1828 = vld [vmem:[%s694 + $0x48] sm:$0xff]
      %v1829 = vld [vmem:[%s694 + $0x50] sm:$0xff]
      %v1830 = vld [vmem:[%s694 + $0x58] sm:$0xf]
      %v1831 = vld [vmem:[%s694 + $0x60] sm:$0xff]
      %v1832 = vld [vmem:[%s694 + $0x68] sm:$0xff]
      %v1833 = vld [vmem:[%s694 + $0x70] sm:$0xf]
      %v1834 = vld [vmem:[%s694 + $0x78] sm:$0xff]
      %v1835 = vld [vmem:[%s694 + $0x80] sm:$0xff]
      %v1836 = vld [vmem:[%s694 + $0x88] sm:$0xf]
      %v1837 = vld [vmem:[%s694 + $0x90] sm:$0xff]
      %v1838 = vld [vmem:[%s694 + $0x98] sm:$0xff]
      %v1839 = vld [vmem:[%s694 + $0xa0] sm:$0xf]
      %v1840 = vld [vmem:[%s694 + $0xa8] sm:$0xff]
      %v1841 = vld [vmem:[%s694 + $0xb0] sm:$0xff]
      %v1842 = vld [vmem:[%s694 + $0xb8] sm:$0xf]
      %v1843 = vld [vmem:[%s694 + $0xc0] sm:$0xff]
      %v1844 = vld [vmem:[%s694 + $0xc8] sm:$0xff]
      %v1845 = vld [vmem:[%s694 + $0xd0] sm:$0xf]
      %v1846 = vld [vmem:[%s694 + $0xd8] sm:$0xff]
      %v1847 = vld [vmem:[%s694 + $0xe0] sm:$0xff]
      %v1848 = vld [vmem:[%s694 + $0xe8] sm:$0xf]
      %v1849 = vld [vmem:[%s694 + $0xf0] sm:$0xff]
      %v1850 = vld [vmem:[%s694 + $0xf8] sm:$0xff]
      %v1851 = vld [vmem:[%s694 + $0x100] sm:$0xf]
      %v1852 = vld [vmem:[%s694 + $0x108] sm:$0xff]
      %v1853 = vld [vmem:[%s694 + $0x110] sm:$0xff]
      %v1854 = vld [vmem:[%s694 + $0x118] sm:$0xf]
      %v1855 = vld [vmem:[%s694 + $0x120] sm:$0xff]
      %v1856 = vld [vmem:[%s694 + $0x128] sm:$0xff]
      %v1857 = vld [vmem:[%s694 + $0x130] sm:$0xf]
      %v1858 = vld [vmem:[%s694 + $0x138] sm:$0xff]
      %v1859 = vld [vmem:[%s694 + $0x140] sm:$0xff]
      %v1860 = vld [vmem:[%s694 + $0x148] sm:$0xf]
      %v1861 = vld [vmem:[%s694 + $0x150] sm:$0xff]
      %v1862 = vld [vmem:[%s694 + $0x158] sm:$0xff]
      %v1863 = vld [vmem:[%s694 + $0x160] sm:$0xf]
      %v1864 = vld [vmem:[%s694 + $0x168] sm:$0xff]
      %v1865 = vld [vmem:[%s694 + $0x170] sm:$0xff]
      %v1866 = vld [vmem:[%s694 + $0x178] sm:$0xf]
      %v1867 = vmax.f32 %v1771, %v1819
      %v1868 = vmax.f32 %v1772, %v1820
      %v1869 = vmax.f32 %v1773, %v1821
      %v1870 = vmax.f32 %v1774, %v1822
      %v1871 = vmax.f32 %v1775, %v1823
      %v1872 = vmax.f32 %v1776, %v1824
      %v1873 = vmax.f32 %v1777, %v1825
      %v1874 = vmax.f32 %v1778, %v1826
      %v1875 = vmax.f32 %v1779, %v1827
      %v1876 = vmax.f32 %v1780, %v1828
      %v1877 = vmax.f32 %v1781, %v1829
      %v1878 = vmax.f32 %v1782, %v1830
      %v1879 = vmax.f32 %v1783, %v1831
      %v1880 = vmax.f32 %v1784, %v1832
      %v1881 = vmax.f32 %v1785, %v1833
      %v1882 = vmax.f32 %v1786, %v1834
      %v1883 = vmax.f32 %v1787, %v1835
      %v1884 = vmax.f32 %v1788, %v1836
      %v1885 = vmax.f32 %v1789, %v1837
      %v1886 = vmax.f32 %v1790, %v1838
      %v1887 = vmax.f32 %v1791, %v1839
      %v1888 = vmax.f32 %v1792, %v1840
      %v1889 = vmax.f32 %v1793, %v1841
      %v1890 = vmax.f32 %v1794, %v1842
      %v1891 = vmax.f32 %v1795, %v1843
      %v1892 = vmax.f32 %v1796, %v1844
      %v1893 = vmax.f32 %v1797, %v1845
      %v1894 = vmax.f32 %v1798, %v1846
      %v1895 = vmax.f32 %v1799, %v1847
      %v1896 = vmax.f32 %v1800, %v1848
      %v1897 = vmax.f32 %v1801, %v1849
      %v1898 = vmax.f32 %v1802, %v1850
      %v1899 = vmax.f32 %v1803, %v1851
      %v1900 = vmax.f32 %v1804, %v1852
      %v1901 = vmax.f32 %v1805, %v1853
      %v1902 = vmax.f32 %v1806, %v1854
      %v1903 = vmax.f32 %v1807, %v1855
      %v1904 = vmax.f32 %v1808, %v1856
      %v1905 = vmax.f32 %v1809, %v1857
      %v1906 = vmax.f32 %v1810, %v1858
      %v1907 = vmax.f32 %v1811, %v1859
      %v1908 = vmax.f32 %v1812, %v1860
      %v1909 = vmax.f32 %v1813, %v1861
      %v1910 = vmax.f32 %v1814, %v1862
      %v1911 = vmax.f32 %v1815, %v1863
      %v1912 = vmax.f32 %v1816, %v1864
      %v1913 = vmax.f32 %v1817, %v1865
      %v1914 = vmax.f32 %v1818, %v1866
      %v1963 = vrot.slane %v1867, 1
      %v1964 = vrot.slane %v1868, 1
      %v1965 = vsel %vm839, %v1963, %v1964
      %v1966 = vrot.slane %v1869, 1
      %v1967 = vsel %vm839, %v1964, %v1966
      %v1968 = vrot.slane %v1870, 1
      %v1969 = vrot.slane %v1871, 1
      %v1970 = vsel %vm839, %v1968, %v1969
      %v1971 = vrot.slane %v1872, 1
      %v1972 = vsel %vm839, %v1969, %v1971
      %v1973 = vrot.slane %v1873, 1
      %v1974 = vrot.slane %v1874, 1
      %v1975 = vsel %vm839, %v1973, %v1974
      %v1976 = vrot.slane %v1875, 1
      %v1977 = vsel %vm839, %v1974, %v1976
      %v1978 = vrot.slane %v1876, 1
      %v1979 = vrot.slane %v1877, 1
      %v1980 = vsel %vm839, %v1978, %v1979
      %v1981 = vrot.slane %v1878, 1
      %v1982 = vsel %vm839, %v1979, %v1981
      %v1983 = vrot.slane %v1879, 1
      %v1984 = vrot.slane %v1880, 1
      %v1985 = vsel %vm839, %v1983, %v1984
      %v1986 = vrot.slane %v1881, 1
      %v1987 = vsel %vm839, %v1984, %v1986
      %v1988 = vrot.slane %v1882, 1
      %v1989 = vrot.slane %v1883, 1
      %v1990 = vsel %vm839, %v1988, %v1989
      %v1991 = vrot.slane %v1884, 1
      %v1992 = vsel %vm839, %v1989, %v1991
      %v1993 = vrot.slane %v1885, 1
      %v1994 = vrot.slane %v1886, 1
      %v1995 = vsel %vm839, %v1993, %v1994
      %v1996 = vrot.slane %v1887, 1
      %v1997 = vsel %vm839, %v1994, %v1996
      %v1998 = vrot.slane %v1888, 1
      %v1999 = vrot.slane %v1889, 1
      %v2000 = vsel %vm839, %v1998, %v1999
      %v2001 = vrot.slane %v1890, 1
      %v2002 = vsel %vm839, %v1999, %v2001
      %v2003 = vrot.slane %v1891, 1
      %v2004 = vrot.slane %v1892, 1
      %v2005 = vsel %vm839, %v2003, %v2004
      %v2006 = vrot.slane %v1893, 1
      %v2007 = vsel %vm839, %v2004, %v2006
      %v2008 = vrot.slane %v1894, 1
      %v2009 = vrot.slane %v1895, 1
      %v2010 = vsel %vm839, %v2008, %v2009
      %v2011 = vrot.slane %v1896, 1
      %v2012 = vsel %vm839, %v2009, %v2011
      %v2013 = vrot.slane %v1897, 1
      %v2014 = vrot.slane %v1898, 1
      %v2015 = vsel %vm839, %v2013, %v2014
      %v2016 = vrot.slane %v1899, 1
      %v2017 = vsel %vm839, %v2014, %v2016
      %v2018 = vrot.slane %v1900, 1
      %v2019 = vrot.slane %v1901, 1
      %v2020 = vsel %vm839, %v2018, %v2019
      %v2021 = vrot.slane %v1902, 1
      %v2022 = vsel %vm839, %v2019, %v2021
      %v2023 = vrot.slane %v1903, 1
      %v2024 = vrot.slane %v1904, 1
      %v2025 = vsel %vm839, %v2023, %v2024
      %v2026 = vrot.slane %v1905, 1
      %v2027 = vsel %vm839, %v2024, %v2026
      %v2028 = vrot.slane %v1906, 1
      %v2029 = vrot.slane %v1907, 1
      %v2030 = vsel %vm839, %v2028, %v2029
      %v2031 = vrot.slane %v1908, 1
      %v2032 = vsel %vm839, %v2029, %v2031
      %v2033 = vrot.slane %v1909, 1
      %v2034 = vrot.slane %v1910, 1
      %v2035 = vsel %vm839, %v2033, %v2034
      %v2036 = vrot.slane %v1911, 1
      %v2037 = vsel %vm839, %v2034, %v2036
      %v2038 = vrot.slane %v1912, 1
      %v2039 = vrot.slane %v1913, 1
      %v2040 = vsel %vm839, %v2038, %v2039
      %v2041 = vrot.slane %v1914, 1
      %v2042 = vsel %vm839, %v2039, %v2041
      %v2075 = vmax.f32 %v1867, %v1965
      %v2076 = vmax.f32 %v1868, %v1967
      %v2077 = vmax.f32 %v1870, %v1970
      %v2078 = vmax.f32 %v1871, %v1972
      %v2079 = vmax.f32 %v1873, %v1975
      %v2080 = vmax.f32 %v1874, %v1977
      %v2081 = vmax.f32 %v1876, %v1980
      %v2082 = vmax.f32 %v1877, %v1982
      %v2083 = vmax.f32 %v1879, %v1985
      %v2084 = vmax.f32 %v1880, %v1987
      %v2085 = vmax.f32 %v1882, %v1990
      %v2086 = vmax.f32 %v1883, %v1992
      %v2087 = vmax.f32 %v1885, %v1995
      %v2088 = vmax.f32 %v1886, %v1997
      %v2089 = vmax.f32 %v1888, %v2000
      %v2090 = vmax.f32 %v1889, %v2002
      %v2091 = vmax.f32 %v1891, %v2005
      %v2092 = vmax.f32 %v1892, %v2007
      %v2093 = vmax.f32 %v1894, %v2010
      %v2094 = vmax.f32 %v1895, %v2012
      %v2095 = vmax.f32 %v1897, %v2015
      %v2096 = vmax.f32 %v1898, %v2017
      %v2097 = vmax.f32 %v1900, %v2020
      %v2098 = vmax.f32 %v1901, %v2022
      %v2099 = vmax.f32 %v1903, %v2025
      %v2100 = vmax.f32 %v1904, %v2027
      %v2101 = vmax.f32 %v1906, %v2030
      %v2102 = vmax.f32 %v1907, %v2032
      %v2103 = vmax.f32 %v1909, %v2035
      %v2104 = vmax.f32 %v1910, %v2037
      %v2105 = vmax.f32 %v1912, %v2040
      %v2106 = vmax.f32 %v1913, %v2042
      %v2107 = vrot.slane %v1867, 2
      %v2108 = vrot.slane %v1868, 2
      %v2109 = vsel %vm984, %v2107, %v2108
      %v2110 = vrot.slane %v1869, 2
      %v2111 = vsel %vm984, %v2108, %v2110
      %v2112 = vrot.slane %v1870, 2
      %v2113 = vrot.slane %v1871, 2
      %v2114 = vsel %vm984, %v2112, %v2113
      %v2115 = vrot.slane %v1872, 2
      %v2116 = vsel %vm984, %v2113, %v2115
      %v2117 = vrot.slane %v1873, 2
      %v2118 = vrot.slane %v1874, 2
      %v2119 = vsel %vm984, %v2117, %v2118
      %v2120 = vrot.slane %v1875, 2
      %v2121 = vsel %vm984, %v2118, %v2120
      %v2122 = vrot.slane %v1876, 2
      %v2123 = vrot.slane %v1877, 2
      %v2124 = vsel %vm984, %v2122, %v2123
      %v2125 = vrot.slane %v1878, 2
      %v2126 = vsel %vm984, %v2123, %v2125
      %v2127 = vrot.slane %v1879, 2
      %v2128 = vrot.slane %v1880, 2
      %v2129 = vsel %vm984, %v2127, %v2128
      %v2130 = vrot.slane %v1881, 2
      %v2131 = vsel %vm984, %v2128, %v2130
      %v2132 = vrot.slane %v1882, 2
      %v2133 = vrot.slane %v1883, 2
      %v2134 = vsel %vm984, %v2132, %v2133
      %v2135 = vrot.slane %v1884, 2
      %v2136 = vsel %vm984, %v2133, %v2135
      %v2137 = vrot.slane %v1885, 2
      %v2138 = vrot.slane %v1886, 2
      %v2139 = vsel %vm984, %v2137, %v2138
      %v2140 = vrot.slane %v1887, 2
      %v2141 = vsel %vm984, %v2138, %v2140
      %v2142 = vrot.slane %v1888, 2
      %v2143 = vrot.slane %v1889, 2
      %v2144 = vsel %vm984, %v2142, %v2143
      %v2145 = vrot.slane %v1890, 2
      %v2146 = vsel %vm984, %v2143, %v2145
      %v2147 = vrot.slane %v1891, 2
      %v2148 = vrot.slane %v1892, 2
      %v2149 = vsel %vm984, %v2147, %v2148
      %v2150 = vrot.slane %v1893, 2
      %v2151 = vsel %vm984, %v2148, %v2150
      %v2152 = vrot.slane %v1894, 2
      %v2153 = vrot.slane %v1895, 2
      %v2154 = vsel %vm984, %v2152, %v2153
      %v2155 = vrot.slane %v1896, 2
      %v2156 = vsel %vm984, %v2153, %v2155
      %v2157 = vrot.slane %v1897, 2
      %v2158 = vrot.slane %v1898, 2
      %v2159 = vsel %vm984, %v2157, %v2158
      %v2160 = vrot.slane %v1899, 2
      %v2161 = vsel %vm984, %v2158, %v2160
      %v2162 = vrot.slane %v1900, 2
      %v2163 = vrot.slane %v1901, 2
      %v2164 = vsel %vm984, %v2162, %v2163
      %v2165 = vrot.slane %v1902, 2
      %v2166 = vsel %vm984, %v2163, %v2165
      %v2167 = vrot.slane %v1903, 2
      %v2168 = vrot.slane %v1904, 2
      %v2169 = vsel %vm984, %v2167, %v2168
      %v2170 = vrot.slane %v1905, 2
      %v2171 = vsel %vm984, %v2168, %v2170
      %v2172 = vrot.slane %v1906, 2
      %v2173 = vrot.slane %v1907, 2
      %v2174 = vsel %vm984, %v2172, %v2173
      %v2175 = vrot.slane %v1908, 2
      %v2176 = vsel %vm984, %v2173, %v2175
      %v2177 = vrot.slane %v1909, 2
      %v2178 = vrot.slane %v1910, 2
      %v2179 = vsel %vm984, %v2177, %v2178
      %v2180 = vrot.slane %v1911, 2
      %v2181 = vsel %vm984, %v2178, %v2180
      %v2182 = vrot.slane %v1912, 2
      %v2183 = vrot.slane %v1913, 2
      %v2184 = vsel %vm984, %v2182, %v2183
      %v2185 = vrot.slane %v1914, 2
      %v2186 = vsel %vm984, %v2183, %v2185
      %v2219 = vmax.f32 %v2075, %v2109
      %v2220 = vmax.f32 %v2076, %v2111
      %v2221 = vmax.f32 %v2077, %v2114
      %v2222 = vmax.f32 %v2078, %v2116
      %v2223 = vmax.f32 %v2079, %v2119
      %v2224 = vmax.f32 %v2080, %v2121
      %v2225 = vmax.f32 %v2081, %v2124
      %v2226 = vmax.f32 %v2082, %v2126
      %v2227 = vmax.f32 %v2083, %v2129
      %v2228 = vmax.f32 %v2084, %v2131
      %v2229 = vmax.f32 %v2085, %v2134
      %v2230 = vmax.f32 %v2086, %v2136
      %v2231 = vmax.f32 %v2087, %v2139
      %v2232 = vmax.f32 %v2088, %v2141
      %v2233 = vmax.f32 %v2089, %v2144
      %v2234 = vmax.f32 %v2090, %v2146
      %v2235 = vmax.f32 %v2091, %v2149
      %v2236 = vmax.f32 %v2092, %v2151
      %v2237 = vmax.f32 %v2093, %v2154
      %v2238 = vmax.f32 %v2094, %v2156
      %v2239 = vmax.f32 %v2095, %v2159
      %v2240 = vmax.f32 %v2096, %v2161
      %v2241 = vmax.f32 %v2097, %v2164
      %v2242 = vmax.f32 %v2098, %v2166
      %v2243 = vmax.f32 %v2099, %v2169
      %v2244 = vmax.f32 %v2100, %v2171
      %v2245 = vmax.f32 %v2101, %v2174
      %v2246 = vmax.f32 %v2102, %v2176
      %v2247 = vmax.f32 %v2103, %v2179
      %v2248 = vmax.f32 %v2104, %v2181
      %v2249 = vmax.f32 %v2105, %v2184
      %v2250 = vmax.f32 %v2106, %v2186
      %v2251 = vrot.slane %v1867, 3
      %v2252 = vrot.slane %v1868, 3
      %v2253 = vsel %vm1129, %v2251, %v2252
      %v2254 = vrot.slane %v1869, 3
      %v2255 = vsel %vm1129, %v2252, %v2254
      %v2256 = vrot.slane %v1870, 3
      %v2257 = vrot.slane %v1871, 3
      %v2258 = vsel %vm1129, %v2256, %v2257
      %v2259 = vrot.slane %v1872, 3
      %v2260 = vsel %vm1129, %v2257, %v2259
      %v2261 = vrot.slane %v1873, 3
      %v2262 = vrot.slane %v1874, 3
      %v2263 = vsel %vm1129, %v2261, %v2262
      %v2264 = vrot.slane %v1875, 3
      %v2265 = vsel %vm1129, %v2262, %v2264
      %v2266 = vrot.slane %v1876, 3
      %v2267 = vrot.slane %v1877, 3
      %v2268 = vsel %vm1129, %v2266, %v2267
      %v2269 = vrot.slane %v1878, 3
      %v2270 = vsel %vm1129, %v2267, %v2269
      %v2271 = vrot.slane %v1879, 3
      %v2272 = vrot.slane %v1880, 3
      %v2273 = vsel %vm1129, %v2271, %v2272
      %v2274 = vrot.slane %v1881, 3
      %v2275 = vsel %vm1129, %v2272, %v2274
      %v2276 = vrot.slane %v1882, 3
      %v2277 = vrot.slane %v1883, 3
      %v2278 = vsel %vm1129, %v2276, %v2277
      %v2279 = vrot.slane %v1884, 3
      %v2280 = vsel %vm1129, %v2277, %v2279
      %v2281 = vrot.slane %v1885, 3
      %v2282 = vrot.slane %v1886, 3
      %v2283 = vsel %vm1129, %v2281, %v2282
      %v2284 = vrot.slane %v1887, 3
      %v2285 = vsel %vm1129, %v2282, %v2284
      %v2286 = vrot.slane %v1888, 3
      %v2287 = vrot.slane %v1889, 3
      %v2288 = vsel %vm1129, %v2286, %v2287
      %v2289 = vrot.slane %v1890, 3
      %v2290 = vsel %vm1129, %v2287, %v2289
      %v2291 = vrot.slane %v1891, 3
      %v2292 = vrot.slane %v1892, 3
      %v2293 = vsel %vm1129, %v2291, %v2292
      %v2294 = vrot.slane %v1893, 3
      %v2295 = vsel %vm1129, %v2292, %v2294
      %v2296 = vrot.slane %v1894, 3
      %v2297 = vrot.slane %v1895, 3
      %v2298 = vsel %vm1129, %v2296, %v2297
      %v2299 = vrot.slane %v1896, 3
      %v2300 = vsel %vm1129, %v2297, %v2299
      %v2301 = vrot.slane %v1897, 3
      %v2302 = vrot.slane %v1898, 3
      %v2303 = vsel %vm1129, %v2301, %v2302
      %v2304 = vrot.slane %v1899, 3
      %v2305 = vsel %vm1129, %v2302, %v2304
      %v2306 = vrot.slane %v1900, 3
      %v2307 = vrot.slane %v1901, 3
      %v2308 = vsel %vm1129, %v2306, %v2307
      %v2309 = vrot.slane %v1902, 3
      %v2310 = vsel %vm1129, %v2307, %v2309
      %v2311 = vrot.slane %v1903, 3
      %v2312 = vrot.slane %v1904, 3
      %v2313 = vsel %vm1129, %v2311, %v2312
      %v2314 = vrot.slane %v1905, 3
      %v2315 = vsel %vm1129, %v2312, %v2314
      %v2316 = vrot.slane %v1906, 3
      %v2317 = vrot.slane %v1907, 3
      %v2318 = vsel %vm1129, %v2316, %v2317
      %v2319 = vrot.slane %v1908, 3
      %v2320 = vsel %vm1129, %v2317, %v2319
      %v2321 = vrot.slane %v1909, 3
      %v2322 = vrot.slane %v1910, 3
      %v2323 = vsel %vm1129, %v2321, %v2322
      %v2324 = vrot.slane %v1911, 3
      %v2325 = vsel %vm1129, %v2322, %v2324
      %v2326 = vrot.slane %v1912, 3
      %v2327 = vrot.slane %v1913, 3
      %v2328 = vsel %vm1129, %v2326, %v2327
      %v2329 = vrot.slane %v1914, 3
      %v2330 = vsel %vm1129, %v2327, %v2329
      %v2363 = vmax.f32 %v2219, %v2253
      %v2364 = vmax.f32 %v2220, %v2255
      %v2365 = vmax.f32 %v2221, %v2258
      %v2366 = vmax.f32 %v2222, %v2260
      %v2367 = vmax.f32 %v2223, %v2263
      %v2368 = vmax.f32 %v2224, %v2265
      %v2369 = vmax.f32 %v2225, %v2268
      %v2370 = vmax.f32 %v2226, %v2270
      %v2371 = vmax.f32 %v2227, %v2273
      %v2372 = vmax.f32 %v2228, %v2275
      %v2373 = vmax.f32 %v2229, %v2278
      %v2374 = vmax.f32 %v2230, %v2280
      %v2375 = vmax.f32 %v2231, %v2283
      %v2376 = vmax.f32 %v2232, %v2285
      %v2377 = vmax.f32 %v2233, %v2288
      %v2378 = vmax.f32 %v2234, %v2290
      %v2379 = vmax.f32 %v2235, %v2293
      %v2380 = vmax.f32 %v2236, %v2295
      %v2381 = vmax.f32 %v2237, %v2298
      %v2382 = vmax.f32 %v2238, %v2300
      %v2383 = vmax.f32 %v2239, %v2303
      %v2384 = vmax.f32 %v2240, %v2305
      %v2385 = vmax.f32 %v2241, %v2308
      %v2386 = vmax.f32 %v2242, %v2310
      %v2387 = vmax.f32 %v2243, %v2313
      %v2388 = vmax.f32 %v2244, %v2315
      %v2389 = vmax.f32 %v2245, %v2318
      %v2390 = vmax.f32 %v2246, %v2320
      %v2391 = vmax.f32 %v2247, %v2323
      %v2392 = vmax.f32 %v2248, %v2325
      %v2393 = vmax.f32 %v2249, %v2328
      %v2394 = vmax.f32 %v2250, %v2330
      %v2395 = vrot.slane %v1867, 4
      %v2396 = vrot.slane %v1868, 4
      %v2397 = vsel %vm1274, %v2395, %v2396
      %v2398 = vrot.slane %v1869, 4
      %v2399 = vsel %vm1274, %v2396, %v2398
      %v2400 = vrot.slane %v1870, 4
      %v2401 = vrot.slane %v1871, 4
      %v2402 = vsel %vm1274, %v2400, %v2401
      %v2403 = vrot.slane %v1872, 4
      %v2404 = vsel %vm1274, %v2401, %v2403
      %v2405 = vrot.slane %v1873, 4
      %v2406 = vrot.slane %v1874, 4
      %v2407 = vsel %vm1274, %v2405, %v2406
      %v2408 = vrot.slane %v1875, 4
      %v2409 = vsel %vm1274, %v2406, %v2408
      %v2410 = vrot.slane %v1876, 4
      %v2411 = vrot.slane %v1877, 4
      %v2412 = vsel %vm1274, %v2410, %v2411
      %v2413 = vrot.slane %v1878, 4
      %v2414 = vsel %vm1274, %v2411, %v2413
      %v2415 = vrot.slane %v1879, 4
      %v2416 = vrot.slane %v1880, 4
      %v2417 = vsel %vm1274, %v2415, %v2416
      %v2418 = vrot.slane %v1881, 4
      %v2419 = vsel %vm1274, %v2416, %v2418
      %v2420 = vrot.slane %v1882, 4
      %v2421 = vrot.slane %v1883, 4
      %v2422 = vsel %vm1274, %v2420, %v2421
      %v2423 = vrot.slane %v1884, 4
      %v2424 = vsel %vm1274, %v2421, %v2423
      %v2425 = vrot.slane %v1885, 4
      %v2426 = vrot.slane %v1886, 4
      %v2427 = vsel %vm1274, %v2425, %v2426
      %v2428 = vrot.slane %v1887, 4
      %v2429 = vsel %vm1274, %v2426, %v2428
      %v2430 = vrot.slane %v1888, 4
      %v2431 = vrot.slane %v1889, 4
      %v2432 = vsel %vm1274, %v2430, %v2431
      %v2433 = vrot.slane %v1890, 4
      %v2434 = vsel %vm1274, %v2431, %v2433
      %v2435 = vrot.slane %v1891, 4
      %v2436 = vrot.slane %v1892, 4
      %v2437 = vsel %vm1274, %v2435, %v2436
      %v2438 = vrot.slane %v1893, 4
      %v2439 = vsel %vm1274, %v2436, %v2438
      %v2440 = vrot.slane %v1894, 4
      %v2441 = vrot.slane %v1895, 4
      %v2442 = vsel %vm1274, %v2440, %v2441
      %v2443 = vrot.slane %v1896, 4
      %v2444 = vsel %vm1274, %v2441, %v2443
      %v2445 = vrot.slane %v1897, 4
      %v2446 = vrot.slane %v1898, 4
      %v2447 = vsel %vm1274, %v2445, %v2446
      %v2448 = vrot.slane %v1899, 4
      %v2449 = vsel %vm1274, %v2446, %v2448
      %v2450 = vrot.slane %v1900, 4
      %v2451 = vrot.slane %v1901, 4
      %v2452 = vsel %vm1274, %v2450, %v2451
      %v2453 = vrot.slane %v1902, 4
      %v2454 = vsel %vm1274, %v2451, %v2453
      %v2455 = vrot.slane %v1903, 4
      %v2456 = vrot.slane %v1904, 4
      %v2457 = vsel %vm1274, %v2455, %v2456
      %v2458 = vrot.slane %v1905, 4
      %v2459 = vsel %vm1274, %v2456, %v2458
      %v2460 = vrot.slane %v1906, 4
      %v2461 = vrot.slane %v1907, 4
      %v2462 = vsel %vm1274, %v2460, %v2461
      %v2463 = vrot.slane %v1908, 4
      %v2464 = vsel %vm1274, %v2461, %v2463
      %v2465 = vrot.slane %v1909, 4
      %v2466 = vrot.slane %v1910, 4
      %v2467 = vsel %vm1274, %v2465, %v2466
      %v2468 = vrot.slane %v1911, 4
      %v2469 = vsel %vm1274, %v2466, %v2468
      %v2470 = vrot.slane %v1912, 4
      %v2471 = vrot.slane %v1913, 4
      %v2472 = vsel %vm1274, %v2470, %v2471
      %v2473 = vrot.slane %v1914, 4
      %v2474 = vsel %vm1274, %v2471, %v2473
      %v2507 = vmax.f32 %v2363, %v2397
      %v2508 = vmax.f32 %v2364, %v2399
      %v2509 = vmax.f32 %v2365, %v2402
      %v2510 = vmax.f32 %v2366, %v2404
      %v2511 = vmax.f32 %v2367, %v2407
      %v2512 = vmax.f32 %v2368, %v2409
      %v2513 = vmax.f32 %v2369, %v2412
      %v2514 = vmax.f32 %v2370, %v2414
      %v2515 = vmax.f32 %v2371, %v2417
      %v2516 = vmax.f32 %v2372, %v2419
      %v2517 = vmax.f32 %v2373, %v2422
      %v2518 = vmax.f32 %v2374, %v2424
      %v2519 = vmax.f32 %v2375, %v2427
      %v2520 = vmax.f32 %v2376, %v2429
      %v2521 = vmax.f32 %v2377, %v2432
      %v2522 = vmax.f32 %v2378, %v2434
      %v2523 = vmax.f32 %v2379, %v2437
      %v2524 = vmax.f32 %v2380, %v2439
      %v2525 = vmax.f32 %v2381, %v2442
      %v2526 = vmax.f32 %v2382, %v2444
      %v2527 = vmax.f32 %v2383, %v2447
      %v2528 = vmax.f32 %v2384, %v2449
      %v2529 = vmax.f32 %v2385, %v2452
      %v2530 = vmax.f32 %v2386, %v2454
      %v2531 = vmax.f32 %v2387, %v2457
      %v2532 = vmax.f32 %v2388, %v2459
      %v2533 = vmax.f32 %v2389, %v2462
      %v2534 = vmax.f32 %v2390, %v2464
      %v2535 = vmax.f32 %v2391, %v2467
      %v2536 = vmax.f32 %v2392, %v2469
      %v2537 = vmax.f32 %v2393, %v2472
      %v2538 = vmax.f32 %v2394, %v2474
      %2539 = vst.msk [vmem:[%s234] sm:$0xff] %vm243, %v2507
      %2540 = vst.msk [vmem:[%s234 + $0x8] sm:$0xff] %vm243, %v2508
      %2541 = vst.msk [vmem:[%s234 + $0x10] sm:$0xff] %vm243, %v2509
      %2542 = vst.msk [vmem:[%s234 + $0x18] sm:$0xff] %vm243, %v2510
      %2543 = vst.msk [vmem:[%s234 + $0x20] sm:$0xff] %vm243, %v2511
      %2544 = vst.msk [vmem:[%s234 + $0x28] sm:$0xff] %vm243, %v2512
      %2545 = vst.msk [vmem:[%s234 + $0x30] sm:$0xff] %vm243, %v2513
      %2546 = vst.msk [vmem:[%s234 + $0x38] sm:$0xff] %vm243, %v2514
      %2547 = vst.msk [vmem:[%s234 + $0x40] sm:$0xff] %vm243, %v2515
      %2548 = vst.msk [vmem:[%s234 + $0x48] sm:$0xff] %vm243, %v2516
      %2549 = vst.msk [vmem:[%s234 + $0x50] sm:$0xff] %vm243, %v2517
      %2550 = vst.msk [vmem:[%s234 + $0x58] sm:$0xff] %vm243, %v2518
      %2551 = vst.msk [vmem:[%s234 + $0x60] sm:$0xff] %vm243, %v2519
      %2552 = vst.msk [vmem:[%s234 + $0x68] sm:$0xff] %vm243, %v2520
      %2553 = vst.msk [vmem:[%s234 + $0x70] sm:$0xff] %vm243, %v2521
      %2554 = vst.msk [vmem:[%s234 + $0x78] sm:$0xff] %vm243, %v2522
      %2555 = vst.msk [vmem:[%s234 + $0x80] sm:$0xff] %vm243, %v2523
      %2556 = vst.msk [vmem:[%s234 + $0x88] sm:$0xff] %vm243, %v2524
      %2557 = vst.msk [vmem:[%s234 + $0x90] sm:$0xff] %vm243, %v2525
      %2558 = vst.msk [vmem:[%s234 + $0x98] sm:$0xff] %vm243, %v2526
      %2559 = vst.msk [vmem:[%s234 + $0xa0] sm:$0xff] %vm243, %v2527
      %2560 = vst.msk [vmem:[%s234 + $0xa8] sm:$0xff] %vm243, %v2528
      %2561 = vst.msk [vmem:[%s234 + $0xb0] sm:$0xff] %vm243, %v2529
      %2562 = vst.msk [vmem:[%s234 + $0xb8] sm:$0xff] %vm243, %v2530
      %2563 = vst.msk [vmem:[%s234 + $0xc0] sm:$0xff] %vm243, %v2531
      %2564 = vst.msk [vmem:[%s234 + $0xc8] sm:$0xff] %vm243, %v2532
      %2565 = vst.msk [vmem:[%s234 + $0xd0] sm:$0xff] %vm243, %v2533
      %2566 = vst.msk [vmem:[%s234 + $0xd8] sm:$0xff] %vm243, %v2534
      %2567 = vst.msk [vmem:[%s234 + $0xe0] sm:$0xff] %vm243, %v2535
      %2568 = vst.msk [vmem:[%s234 + $0xe8] sm:$0xff] %vm243, %v2536
      %2569 = vst.msk [vmem:[%s234 + $0xf0] sm:$0xff] %vm243, %v2537
      %2570 = vst.msk [vmem:[%s234 + $0xf8] sm:$0xff] %vm243, %v2538
      %2571 = vst.msk [vmem:[%s258 + $0x2] sm:$0xff] %vm243, %v2507
      %2572 = vst.msk [vmem:[%s258 + $0xa] sm:$0xff] %vm243, %v2508
      %2573 = vst.msk [vmem:[%s258 + $0x1a] sm:$0xff] %vm243, %v2509
      %2574 = vst.msk [vmem:[%s258 + $0x22] sm:$0xff] %vm243, %v2510
      %2575 = vst.msk [vmem:[%s258 + $0x32] sm:$0xff] %vm243, %v2511
      %2576 = vst.msk [vmem:[%s258 + $0x3a] sm:$0xff] %vm243, %v2512
      %2577 = vst.msk [vmem:[%s258 + $0x4a] sm:$0xff] %vm243, %v2513
      %2578 = vst.msk [vmem:[%s258 + $0x52] sm:$0xff] %vm243, %v2514
      %2579 = vst.msk [vmem:[%s258 + $0x62] sm:$0xff] %vm243, %v2515
      %2580 = vst.msk [vmem:[%s258 + $0x6a] sm:$0xff] %vm243, %v2516
      %2581 = vst.msk [vmem:[%s258 + $0x7a] sm:$0xff] %vm243, %v2517
      %2582 = vst.msk [vmem:[%s258 + $0x82] sm:$0xff] %vm243, %v2518
      %2583 = vst.msk [vmem:[%s258 + $0x92] sm:$0xff] %vm243, %v2519
      %2584 = vst.msk [vmem:[%s258 + $0x9a] sm:$0xff] %vm243, %v2520
      %2585 = vst.msk [vmem:[%s258 + $0xaa] sm:$0xff] %vm243, %v2521
      %2586 = vst.msk [vmem:[%s258 + $0xb2] sm:$0xff] %vm243, %v2522
      %2587 = vst.msk [vmem:[%s258 + $0xc2] sm:$0xff] %vm243, %v2523
      %2588 = vst.msk [vmem:[%s258 + $0xca] sm:$0xff] %vm243, %v2524
      %2589 = vst.msk [vmem:[%s258 + $0xda] sm:$0xff] %vm243, %v2525
      %2590 = vst.msk [vmem:[%s258 + $0xe2] sm:$0xff] %vm243, %v2526
      %2591 = vst.msk [vmem:[%s258 + $0xf2] sm:$0xff] %vm243, %v2527
      %2592 = vst.msk [vmem:[%s258 + $0xfa] sm:$0xff] %vm243, %v2528
      %2593 = vst.msk [vmem:[%s258 + $0x10a] sm:$0xff] %vm243, %v2529
      %2594 = vst.msk [vmem:[%s258 + $0x112] sm:$0xff] %vm243, %v2530
      %2595 = vst.msk [vmem:[%s258 + $0x122] sm:$0xff] %vm243, %v2531
      %2596 = vst.msk [vmem:[%s258 + $0x12a] sm:$0xff] %vm243, %v2532
      %2597 = vst.msk [vmem:[%s258 + $0x13a] sm:$0xff] %vm243, %v2533
      %2598 = vst.msk [vmem:[%s258 + $0x142] sm:$0xff] %vm243, %v2534
      %2599 = vst.msk [vmem:[%s258 + $0x152] sm:$0xff] %vm243, %v2535
      %2600 = vst.msk [vmem:[%s258 + $0x15a] sm:$0xff] %vm243, %v2536
      %2601 = vst.msk [vmem:[%s258 + $0x16a] sm:$0xff] %vm243, %v2537
      %2602 = vst.msk [vmem:[%s258 + $0x172] sm:$0xff] %vm243, %v2538
      %v2603 = vld [vmem:[#allocation2] sm:$0xff]
      %v2604 = vld [vmem:[#allocation2 + $0x8] sm:$0xff]
      %v2605 = vld [vmem:[#allocation2 + $0x10] sm:$0xf]
      %v2606 = vld [vmem:[#allocation2 + $0x18] sm:$0xff]
      %v2607 = vld [vmem:[#allocation2 + $0x20] sm:$0xff]
      %v2608 = vld [vmem:[#allocation2 + $0x28] sm:$0xf]
      %v2609 = vld [vmem:[#allocation2 + $0x30] sm:$0xff]
      %v2610 = vld [vmem:[#allocation2 + $0x38] sm:$0xff]
      %v2611 = vld [vmem:[#allocation2 + $0x40] sm:$0xf]
      %v2612 = vld [vmem:[#allocation2 + $0x48] sm:$0xff]
      %v2613 = vld [vmem:[#allocation2 + $0x50] sm:$0xff]
      %v2614 = vld [vmem:[#allocation2 + $0x58] sm:$0xf]
      %v2615 = vld [vmem:[#allocation2 + $0x60] sm:$0xff]
      %v2616 = vld [vmem:[#allocation2 + $0x68] sm:$0xff]
      %v2617 = vld [vmem:[#allocation2 + $0x70] sm:$0xf]
      %v2618 = vld [vmem:[#allocation2 + $0x78] sm:$0xff]
      %v2619 = vld [vmem:[#allocation2 + $0x80] sm:$0xff]
      %v2620 = vld [vmem:[#allocation2 + $0x88] sm:$0xf]
      %v2621 = vld [vmem:[#allocation2 + $0x90] sm:$0xff]
      %v2622 = vld [vmem:[#allocation2 + $0x98] sm:$0xff]
      %v2623 = vld [vmem:[#allocation2 + $0xa0] sm:$0xf]
      %v2624 = vld [vmem:[#allocation2 + $0xa8] sm:$0xff]
      %v2625 = vld [vmem:[#allocation2 + $0xb0] sm:$0xff]
      %v2626 = vld [vmem:[#allocation2 + $0xb8] sm:$0xf]
      %v2627 = vld [vmem:[#allocation2 + $0xc0] sm:$0xff]
      %v2628 = vld [vmem:[#allocation2 + $0xc8] sm:$0xff]
      %v2629 = vld [vmem:[#allocation2 + $0xd0] sm:$0xf]
      %v2630 = vld [vmem:[#allocation2 + $0xd8] sm:$0xff]
      %v2631 = vld [vmem:[#allocation2 + $0xe0] sm:$0xff]
      %v2632 = vld [vmem:[#allocation2 + $0xe8] sm:$0xf]
      %v2633 = vld [vmem:[#allocation2 + $0xf0] sm:$0xff]
      %v2634 = vld [vmem:[#allocation2 + $0xf8] sm:$0xff]
      %v2635 = vld [vmem:[#allocation2 + $0x100] sm:$0xf]
      %v2636 = vld [vmem:[#allocation2 + $0x108] sm:$0xff]
      %v2637 = vld [vmem:[#allocation2 + $0x110] sm:$0xff]
      %v2638 = vld [vmem:[#allocation2 + $0x118] sm:$0xf]
      %v2639 = vld [vmem:[#allocation2 + $0x120] sm:$0xff]
      %v2640 = vld [vmem:[#allocation2 + $0x128] sm:$0xff]
      %v2641 = vld [vmem:[#allocation2 + $0x130] sm:$0xf]
      %v2642 = vld [vmem:[#allocation2 + $0x138] sm:$0xff]
      %v2643 = vld [vmem:[#allocation2 + $0x140] sm:$0xff]
      %v2644 = vld [vmem:[#allocation2 + $0x148] sm:$0xf]
      %v2645 = vld [vmem:[#allocation2 + $0x150] sm:$0xff]
      %v2646 = vld [vmem:[#allocation2 + $0x158] sm:$0xff]
      %v2647 = vld [vmem:[#allocation2 + $0x160] sm:$0xf]
      %v2648 = vld [vmem:[#allocation2 + $0x168] sm:$0xff]
      %v2649 = vld [vmem:[#allocation2 + $0x170] sm:$0xff]
      %v2650 = vld [vmem:[#allocation2 + $0x178] sm:$0xf]
      %v2651 = vld [vmem:[%s404] sm:$0xff]
      %v2652 = vld [vmem:[%s404 + $0x8] sm:$0xff]
      %v2653 = vld [vmem:[%s404 + $0x10] sm:$0xf]
      %v2654 = vld [vmem:[%s404 + $0x18] sm:$0xff]
      %v2655 = vld [vmem:[%s404 + $0x20] sm:$0xff]
      %v2656 = vld [vmem:[%s404 + $0x28] sm:$0xf]
      %v2657 = vld [vmem:[%s404 + $0x30] sm:$0xff]
      %v2658 = vld [vmem:[%s404 + $0x38] sm:$0xff]
      %v2659 = vld [vmem:[%s404 + $0x40] sm:$0xf]
      %v2660 = vld [vmem:[%s404 + $0x48] sm:$0xff]
      %v2661 = vld [vmem:[%s404 + $0x50] sm:$0xff]
      %v2662 = vld [vmem:[%s404 + $0x58] sm:$0xf]
      %v2663 = vld [vmem:[%s404 + $0x60] sm:$0xff]
      %v2664 = vld [vmem:[%s404 + $0x68] sm:$0xff]
      %v2665 = vld [vmem:[%s404 + $0x70] sm:$0xf]
      %v2666 = vld [vmem:[%s404 + $0x78] sm:$0xff]
      %v2667 = vld [vmem:[%s404 + $0x80] sm:$0xff]
      %v2668 = vld [vmem:[%s404 + $0x88] sm:$0xf]
      %v2669 = vld [vmem:[%s404 + $0x90] sm:$0xff]
      %v2670 = vld [vmem:[%s404 + $0x98] sm:$0xff]
      %v2671 = vld [vmem:[%s404 + $0xa0] sm:$0xf]
      %v2672 = vld [vmem:[%s404 + $0xa8] sm:$0xff]
      %v2673 = vld [vmem:[%s404 + $0xb0] sm:$0xff]
      %v2674 = vld [vmem:[%s404 + $0xb8] sm:$0xf]
      %v2675 = vld [vmem:[%s404 + $0xc0] sm:$0xff]
      %v2676 = vld [vmem:[%s404 + $0xc8] sm:$0xff]
      %v2677 = vld [vmem:[%s404 + $0xd0] sm:$0xf]
      %v2678 = vld [vmem:[%s404 + $0xd8] sm:$0xff]
      %v2679 = vld [vmem:[%s404 + $0xe0] sm:$0xff]
      %v2680 = vld [vmem:[%s404 + $0xe8] sm:$0xf]
      %v2681 = vld [vmem:[%s404 + $0xf0] sm:$0xff]
      %v2682 = vld [vmem:[%s404 + $0xf8] sm:$0xff]
      %v2683 = vld [vmem:[%s404 + $0x100] sm:$0xf]
      %v2684 = vld [vmem:[%s404 + $0x108] sm:$0xff]
      %v2685 = vld [vmem:[%s404 + $0x110] sm:$0xff]
      %v2686 = vld [vmem:[%s404 + $0x118] sm:$0xf]
      %v2687 = vld [vmem:[%s404 + $0x120] sm:$0xff]
      %v2688 = vld [vmem:[%s404 + $0x128] sm:$0xff]
      %v2689 = vld [vmem:[%s404 + $0x130] sm:$0xf]
      %v2690 = vld [vmem:[%s404 + $0x138] sm:$0xff]
      %v2691 = vld [vmem:[%s404 + $0x140] sm:$0xff]
      %v2692 = vld [vmem:[%s404 + $0x148] sm:$0xf]
      %v2693 = vld [vmem:[%s404 + $0x150] sm:$0xff]
      %v2694 = vld [vmem:[%s404 + $0x158] sm:$0xff]
      %v2695 = vld [vmem:[%s404 + $0x160] sm:$0xf]
      %v2696 = vld [vmem:[%s404 + $0x168] sm:$0xff]
      %v2697 = vld [vmem:[%s404 + $0x170] sm:$0xff]
      %v2698 = vld [vmem:[%s404 + $0x178] sm:$0xf]
      %v2699 = vmax.f32 %v2603, %v2651
      %v2700 = vmax.f32 %v2604, %v2652
      %v2701 = vmax.f32 %v2605, %v2653
      %v2702 = vmax.f32 %v2606, %v2654
      %v2703 = vmax.f32 %v2607, %v2655
      %v2704 = vmax.f32 %v2608, %v2656
      %v2705 = vmax.f32 %v2609, %v2657
      %v2706 = vmax.f32 %v2610, %v2658
      %v2707 = vmax.f32 %v2611, %v2659
      %v2708 = vmax.f32 %v2612, %v2660
      %v2709 = vmax.f32 %v2613, %v2661
      %v2710 = vmax.f32 %v2614, %v2662
      %v2711 = vmax.f32 %v2615, %v2663
      %v2712 = vmax.f32 %v2616, %v2664
      %v2713 = vmax.f32 %v2617, %v2665
      %v2714 = vmax.f32 %v2618, %v2666
      %v2715 = vmax.f32 %v2619, %v2667
      %v2716 = vmax.f32 %v2620, %v2668
      %v2717 = vmax.f32 %v2621, %v2669
      %v2718 = vmax.f32 %v2622, %v2670
      %v2719 = vmax.f32 %v2623, %v2671
      %v2720 = vmax.f32 %v2624, %v2672
      %v2721 = vmax.f32 %v2625, %v2673
      %v2722 = vmax.f32 %v2626, %v2674
      %v2723 = vmax.f32 %v2627, %v2675
      %v2724 = vmax.f32 %v2628, %v2676
      %v2725 = vmax.f32 %v2629, %v2677
      %v2726 = vmax.f32 %v2630, %v2678
      %v2727 = vmax.f32 %v2631, %v2679
      %v2728 = vmax.f32 %v2632, %v2680
      %v2729 = vmax.f32 %v2633, %v2681
      %v2730 = vmax.f32 %v2634, %v2682
      %v2731 = vmax.f32 %v2635, %v2683
      %v2732 = vmax.f32 %v2636, %v2684
      %v2733 = vmax.f32 %v2637, %v2685
      %v2734 = vmax.f32 %v2638, %v2686
      %v2735 = vmax.f32 %v2639, %v2687
      %v2736 = vmax.f32 %v2640, %v2688
      %v2737 = vmax.f32 %v2641, %v2689
      %v2738 = vmax.f32 %v2642, %v2690
      %v2739 = vmax.f32 %v2643, %v2691
      %v2740 = vmax.f32 %v2644, %v2692
      %v2741 = vmax.f32 %v2645, %v2693
      %v2742 = vmax.f32 %v2646, %v2694
      %v2743 = vmax.f32 %v2647, %v2695
      %v2744 = vmax.f32 %v2648, %v2696
      %v2745 = vmax.f32 %v2649, %v2697
      %v2746 = vmax.f32 %v2650, %v2698
      %v2747 = vld [vmem:[%s258] sm:$0xff]
      %v2748 = vld [vmem:[%s258 + $0x8] sm:$0xff]
      %v2749 = vld [vmem:[%s258 + $0x10] sm:$0xf]
      %v2750 = vld [vmem:[%s258 + $0x18] sm:$0xff]
      %v2751 = vld [vmem:[%s258 + $0x20] sm:$0xff]
      %v2752 = vld [vmem:[%s258 + $0x28] sm:$0xf]
      %v2753 = vld [vmem:[%s258 + $0x30] sm:$0xff]
      %v2754 = vld [vmem:[%s258 + $0x38] sm:$0xff]
      %v2755 = vld [vmem:[%s258 + $0x40] sm:$0xf]
      %v2756 = vld [vmem:[%s258 + $0x48] sm:$0xff]
      %v2757 = vld [vmem:[%s258 + $0x50] sm:$0xff]
      %v2758 = vld [vmem:[%s258 + $0x58] sm:$0xf]
      %v2759 = vld [vmem:[%s258 + $0x60] sm:$0xff]
      %v2760 = vld [vmem:[%s258 + $0x68] sm:$0xff]
      %v2761 = vld [vmem:[%s258 + $0x70] sm:$0xf]
      %v2762 = vld [vmem:[%s258 + $0x78] sm:$0xff]
      %v2763 = vld [vmem:[%s258 + $0x80] sm:$0xff]
      %v2764 = vld [vmem:[%s258 + $0x88] sm:$0xf]
      %v2765 = vld [vmem:[%s258 + $0x90] sm:$0xff]
      %v2766 = vld [vmem:[%s258 + $0x98] sm:$0xff]
      %v2767 = vld [vmem:[%s258 + $0xa0] sm:$0xf]
      %v2768 = vld [vmem:[%s258 + $0xa8] sm:$0xff]
      %v2769 = vld [vmem:[%s258 + $0xb0] sm:$0xff]
      %v2770 = vld [vmem:[%s258 + $0xb8] sm:$0xf]
      %v2771 = vld [vmem:[%s258 + $0xc0] sm:$0xff]
      %v2772 = vld [vmem:[%s258 + $0xc8] sm:$0xff]
      %v2773 = vld [vmem:[%s258 + $0xd0] sm:$0xf]
      %v2774 = vld [vmem:[%s258 + $0xd8] sm:$0xff]
      %v2775 = vld [vmem:[%s258 + $0xe0] sm:$0xff]
      %v2776 = vld [vmem:[%s258 + $0xe8] sm:$0xf]
      %v2777 = vld [vmem:[%s258 + $0xf0] sm:$0xff]
      %v2778 = vld [vmem:[%s258 + $0xf8] sm:$0xff]
      %v2779 = vld [vmem:[%s258 + $0x100] sm:$0xf]
      %v2780 = vld [vmem:[%s258 + $0x108] sm:$0xff]
      %v2781 = vld [vmem:[%s258 + $0x110] sm:$0xff]
      %v2782 = vld [vmem:[%s258 + $0x118] sm:$0xf]
      %v2783 = vld [vmem:[%s258 + $0x120] sm:$0xff]
      %v2784 = vld [vmem:[%s258 + $0x128] sm:$0xff]
      %v2785 = vld [vmem:[%s258 + $0x130] sm:$0xf]
      %v2786 = vld [vmem:[%s258 + $0x138] sm:$0xff]
      %v2787 = vld [vmem:[%s258 + $0x140] sm:$0xff]
      %v2788 = vld [vmem:[%s258 + $0x148] sm:$0xf]
      %v2789 = vld [vmem:[%s258 + $0x150] sm:$0xff]
      %v2790 = vld [vmem:[%s258 + $0x158] sm:$0xff]
      %v2791 = vld [vmem:[%s258 + $0x160] sm:$0xf]
      %v2792 = vld [vmem:[%s258 + $0x168] sm:$0xff]
      %v2793 = vld [vmem:[%s258 + $0x170] sm:$0xff]
      %v2794 = vld [vmem:[%s258 + $0x178] sm:$0xf]
      %v2795 = vmax.f32 %v2699, %v2747
      %v2796 = vmax.f32 %v2700, %v2748
      %v2797 = vmax.f32 %v2701, %v2749
      %v2798 = vmax.f32 %v2702, %v2750
      %v2799 = vmax.f32 %v2703, %v2751
      %v2800 = vmax.f32 %v2704, %v2752
      %v2801 = vmax.f32 %v2705, %v2753
      %v2802 = vmax.f32 %v2706, %v2754
      %v2803 = vmax.f32 %v2707, %v2755
      %v2804 = vmax.f32 %v2708, %v2756
      %v2805 = vmax.f32 %v2709, %v2757
      %v2806 = vmax.f32 %v2710, %v2758
      %v2807 = vmax.f32 %v2711, %v2759
      %v2808 = vmax.f32 %v2712, %v2760
      %v2809 = vmax.f32 %v2713, %v2761
      %v2810 = vmax.f32 %v2714, %v2762
      %v2811 = vmax.f32 %v2715, %v2763
      %v2812 = vmax.f32 %v2716, %v2764
      %v2813 = vmax.f32 %v2717, %v2765
      %v2814 = vmax.f32 %v2718, %v2766
      %v2815 = vmax.f32 %v2719, %v2767
      %v2816 = vmax.f32 %v2720, %v2768
      %v2817 = vmax.f32 %v2721, %v2769
      %v2818 = vmax.f32 %v2722, %v2770
      %v2819 = vmax.f32 %v2723, %v2771
      %v2820 = vmax.f32 %v2724, %v2772
      %v2821 = vmax.f32 %v2725, %v2773
      %v2822 = vmax.f32 %v2726, %v2774
      %v2823 = vmax.f32 %v2727, %v2775
      %v2824 = vmax.f32 %v2728, %v2776
      %v2825 = vmax.f32 %v2729, %v2777
      %v2826 = vmax.f32 %v2730, %v2778
      %v2827 = vmax.f32 %v2731, %v2779
      %v2828 = vmax.f32 %v2732, %v2780
      %v2829 = vmax.f32 %v2733, %v2781
      %v2830 = vmax.f32 %v2734, %v2782
      %v2831 = vmax.f32 %v2735, %v2783
      %v2832 = vmax.f32 %v2736, %v2784
      %v2833 = vmax.f32 %v2737, %v2785
      %v2834 = vmax.f32 %v2738, %v2786
      %v2835 = vmax.f32 %v2739, %v2787
      %v2836 = vmax.f32 %v2740, %v2788
      %v2837 = vmax.f32 %v2741, %v2789
      %v2838 = vmax.f32 %v2742, %v2790
      %v2839 = vmax.f32 %v2743, %v2791
      %v2840 = vmax.f32 %v2744, %v2792
      %v2841 = vmax.f32 %v2745, %v2793
      %v2842 = vmax.f32 %v2746, %v2794
      %v2843 = vld [vmem:[%s597] sm:$0xff]
      %v2844 = vld [vmem:[%s597 + $0x8] sm:$0xff]
      %v2845 = vld [vmem:[%s597 + $0x10] sm:$0xf]
      %v2846 = vld [vmem:[%s597 + $0x18] sm:$0xff]
      %v2847 = vld [vmem:[%s597 + $0x20] sm:$0xff]
      %v2848 = vld [vmem:[%s597 + $0x28] sm:$0xf]
      %v2849 = vld [vmem:[%s597 + $0x30] sm:$0xff]
      %v2850 = vld [vmem:[%s597 + $0x38] sm:$0xff]
      %v2851 = vld [vmem:[%s597 + $0x40] sm:$0xf]
      %v2852 = vld [vmem:[%s597 + $0x48] sm:$0xff]
      %v2853 = vld [vmem:[%s597 + $0x50] sm:$0xff]
      %v2854 = vld [vmem:[%s597 + $0x58] sm:$0xf]
      %v2855 = vld [vmem:[%s597 + $0x60] sm:$0xff]
      %v2856 = vld [vmem:[%s597 + $0x68] sm:$0xff]
      %v2857 = vld [vmem:[%s597 + $0x70] sm:$0xf]
      %v2858 = vld [vmem:[%s597 + $0x78] sm:$0xff]
      %v2859 = vld [vmem:[%s597 + $0x80] sm:$0xff]
      %v2860 = vld [vmem:[%s597 + $0x88] sm:$0xf]
      %v2861 = vld [vmem:[%s597 + $0x90] sm:$0xff]
      %v2862 = vld [vmem:[%s597 + $0x98] sm:$0xff]
      %v2863 = vld [vmem:[%s597 + $0xa0] sm:$0xf]
      %v2864 = vld [vmem:[%s597 + $0xa8] sm:$0xff]
      %v2865 = vld [vmem:[%s597 + $0xb0] sm:$0xff]
      %v2866 = vld [vmem:[%s597 + $0xb8] sm:$0xf]
      %v2867 = vld [vmem:[%s597 + $0xc0] sm:$0xff]
      %v2868 = vld [vmem:[%s597 + $0xc8] sm:$0xff]
      %v2869 = vld [vmem:[%s597 + $0xd0] sm:$0xf]
      %v2870 = vld [vmem:[%s597 + $0xd8] sm:$0xff]
      %v2871 = vld [vmem:[%s597 + $0xe0] sm:$0xff]
      %v2872 = vld [vmem:[%s597 + $0xe8] sm:$0xf]
      %v2873 = vld [vmem:[%s597 + $0xf0] sm:$0xff]
      %v2874 = vld [vmem:[%s597 + $0xf8] sm:$0xff]
      %v2875 = vld [vmem:[%s597 + $0x100] sm:$0xf]
      %v2876 = vld [vmem:[%s597 + $0x108] sm:$0xff]
      %v2877 = vld [vmem:[%s597 + $0x110] sm:$0xff]
      %v2878 = vld [vmem:[%s597 + $0x118] sm:$0xf]
      %v2879 = vld [vmem:[%s597 + $0x120] sm:$0xff]
      %v2880 = vld [vmem:[%s597 + $0x128] sm:$0xff]
      %v2881 = vld [vmem:[%s597 + $0x130] sm:$0xf]
      %v2882 = vld [vmem:[%s597 + $0x138] sm:$0xff]
      %v2883 = vld [vmem:[%s597 + $0x140] sm:$0xff]
      %v2884 = vld [vmem:[%s597 + $0x148] sm:$0xf]
      %v2885 = vld [vmem:[%s597 + $0x150] sm:$0xff]
      %v2886 = vld [vmem:[%s597 + $0x158] sm:$0xff]
      %v2887 = vld [vmem:[%s597 + $0x160] sm:$0xf]
      %v2888 = vld [vmem:[%s597 + $0x168] sm:$0xff]
      %v2889 = vld [vmem:[%s597 + $0x170] sm:$0xff]
      %v2890 = vld [vmem:[%s597 + $0x178] sm:$0xf]
      %v2891 = vmax.f32 %v2795, %v2843
      %v2892 = vmax.f32 %v2796, %v2844
      %v2893 = vmax.f32 %v2797, %v2845
      %v2894 = vmax.f32 %v2798, %v2846
      %v2895 = vmax.f32 %v2799, %v2847
      %v2896 = vmax.f32 %v2800, %v2848
      %v2897 = vmax.f32 %v2801, %v2849
      %v2898 = vmax.f32 %v2802, %v2850
      %v2899 = vmax.f32 %v2803, %v2851
      %v2900 = vmax.f32 %v2804, %v2852
      %v2901 = vmax.f32 %v2805, %v2853
      %v2902 = vmax.f32 %v2806, %v2854
      %v2903 = vmax.f32 %v2807, %v2855
      %v2904 = vmax.f32 %v2808, %v2856
      %v2905 = vmax.f32 %v2809, %v2857
      %v2906 = vmax.f32 %v2810, %v2858
      %v2907 = vmax.f32 %v2811, %v2859
      %v2908 = vmax.f32 %v2812, %v2860
      %v2909 = vmax.f32 %v2813, %v2861
      %v2910 = vmax.f32 %v2814, %v2862
      %v2911 = vmax.f32 %v2815, %v2863
      %v2912 = vmax.f32 %v2816, %v2864
      %v2913 = vmax.f32 %v2817, %v2865
      %v2914 = vmax.f32 %v2818, %v2866
      %v2915 = vmax.f32 %v2819, %v2867
      %v2916 = vmax.f32 %v2820, %v2868
      %v2917 = vmax.f32 %v2821, %v2869
      %v2918 = vmax.f32 %v2822, %v2870
      %v2919 = vmax.f32 %v2823, %v2871
      %v2920 = vmax.f32 %v2824, %v2872
      %v2921 = vmax.f32 %v2825, %v2873
      %v2922 = vmax.f32 %v2826, %v2874
      %v2923 = vmax.f32 %v2827, %v2875
      %v2924 = vmax.f32 %v2828, %v2876
      %v2925 = vmax.f32 %v2829, %v2877
      %v2926 = vmax.f32 %v2830, %v2878
      %v2927 = vmax.f32 %v2831, %v2879
      %v2928 = vmax.f32 %v2832, %v2880
      %v2929 = vmax.f32 %v2833, %v2881
      %v2930 = vmax.f32 %v2834, %v2882
      %v2931 = vmax.f32 %v2835, %v2883
      %v2932 = vmax.f32 %v2836, %v2884
      %v2933 = vmax.f32 %v2837, %v2885
      %v2934 = vmax.f32 %v2838, %v2886
      %v2935 = vmax.f32 %v2839, %v2887
      %v2936 = vmax.f32 %v2840, %v2888
      %v2937 = vmax.f32 %v2841, %v2889
      %v2938 = vmax.f32 %v2842, %v2890
      %v2939 = vld [vmem:[%s694] sm:$0xff]
      %v2940 = vld [vmem:[%s694 + $0x8] sm:$0xff]
      %v2941 = vld [vmem:[%s694 + $0x10] sm:$0xf]
      %v2942 = vld [vmem:[%s694 + $0x18] sm:$0xff]
      %v2943 = vld [vmem:[%s694 + $0x20] sm:$0xff]
      %v2944 = vld [vmem:[%s694 + $0x28] sm:$0xf]
      %v2945 = vld [vmem:[%s694 + $0x30] sm:$0xff]
      %v2946 = vld [vmem:[%s694 + $0x38] sm:$0xff]
      %v2947 = vld [vmem:[%s694 + $0x40] sm:$0xf]
      %v2948 = vld [vmem:[%s694 + $0x48] sm:$0xff]
      %v2949 = vld [vmem:[%s694 + $0x50] sm:$0xff]
      %v2950 = vld [vmem:[%s694 + $0x58] sm:$0xf]
      %v2951 = vld [vmem:[%s694 + $0x60] sm:$0xff]
      %v2952 = vld [vmem:[%s694 + $0x68] sm:$0xff]
      %v2953 = vld [vmem:[%s694 + $0x70] sm:$0xf]
      %v2954 = vld [vmem:[%s694 + $0x78] sm:$0xff]
      %v2955 = vld [vmem:[%s694 + $0x80] sm:$0xff]
      %v2956 = vld [vmem:[%s694 + $0x88] sm:$0xf]
      %v2957 = vld [vmem:[%s694 + $0x90] sm:$0xff]
      %v2958 = vld [vmem:[%s694 + $0x98] sm:$0xff]
      %v2959 = vld [vmem:[%s694 + $0xa0] sm:$0xf]
      %v2960 = vld [vmem:[%s694 + $0xa8] sm:$0xff]
      %v2961 = vld [vmem:[%s694 + $0xb0] sm:$0xff]
      %v2962 = vld [vmem:[%s694 + $0xb8] sm:$0xf]
      %v2963 = vld [vmem:[%s694 + $0xc0] sm:$0xff]
      %v2964 = vld [vmem:[%s694 + $0xc8] sm:$0xff]
      %v2965 = vld [vmem:[%s694 + $0xd0] sm:$0xf]
      %v2966 = vld [vmem:[%s694 + $0xd8] sm:$0xff]
      %v2967 = vld [vmem:[%s694 + $0xe0] sm:$0xff]
      %v2968 = vld [vmem:[%s694 + $0xe8] sm:$0xf]
      %v2969 = vld [vmem:[%s694 + $0xf0] sm:$0xff]
      %v2970 = vld [vmem:[%s694 + $0xf8] sm:$0xff]
      %v2971 = vld [vmem:[%s694 + $0x100] sm:$0xf]
      %v2972 = vld [vmem:[%s694 + $0x108] sm:$0xff]
      %v2973 = vld [vmem:[%s694 + $0x110] sm:$0xff]
      %v2974 = vld [vmem:[%s694 + $0x118] sm:$0xf]
      %v2975 = vld [vmem:[%s694 + $0x120] sm:$0xff]
      %v2976 = vld [vmem:[%s694 + $0x128] sm:$0xff]
      %v2977 = vld [vmem:[%s694 + $0x130] sm:$0xf]
      %v2978 = vld [vmem:[%s694 + $0x138] sm:$0xff]
      %v2979 = vld [vmem:[%s694 + $0x140] sm:$0xff]
      %v2980 = vld [vmem:[%s694 + $0x148] sm:$0xf]
      %v2981 = vld [vmem:[%s694 + $0x150] sm:$0xff]
      %v2982 = vld [vmem:[%s694 + $0x158] sm:$0xff]
      %v2983 = vld [vmem:[%s694 + $0x160] sm:$0xf]
      %v2984 = vld [vmem:[%s694 + $0x168] sm:$0xff]
      %v2985 = vld [vmem:[%s694 + $0x170] sm:$0xff]
      %v2986 = vld [vmem:[%s694 + $0x178] sm:$0xf]
      %v2987 = vmax.f32 %v2891, %v2939
      %v2988 = vmax.f32 %v2892, %v2940
      %v2989 = vmax.f32 %v2893, %v2941
      %v2990 = vmax.f32 %v2894, %v2942
      %v2991 = vmax.f32 %v2895, %v2943
      %v2992 = vmax.f32 %v2896, %v2944
      %v2993 = vmax.f32 %v2897, %v2945
      %v2994 = vmax.f32 %v2898, %v2946
      %v2995 = vmax.f32 %v2899, %v2947
      %v2996 = vmax.f32 %v2900, %v2948
      %v2997 = vmax.f32 %v2901, %v2949
      %v2998 = vmax.f32 %v2902, %v2950
      %v2999 = vmax.f32 %v2903, %v2951
      %v3000 = vmax.f32 %v2904, %v2952
      %v3001 = vmax.f32 %v2905, %v2953
      %v3002 = vmax.f32 %v2906, %v2954
      %v3003 = vmax.f32 %v2907, %v2955
      %v3004 = vmax.f32 %v2908, %v2956
      %v3005 = vmax.f32 %v2909, %v2957
      %v3006 = vmax.f32 %v2910, %v2958
      %v3007 = vmax.f32 %v2911, %v2959
      %v3008 = vmax.f32 %v2912, %v2960
      %v3009 = vmax.f32 %v2913, %v2961
      %v3010 = vmax.f32 %v2914, %v2962
      %v3011 = vmax.f32 %v2915, %v2963
      %v3012 = vmax.f32 %v2916, %v2964
      %v3013 = vmax.f32 %v2917, %v2965
      %v3014 = vmax.f32 %v2918, %v2966
      %v3015 = vmax.f32 %v2919, %v2967
      %v3016 = vmax.f32 %v2920, %v2968
      %v3017 = vmax.f32 %v2921, %v2969
      %v3018 = vmax.f32 %v2922, %v2970
      %v3019 = vmax.f32 %v2923, %v2971
      %v3020 = vmax.f32 %v2924, %v2972
      %v3021 = vmax.f32 %v2925, %v2973
      %v3022 = vmax.f32 %v2926, %v2974
      %v3023 = vmax.f32 %v2927, %v2975
      %v3024 = vmax.f32 %v2928, %v2976
      %v3025 = vmax.f32 %v2929, %v2977
      %v3026 = vmax.f32 %v2930, %v2978
      %v3027 = vmax.f32 %v2931, %v2979
      %v3028 = vmax.f32 %v2932, %v2980
      %v3029 = vmax.f32 %v2933, %v2981
      %v3030 = vmax.f32 %v2934, %v2982
      %v3031 = vmax.f32 %v2935, %v2983
      %v3032 = vmax.f32 %v2936, %v2984
      %v3033 = vmax.f32 %v2937, %v2985
      %v3034 = vmax.f32 %v2938, %v2986
      %v3083 = vrot.slane %v2987, 1
      %v3084 = vrot.slane %v2988, 1
      %v3085 = vsel %vm839, %v3083, %v3084
      %v3086 = vrot.slane %v2989, 1
      %v3087 = vsel %vm839, %v3084, %v3086
      %v3088 = vrot.slane %v2990, 1
      %v3089 = vrot.slane %v2991, 1
      %v3090 = vsel %vm839, %v3088, %v3089
      %v3091 = vrot.slane %v2992, 1
      %v3092 = vsel %vm839, %v3089, %v3091
      %v3093 = vrot.slane %v2993, 1
      %v3094 = vrot.slane %v2994, 1
      %v3095 = vsel %vm839, %v3093, %v3094
      %v3096 = vrot.slane %v2995, 1
      %v3097 = vsel %vm839, %v3094, %v3096
      %v3098 = vrot.slane %v2996, 1
      %v3099 = vrot.slane %v2997, 1
      %v3100 = vsel %vm839, %v3098, %v3099
      %v3101 = vrot.slane %v2998, 1
      %v3102 = vsel %vm839, %v3099, %v3101
      %v3103 = vrot.slane %v2999, 1
      %v3104 = vrot.slane %v3000, 1
      %v3105 = vsel %vm839, %v3103, %v3104
      %v3106 = vrot.slane %v3001, 1
      %v3107 = vsel %vm839, %v3104, %v3106
      %v3108 = vrot.slane %v3002, 1
      %v3109 = vrot.slane %v3003, 1
      %v3110 = vsel %vm839, %v3108, %v3109
      %v3111 = vrot.slane %v3004, 1
      %v3112 = vsel %vm839, %v3109, %v3111
      %v3113 = vrot.slane %v3005, 1
      %v3114 = vrot.slane %v3006, 1
      %v3115 = vsel %vm839, %v3113, %v3114
      %v3116 = vrot.slane %v3007, 1
      %v3117 = vsel %vm839, %v3114, %v3116
      %v3118 = vrot.slane %v3008, 1
      %v3119 = vrot.slane %v3009, 1
      %v3120 = vsel %vm839, %v3118, %v3119
      %v3121 = vrot.slane %v3010, 1
      %v3122 = vsel %vm839, %v3119, %v3121
      %v3123 = vrot.slane %v3011, 1
      %v3124 = vrot.slane %v3012, 1
      %v3125 = vsel %vm839, %v3123, %v3124
      %v3126 = vrot.slane %v3013, 1
      %v3127 = vsel %vm839, %v3124, %v3126
      %v3128 = vrot.slane %v3014, 1
      %v3129 = vrot.slane %v3015, 1
      %v3130 = vsel %vm839, %v3128, %v3129
      %v3131 = vrot.slane %v3016, 1
      %v3132 = vsel %vm839, %v3129, %v3131
      %v3133 = vrot.slane %v3017, 1
      %v3134 = vrot.slane %v3018, 1
      %v3135 = vsel %vm839, %v3133, %v3134
      %v3136 = vrot.slane %v3019, 1
      %v3137 = vsel %vm839, %v3134, %v3136
      %v3138 = vrot.slane %v3020, 1
      %v3139 = vrot.slane %v3021, 1
      %v3140 = vsel %vm839, %v3138, %v3139
      %v3141 = vrot.slane %v3022, 1
      %v3142 = vsel %vm839, %v3139, %v3141
      %v3143 = vrot.slane %v3023, 1
      %v3144 = vrot.slane %v3024, 1
      %v3145 = vsel %vm839, %v3143, %v3144
      %v3146 = vrot.slane %v3025, 1
      %v3147 = vsel %vm839, %v3144, %v3146
      %v3148 = vrot.slane %v3026, 1
      %v3149 = vrot.slane %v3027, 1
      %v3150 = vsel %vm839, %v3148, %v3149
      %v3151 = vrot.slane %v3028, 1
      %v3152 = vsel %vm839, %v3149, %v3151
      %v3153 = vrot.slane %v3029, 1
      %v3154 = vrot.slane %v3030, 1
      %v3155 = vsel %vm839, %v3153, %v3154
      %v3156 = vrot.slane %v3031, 1
      %v3157 = vsel %vm839, %v3154, %v3156
      %v3158 = vrot.slane %v3032, 1
      %v3159 = vrot.slane %v3033, 1
      %v3160 = vsel %vm839, %v3158, %v3159
      %v3161 = vrot.slane %v3034, 1
      %v3162 = vsel %vm839, %v3159, %v3161
      %v3195 = vmax.f32 %v2987, %v3085
      %v3196 = vmax.f32 %v2988, %v3087
      %v3197 = vmax.f32 %v2990, %v3090
      %v3198 = vmax.f32 %v2991, %v3092
      %v3199 = vmax.f32 %v2993, %v3095
      %v3200 = vmax.f32 %v2994, %v3097
      %v3201 = vmax.f32 %v2996, %v3100
      %v3202 = vmax.f32 %v2997, %v3102
      %v3203 = vmax.f32 %v2999, %v3105
      %v3204 = vmax.f32 %v3000, %v3107
      %v3205 = vmax.f32 %v3002, %v3110
      %v3206 = vmax.f32 %v3003, %v3112
      %v3207 = vmax.f32 %v3005, %v3115
      %v3208 = vmax.f32 %v3006, %v3117
      %v3209 = vmax.f32 %v3008, %v3120
      %v3210 = vmax.f32 %v3009, %v3122
      %v3211 = vmax.f32 %v3011, %v3125
      %v3212 = vmax.f32 %v3012, %v3127
      %v3213 = vmax.f32 %v3014, %v3130
      %v3214 = vmax.f32 %v3015, %v3132
      %v3215 = vmax.f32 %v3017, %v3135
      %v3216 = vmax.f32 %v3018, %v3137
      %v3217 = vmax.f32 %v3020, %v3140
      %v3218 = vmax.f32 %v3021, %v3142
      %v3219 = vmax.f32 %v3023, %v3145
      %v3220 = vmax.f32 %v3024, %v3147
      %v3221 = vmax.f32 %v3026, %v3150
      %v3222 = vmax.f32 %v3027, %v3152
      %v3223 = vmax.f32 %v3029, %v3155
      %v3224 = vmax.f32 %v3030, %v3157
      %v3225 = vmax.f32 %v3032, %v3160
      %v3226 = vmax.f32 %v3033, %v3162
      %v3227 = vrot.slane %v2987, 2
      %v3228 = vrot.slane %v2988, 2
      %v3229 = vsel %vm984, %v3227, %v3228
      %v3230 = vrot.slane %v2989, 2
      %v3231 = vsel %vm984, %v3228, %v3230
      %v3232 = vrot.slane %v2990, 2
      %v3233 = vrot.slane %v2991, 2
      %v3234 = vsel %vm984, %v3232, %v3233
      %v3235 = vrot.slane %v2992, 2
      %v3236 = vsel %vm984, %v3233, %v3235
      %v3237 = vrot.slane %v2993, 2
      %v3238 = vrot.slane %v2994, 2
      %v3239 = vsel %vm984, %v3237, %v3238
      %v3240 = vrot.slane %v2995, 2
      %v3241 = vsel %vm984, %v3238, %v3240
      %v3242 = vrot.slane %v2996, 2
      %v3243 = vrot.slane %v2997, 2
      %v3244 = vsel %vm984, %v3242, %v3243
      %v3245 = vrot.slane %v2998, 2
      %v3246 = vsel %vm984, %v3243, %v3245
      %v3247 = vrot.slane %v2999, 2
      %v3248 = vrot.slane %v3000, 2
      %v3249 = vsel %vm984, %v3247, %v3248
      %v3250 = vrot.slane %v3001, 2
      %v3251 = vsel %vm984, %v3248, %v3250
      %v3252 = vrot.slane %v3002, 2
      %v3253 = vrot.slane %v3003, 2
      %v3254 = vsel %vm984, %v3252, %v3253
      %v3255 = vrot.slane %v3004, 2
      %v3256 = vsel %vm984, %v3253, %v3255
      %v3257 = vrot.slane %v3005, 2
      %v3258 = vrot.slane %v3006, 2
      %v3259 = vsel %vm984, %v3257, %v3258
      %v3260 = vrot.slane %v3007, 2
      %v3261 = vsel %vm984, %v3258, %v3260
      %v3262 = vrot.slane %v3008, 2
      %v3263 = vrot.slane %v3009, 2
      %v3264 = vsel %vm984, %v3262, %v3263
      %v3265 = vrot.slane %v3010, 2
      %v3266 = vsel %vm984, %v3263, %v3265
      %v3267 = vrot.slane %v3011, 2
      %v3268 = vrot.slane %v3012, 2
      %v3269 = vsel %vm984, %v3267, %v3268
      %v3270 = vrot.slane %v3013, 2
      %v3271 = vsel %vm984, %v3268, %v3270
      %v3272 = vrot.slane %v3014, 2
      %v3273 = vrot.slane %v3015, 2
      %v3274 = vsel %vm984, %v3272, %v3273
      %v3275 = vrot.slane %v3016, 2
      %v3276 = vsel %vm984, %v3273, %v3275
      %v3277 = vrot.slane %v3017, 2
      %v3278 = vrot.slane %v3018, 2
      %v3279 = vsel %vm984, %v3277, %v3278
      %v3280 = vrot.slane %v3019, 2
      %v3281 = vsel %vm984, %v3278, %v3280
      %v3282 = vrot.slane %v3020, 2
      %v3283 = vrot.slane %v3021, 2
      %v3284 = vsel %vm984, %v3282, %v3283
      %v3285 = vrot.slane %v3022, 2
      %v3286 = vsel %vm984, %v3283, %v3285
      %v3287 = vrot.slane %v3023, 2
      %v3288 = vrot.slane %v3024, 2
      %v3289 = vsel %vm984, %v3287, %v3288
      %v3290 = vrot.slane %v3025, 2
      %v3291 = vsel %vm984, %v3288, %v3290
      %v3292 = vrot.slane %v3026, 2
      %v3293 = vrot.slane %v3027, 2
      %v3294 = vsel %vm984, %v3292, %v3293
      %v3295 = vrot.slane %v3028, 2
      %v3296 = vsel %vm984, %v3293, %v3295
      %v3297 = vrot.slane %v3029, 2
      %v3298 = vrot.slane %v3030, 2
      %v3299 = vsel %vm984, %v3297, %v3298
      %v3300 = vrot.slane %v3031, 2
      %v3301 = vsel %vm984, %v3298, %v3300
      %v3302 = vrot.slane %v3032, 2
      %v3303 = vrot.slane %v3033, 2
      %v3304 = vsel %vm984, %v3302, %v3303
      %v3305 = vrot.slane %v3034, 2
      %v3306 = vsel %vm984, %v3303, %v3305
      %v3339 = vmax.f32 %v3195, %v3229
      %v3340 = vmax.f32 %v3196, %v3231
      %v3341 = vmax.f32 %v3197, %v3234
      %v3342 = vmax.f32 %v3198, %v3236
      %v3343 = vmax.f32 %v3199, %v3239
      %v3344 = vmax.f32 %v3200, %v3241
      %v3345 = vmax.f32 %v3201, %v3244
      %v3346 = vmax.f32 %v3202, %v3246
      %v3347 = vmax.f32 %v3203, %v3249
      %v3348 = vmax.f32 %v3204, %v3251
      %v3349 = vmax.f32 %v3205, %v3254
      %v3350 = vmax.f32 %v3206, %v3256
      %v3351 = vmax.f32 %v3207, %v3259
      %v3352 = vmax.f32 %v3208, %v3261
      %v3353 = vmax.f32 %v3209, %v3264
      %v3354 = vmax.f32 %v3210, %v3266
      %v3355 = vmax.f32 %v3211, %v3269
      %v3356 = vmax.f32 %v3212, %v3271
      %v3357 = vmax.f32 %v3213, %v3274
      %v3358 = vmax.f32 %v3214, %v3276
      %v3359 = vmax.f32 %v3215, %v3279
      %v3360 = vmax.f32 %v3216, %v3281
      %v3361 = vmax.f32 %v3217, %v3284
      %v3362 = vmax.f32 %v3218, %v3286
      %v3363 = vmax.f32 %v3219, %v3289
      %v3364 = vmax.f32 %v3220, %v3291
      %v3365 = vmax.f32 %v3221, %v3294
      %v3366 = vmax.f32 %v3222, %v3296
      %v3367 = vmax.f32 %v3223, %v3299
      %v3368 = vmax.f32 %v3224, %v3301
      %v3369 = vmax.f32 %v3225, %v3304
      %v3370 = vmax.f32 %v3226, %v3306
      %v3371 = vrot.slane %v2987, 3
      %v3372 = vrot.slane %v2988, 3
      %v3373 = vsel %vm1129, %v3371, %v3372
      %v3374 = vrot.slane %v2989, 3
      %v3375 = vsel %vm1129, %v3372, %v3374
      %v3376 = vrot.slane %v2990, 3
      %v3377 = vrot.slane %v2991, 3
      %v3378 = vsel %vm1129, %v3376, %v3377
      %v3379 = vrot.slane %v2992, 3
      %v3380 = vsel %vm1129, %v3377, %v3379
      %v3381 = vrot.slane %v2993, 3
      %v3382 = vrot.slane %v2994, 3
      %v3383 = vsel %vm1129, %v3381, %v3382
      %v3384 = vrot.slane %v2995, 3
      %v3385 = vsel %vm1129, %v3382, %v3384
      %v3386 = vrot.slane %v2996, 3
      %v3387 = vrot.slane %v2997, 3
      %v3388 = vsel %vm1129, %v3386, %v3387
      %v3389 = vrot.slane %v2998, 3
      %v3390 = vsel %vm1129, %v3387, %v3389
      %v3391 = vrot.slane %v2999, 3
      %v3392 = vrot.slane %v3000, 3
      %v3393 = vsel %vm1129, %v3391, %v3392
      %v3394 = vrot.slane %v3001, 3
      %v3395 = vsel %vm1129, %v3392, %v3394
      %v3396 = vrot.slane %v3002, 3
      %v3397 = vrot.slane %v3003, 3
      %v3398 = vsel %vm1129, %v3396, %v3397
      %v3399 = vrot.slane %v3004, 3
      %v3400 = vsel %vm1129, %v3397, %v3399
      %v3401 = vrot.slane %v3005, 3
      %v3402 = vrot.slane %v3006, 3
      %v3403 = vsel %vm1129, %v3401, %v3402
      %v3404 = vrot.slane %v3007, 3
      %v3405 = vsel %vm1129, %v3402, %v3404
      %v3406 = vrot.slane %v3008, 3
      %v3407 = vrot.slane %v3009, 3
      %v3408 = vsel %vm1129, %v3406, %v3407
      %v3409 = vrot.slane %v3010, 3
      %v3410 = vsel %vm1129, %v3407, %v3409
      %v3411 = vrot.slane %v3011, 3
      %v3412 = vrot.slane %v3012, 3
      %v3413 = vsel %vm1129, %v3411, %v3412
      %v3414 = vrot.slane %v3013, 3
      %v3415 = vsel %vm1129, %v3412, %v3414
      %v3416 = vrot.slane %v3014, 3
      %v3417 = vrot.slane %v3015, 3
      %v3418 = vsel %vm1129, %v3416, %v3417
      %v3419 = vrot.slane %v3016, 3
      %v3420 = vsel %vm1129, %v3417, %v3419
      %v3421 = vrot.slane %v3017, 3
      %v3422 = vrot.slane %v3018, 3
      %v3423 = vsel %vm1129, %v3421, %v3422
      %v3424 = vrot.slane %v3019, 3
      %v3425 = vsel %vm1129, %v3422, %v3424
      %v3426 = vrot.slane %v3020, 3
      %v3427 = vrot.slane %v3021, 3
      %v3428 = vsel %vm1129, %v3426, %v3427
      %v3429 = vrot.slane %v3022, 3
      %v3430 = vsel %vm1129, %v3427, %v3429
      %v3431 = vrot.slane %v3023, 3
      %v3432 = vrot.slane %v3024, 3
      %v3433 = vsel %vm1129, %v3431, %v3432
      %v3434 = vrot.slane %v3025, 3
      %v3435 = vsel %vm1129, %v3432, %v3434
      %v3436 = vrot.slane %v3026, 3
      %v3437 = vrot.slane %v3027, 3
      %v3438 = vsel %vm1129, %v3436, %v3437
      %v3439 = vrot.slane %v3028, 3
      %v3440 = vsel %vm1129, %v3437, %v3439
      %v3441 = vrot.slane %v3029, 3
      %v3442 = vrot.slane %v3030, 3
      %v3443 = vsel %vm1129, %v3441, %v3442
      %v3444 = vrot.slane %v3031, 3
      %v3445 = vsel %vm1129, %v3442, %v3444
      %v3446 = vrot.slane %v3032, 3
      %v3447 = vrot.slane %v3033, 3
      %v3448 = vsel %vm1129, %v3446, %v3447
      %v3449 = vrot.slane %v3034, 3
      %v3450 = vsel %vm1129, %v3447, %v3449
      %v3483 = vmax.f32 %v3339, %v3373
      %v3484 = vmax.f32 %v3340, %v3375
      %v3485 = vmax.f32 %v3341, %v3378
      %v3486 = vmax.f32 %v3342, %v3380
      %v3487 = vmax.f32 %v3343, %v3383
      %v3488 = vmax.f32 %v3344, %v3385
      %v3489 = vmax.f32 %v3345, %v3388
      %v3490 = vmax.f32 %v3346, %v3390
      %v3491 = vmax.f32 %v3347, %v3393
      %v3492 = vmax.f32 %v3348, %v3395
      %v3493 = vmax.f32 %v3349, %v3398
      %v3494 = vmax.f32 %v3350, %v3400
      %v3495 = vmax.f32 %v3351, %v3403
      %v3496 = vmax.f32 %v3352, %v3405
      %v3497 = vmax.f32 %v3353, %v3408
      %v3498 = vmax.f32 %v3354, %v3410
      %v3499 = vmax.f32 %v3355, %v3413
      %v3500 = vmax.f32 %v3356, %v3415
      %v3501 = vmax.f32 %v3357, %v3418
      %v3502 = vmax.f32 %v3358, %v3420
      %v3503 = vmax.f32 %v3359, %v3423
      %v3504 = vmax.f32 %v3360, %v3425
      %v3505 = vmax.f32 %v3361, %v3428
      %v3506 = vmax.f32 %v3362, %v3430
      %v3507 = vmax.f32 %v3363, %v3433
      %v3508 = vmax.f32 %v3364, %v3435
      %v3509 = vmax.f32 %v3365, %v3438
      %v3510 = vmax.f32 %v3366, %v3440
      %v3511 = vmax.f32 %v3367, %v3443
      %v3512 = vmax.f32 %v3368, %v3445
      %v3513 = vmax.f32 %v3369, %v3448
      %v3514 = vmax.f32 %v3370, %v3450
      %v3515 = vrot.slane %v2987, 4
      %v3516 = vrot.slane %v2988, 4
      %v3517 = vsel %vm1274, %v3515, %v3516
      %v3518 = vrot.slane %v2989, 4
      %v3519 = vsel %vm1274, %v3516, %v3518
      %v3520 = vrot.slane %v2990, 4
      %v3521 = vrot.slane %v2991, 4
      %v3522 = vsel %vm1274, %v3520, %v3521
      %v3523 = vrot.slane %v2992, 4
      %v3524 = vsel %vm1274, %v3521, %v3523
      %v3525 = vrot.slane %v2993, 4
      %v3526 = vrot.slane %v2994, 4
      %v3527 = vsel %vm1274, %v3525, %v3526
      %v3528 = vrot.slane %v2995, 4
      %v3529 = vsel %vm1274, %v3526, %v3528
      %v3530 = vrot.slane %v2996, 4
      %v3531 = vrot.slane %v2997, 4
      %v3532 = vsel %vm1274, %v3530, %v3531
      %v3533 = vrot.slane %v2998, 4
      %v3534 = vsel %vm1274, %v3531, %v3533
      %v3535 = vrot.slane %v2999, 4
      %v3536 = vrot.slane %v3000, 4
      %v3537 = vsel %vm1274, %v3535, %v3536
      %v3538 = vrot.slane %v3001, 4
      %v3539 = vsel %vm1274, %v3536, %v3538
      %v3540 = vrot.slane %v3002, 4
      %v3541 = vrot.slane %v3003, 4
      %v3542 = vsel %vm1274, %v3540, %v3541
      %v3543 = vrot.slane %v3004, 4
      %v3544 = vsel %vm1274, %v3541, %v3543
      %v3545 = vrot.slane %v3005, 4
      %v3546 = vrot.slane %v3006, 4
      %v3547 = vsel %vm1274, %v3545, %v3546
      %v3548 = vrot.slane %v3007, 4
      %v3549 = vsel %vm1274, %v3546, %v3548
      %v3550 = vrot.slane %v3008, 4
      %v3551 = vrot.slane %v3009, 4
      %v3552 = vsel %vm1274, %v3550, %v3551
      %v3553 = vrot.slane %v3010, 4
      %v3554 = vsel %vm1274, %v3551, %v3553
      %v3555 = vrot.slane %v3011, 4
      %v3556 = vrot.slane %v3012, 4
      %v3557 = vsel %vm1274, %v3555, %v3556
      %v3558 = vrot.slane %v3013, 4
      %v3559 = vsel %vm1274, %v3556, %v3558
      %v3560 = vrot.slane %v3014, 4
      %v3561 = vrot.slane %v3015, 4
      %v3562 = vsel %vm1274, %v3560, %v3561
      %v3563 = vrot.slane %v3016, 4
      %v3564 = vsel %vm1274, %v3561, %v3563
      %v3565 = vrot.slane %v3017, 4
      %v3566 = vrot.slane %v3018, 4
      %v3567 = vsel %vm1274, %v3565, %v3566
      %v3568 = vrot.slane %v3019, 4
      %v3569 = vsel %vm1274, %v3566, %v3568
      %v3570 = vrot.slane %v3020, 4
      %v3571 = vrot.slane %v3021, 4
      %v3572 = vsel %vm1274, %v3570, %v3571
      %v3573 = vrot.slane %v3022, 4
      %v3574 = vsel %vm1274, %v3571, %v3573
      %v3575 = vrot.slane %v3023, 4
      %v3576 = vrot.slane %v3024, 4
      %v3577 = vsel %vm1274, %v3575, %v3576
      %v3578 = vrot.slane %v3025, 4
      %v3579 = vsel %vm1274, %v3576, %v3578
      %v3580 = vrot.slane %v3026, 4
      %v3581 = vrot.slane %v3027, 4
      %v3582 = vsel %vm1274, %v3580, %v3581
      %v3583 = vrot.slane %v3028, 4
      %v3584 = vsel %vm1274, %v3581, %v3583
      %v3585 = vrot.slane %v3029, 4
      %v3586 = vrot.slane %v3030, 4
      %v3587 = vsel %vm1274, %v3585, %v3586
      %v3588 = vrot.slane %v3031, 4
      %v3589 = vsel %vm1274, %v3586, %v3588
      %v3590 = vrot.slane %v3032, 4
      %v3591 = vrot.slane %v3033, 4
      %v3592 = vsel %vm1274, %v3590, %v3591
      %v3593 = vrot.slane %v3034, 4
      %v3594 = vsel %vm1274, %v3591, %v3593
      %v3627 = vmax.f32 %v3483, %v3517
      %v3628 = vmax.f32 %v3484, %v3519
      %v3629 = vmax.f32 %v3485, %v3522
      %v3630 = vmax.f32 %v3486, %v3524
      %v3631 = vmax.f32 %v3487, %v3527
      %v3632 = vmax.f32 %v3488, %v3529
      %v3633 = vmax.f32 %v3489, %v3532
      %v3634 = vmax.f32 %v3490, %v3534
      %v3635 = vmax.f32 %v3491, %v3537
      %v3636 = vmax.f32 %v3492, %v3539
      %v3637 = vmax.f32 %v3493, %v3542
      %v3638 = vmax.f32 %v3494, %v3544
      %v3639 = vmax.f32 %v3495, %v3547
      %v3640 = vmax.f32 %v3496, %v3549
      %v3641 = vmax.f32 %v3497, %v3552
      %v3642 = vmax.f32 %v3498, %v3554
      %v3643 = vmax.f32 %v3499, %v3557
      %v3644 = vmax.f32 %v3500, %v3559
      %v3645 = vmax.f32 %v3501, %v3562
      %v3646 = vmax.f32 %v3502, %v3564
      %v3647 = vmax.f32 %v3503, %v3567
      %v3648 = vmax.f32 %v3504, %v3569
      %v3649 = vmax.f32 %v3505, %v3572
      %v3650 = vmax.f32 %v3506, %v3574
      %v3651 = vmax.f32 %v3507, %v3577
      %v3652 = vmax.f32 %v3508, %v3579
      %v3653 = vmax.f32 %v3509, %v3582
      %v3654 = vmax.f32 %v3510, %v3584
      %v3655 = vmax.f32 %v3511, %v3587
      %v3656 = vmax.f32 %v3512, %v3589
      %v3657 = vmax.f32 %v3513, %v3592
      %v3658 = vmax.f32 %v3514, %v3594
      %3659 = vst.msk [vmem:[%s242] sm:$0xff] %vm243, %v3627
      %3660 = vst.msk [vmem:[%s242 + $0x8] sm:$0xff] %vm243, %v3628
      %3661 = vst.msk [vmem:[%s242 + $0x10] sm:$0xff] %vm243, %v3629
      %3662 = vst.msk [vmem:[%s242 + $0x18] sm:$0xff] %vm243, %v3630
      %3663 = vst.msk [vmem:[%s242 + $0x20] sm:$0xff] %vm243, %v3631
      %3664 = vst.msk [vmem:[%s242 + $0x28] sm:$0xff] %vm243, %v3632
      %3665 = vst.msk [vmem:[%s242 + $0x30] sm:$0xff] %vm243, %v3633
      %3666 = vst.msk [vmem:[%s242 + $0x38] sm:$0xff] %vm243, %v3634
      %3667 = vst.msk [vmem:[%s242 + $0x40] sm:$0xff] %vm243, %v3635
      %3668 = vst.msk [vmem:[%s242 + $0x48] sm:$0xff] %vm243, %v3636
      %3669 = vst.msk [vmem:[%s242 + $0x50] sm:$0xff] %vm243, %v3637
      %3670 = vst.msk [vmem:[%s242 + $0x58] sm:$0xff] %vm243, %v3638
      %3671 = vst.msk [vmem:[%s242 + $0x60] sm:$0xff] %vm243, %v3639
      %3672 = vst.msk [vmem:[%s242 + $0x68] sm:$0xff] %vm243, %v3640
      %3673 = vst.msk [vmem:[%s242 + $0x70] sm:$0xff] %vm243, %v3641
      %3674 = vst.msk [vmem:[%s242 + $0x78] sm:$0xff] %vm243, %v3642
      %3675 = vst.msk [vmem:[%s242 + $0x80] sm:$0xff] %vm243, %v3643
      %3676 = vst.msk [vmem:[%s242 + $0x88] sm:$0xff] %vm243, %v3644
      %3677 = vst.msk [vmem:[%s242 + $0x90] sm:$0xff] %vm243, %v3645
      %3678 = vst.msk [vmem:[%s242 + $0x98] sm:$0xff] %vm243, %v3646
      %3679 = vst.msk [vmem:[%s242 + $0xa0] sm:$0xff] %vm243, %v3647
      %3680 = vst.msk [vmem:[%s242 + $0xa8] sm:$0xff] %vm243, %v3648
      %3681 = vst.msk [vmem:[%s242 + $0xb0] sm:$0xff] %vm243, %v3649
      %3682 = vst.msk [vmem:[%s242 + $0xb8] sm:$0xff] %vm243, %v3650
      %3683 = vst.msk [vmem:[%s242 + $0xc0] sm:$0xff] %vm243, %v3651
      %3684 = vst.msk [vmem:[%s242 + $0xc8] sm:$0xff] %vm243, %v3652
      %3685 = vst.msk [vmem:[%s242 + $0xd0] sm:$0xff] %vm243, %v3653
      %3686 = vst.msk [vmem:[%s242 + $0xd8] sm:$0xff] %vm243, %v3654
      %3687 = vst.msk [vmem:[%s242 + $0xe0] sm:$0xff] %vm243, %v3655
      %3688 = vst.msk [vmem:[%s242 + $0xe8] sm:$0xff] %vm243, %v3656
      %3689 = vst.msk [vmem:[%s242 + $0xf0] sm:$0xff] %vm243, %v3657
      %3690 = vst.msk [vmem:[%s242 + $0xf8] sm:$0xff] %vm243, %v3658
      %p3691 = scmp.lt.s32.totalorder %s19, 1
      %s3692 = scalar_select %p3691, %s19, 1
      %p3693 = scmp.lt.s32.totalorder %s20, 0
      %s3694 = scalar_select %p3693, %s20, 0
      %s3695 = smul.addr %s3692, 32
      %s3696 = sadd.s32 %s3694, %s3695
      %s3697 = smul.addr %s3696, 8
      %s3698 = scalar_lea.vmem %s1, %s3697
      %p3699 = scmp.lt.s32.totalorder %s19, 1
      %s3700 = scalar_select %p3699, %s19, 1
      %p3701 = scmp.lt.s32.totalorder %s20, 0
      %s3702 = scalar_select %p3701, %s20, 0
      %s3703 = smul.addr %s3700, 32
      %s3704 = sadd.s32 %s3702, %s3703
      %s3705 = smul.addr %s3704, 8
      %s3706 = scalar_lea.vmem %s2, %s3705
      %p3707 = scmp.lt.s32.totalorder %s19, 1
      %s3708 = scalar_select %p3707, %s19, 1
      %p3709 = scmp.lt.s32.totalorder %s20, 0
      %s3710 = scalar_select %p3709, %s20, 0
      %s3711 = smul.addr %s3708, 32
      %s3712 = sadd.s32 %s3710, %s3711
      %s3713 = smul.addr %s3712, 8
      %s3714 = scalar_lea.vmem %s3, %s3713
      // Predicated region
      $region25: #{tpu_custom_call.1} parent=23 // pred_check
        %p3715 = pneg %p75
      $region26: #{tpu_custom_call.1} parent=23 // pred_check_branch
        %3717 = sbr.rel (%p3715) target = $region28
      $region27: #{tpu_custom_call.1} parent=23 // pred_region
        _
      $region28: #{tpu_custom_call.1} parent=23 // pred_fallthru
        _
      // Predicated region
      $region29: #{tpu_custom_call.1} parent=23 // pred_check
        %p3718 = pneg %p103
      $region30: #{tpu_custom_call.1} parent=23 // pred_check_branch
        %3720 = sbr.rel (%p3718) target = $region32
      $region31: #{tpu_custom_call.1} parent=23 // pred_region
        _
      $region32: #{tpu_custom_call.1} parent=23 // pred_fallthru
        _
      // Predicated region
      $region33: #{tpu_custom_call.1} parent=23 // pred_check
        %p3721 = pneg %p131
      $region34: #{tpu_custom_call.1} parent=23 // pred_check_branch
        %3723 = sbr.rel (%p3721) target = $region36
      $region35: #{tpu_custom_call.1} parent=23 // pred_region
        _
      $region36: #{tpu_custom_call.1} parent=23 // pred_fallthru
        _
    $region24: #{tpu_custom_call.1} parent=5 // pred_fallthru
      _
    %p3724 = scmp.le.s32.totalorder 2, %s10
    // Predicated region
    $region37: #{tpu_custom_call.1} parent=5 // pred_check
      %p3725 = pneg %p3724
    $region38: #{tpu_custom_call.1} parent=5 // pred_check_branch
      %3727 = sbr.rel (%p3725) target = $region40
    $region39: #{tpu_custom_call.1} parent=5 // pred_region
      %s3728 = ssub.s32 %s10, 2
      // Predicated region
      $region41: #{tpu_custom_call.1} parent=39 // pred_check
        %p3729 = pneg %p81
      $region42: #{tpu_custom_call.1} parent=39 // pred_check_branch
        %3731 = sbr.rel (%p3729) target = $region44
      $region43: #{tpu_custom_call.1} parent=39 // pred_region
        %p3732 = scmp.lt.s32.totalorder %s21, 1
        %s3733 = scalar_select %p3732, %s21, 1
        %p3734 = scmp.lt.s32.totalorder %s22, 0
        %s3735 = scalar_select %p3734, %s22, 0
        %s3736 = smul.addr %s3733, 32
        %s3737 = sadd.s32 %s3735, %s3736
        %s3738 = smul.addr %s3737, 8
        %s3739 = scalar_lea.vmem %s1, %s3738
      $region44: #{tpu_custom_call.1} parent=39 // pred_fallthru
        _
      // Predicated region
      $region45: #{tpu_custom_call.1} parent=39 // pred_check
        %p3740 = pneg %p109
      $region46: #{tpu_custom_call.1} parent=39 // pred_check_branch
        %3742 = sbr.rel (%p3740) target = $region48
      $region47: #{tpu_custom_call.1} parent=39 // pred_region
        %p3743 = scmp.lt.s32.totalorder %s21, 1
        %s3744 = scalar_select %p3743, %s21, 1
        %p3745 = scmp.lt.s32.totalorder %s22, 0
        %s3746 = scalar_select %p3745, %s22, 0
        %s3747 = smul.addr %s3744, 32
        %s3748 = sadd.s32 %s3746, %s3747
        %s3749 = smul.addr %s3748, 8
        %s3750 = scalar_lea.vmem %s2, %s3749
      $region48: #{tpu_custom_call.1} parent=39 // pred_fallthru
        _
      // Predicated region
      $region49: #{tpu_custom_call.1} parent=39 // pred_check
        %p3751 = pneg %p137
      $region50: #{tpu_custom_call.1} parent=39 // pred_check_branch
        %3753 = sbr.rel (%p3751) target = $region52
      $region51: #{tpu_custom_call.1} parent=39 // pred_region
        %p3754 = scmp.lt.s32.totalorder %s21, 1
        %s3755 = scalar_select %p3754, %s21, 1
        %p3756 = scmp.lt.s32.totalorder %s22, 0
        %s3757 = scalar_select %p3756, %s22, 0
        %s3758 = smul.addr %s3755, 32
        %s3759 = sadd.s32 %s3757, %s3758
        %s3760 = smul.addr %s3759, 8
        %s3761 = scalar_lea.vmem %s3, %s3760
      $region52: #{tpu_custom_call.1} parent=39 // pred_fallthru
        _
    $region40: #{tpu_custom_call.1} parent=5 // pred_fallthru
      _
  $region6: #{tpu_custom_call.1} parent=0 // loop_footer
    %s14 = sadd.s32 1, %s10
  $region7: #{tpu_custom_call.1} parent=0 // loop_footer_branch
    %9 = sbr.rel target = $region3
  $region8: #{tpu_custom_call.1} parent=0 // loop_exit
    _

</llo_original>
